<compile_context>
chip_gen: v6e
topology: v6e:2x2x1
jax: 0.10.0
libtpu: 0.0.40
codegen_flags: <defaults>
</compile_context>

<pallas_src>
import numpy as np
import jax
import jax.numpy as jnp
from jax.experimental import pallas as pl
from jax.experimental.pallas import tpu as pltpu


# ---------------------------------------------------------------------------
# Batch-independent (per-image) selection constants, built with numpy once.
# ---------------------------------------------------------------------------
def _np_pool_select_T(hc, wc):
    """(4, hp*wp, hc*wc) 0/1 gathers; pooled = max_a(sel[a] @ act), act is (hc*wc, C)."""
    hp, wp = hc // 2, wc // 2
    o = np.arange(hp * wp)
    ty, tx = o // wp, o % wp
    mats = []
    for a in range(2):
        for b in range(2):
            src = (2 * ty + a) * wc + (2 * tx + b)
            m = np.zeros((hp * wp, hc * wc), np.float32)
            m[o, src] = 1.0
            mats.append(m)
    return np.stack(mats, axis=0)


def _np_patch_select_T(hi, wi, k):
    """(k*k, ho*wo, hi*wi) 0/1 per-tap gathers (in-kernel im2col); tap t = di*k + dj."""
    ho, wo = hi - k + 1, wi - k + 1
    o = np.arange(ho * wo)
    oy, ox = o // wo, o % wo
    mats = []
    for di in range(k):
        for dj in range(k):
            src = (oy + di) * wi + (ox + dj)
            m = np.zeros((ho * wo, hi * wi), np.float32)
            m[o, src] = 1.0
            mats.append(m)
    return np.stack(mats, axis=0)


def _input_patches_T(x, k):
    """(N,1,H,W) -> (N, Ho*Wo, k*k) im2col of the raw input (spatial on sublanes,
    taps on lanes); tap order t = di*k + dj matches the conv weight layout."""
    n, _, h, w = x.shape
    ho, wo = h - k + 1, w - k + 1
    xs = x[:, 0]
    cols = [xs[:, di:di + ho, dj:dj + wo].reshape(n, ho * wo)
            for di in range(k) for dj in range(k)]
    return jnp.stack(cols, axis=-1)


def _const_spec(shape):
    nd = len(shape)
    return pl.BlockSpec(shape, lambda i, _nd=nd: (0,) * _nd)


# ---------------------------------------------------------------------------
# LeNetTarget forward (single fused Pallas kernel, batch on a parallel grid axis)
# ---------------------------------------------------------------------------
class LeNetTargetPallas:
    def __init__(self, kernel_size, n_kernels=10, out_dim=10,
                 target_hidden_dim=50, n_conv_layers=2, n_tasks=2):
        assert len(kernel_size) == n_conv_layers
        self.kernel_size = [int(k) for k in kernel_size]
        self.n_kernels = n_kernels
        self.out_dim = out_dim
        self.target_hidden_dim = target_hidden_dim
        self.n_conv_layers = n_conv_layers
        self.n_tasks = n_tasks
        self._const_cache = {}

    # Per-image selection matrices (cached; numpy-built, stored as bf16 = exact 0/1).
    def _selection_constants(self, h, w):
        key = (h, w)
        if key in self._const_cache:
            return self._const_cache[key]
        ks = self.kernel_size
        consts = {}
        hc, wc = h - ks[0] + 1, w - ks[0] + 1
        consts['pool0'] = jnp.asarray(_np_pool_select_T(hc, wc), dtype=jnp.bfloat16)
        hp, wp = hc // 2, wc // 2
        for i in range(1, self.n_conv_layers):
            k = ks[i]
            consts[f'patch{i}'] = jnp.asarray(_np_patch_select_T(hp, wp, k),
                                              dtype=jnp.bfloat16)
            hc, wc = hp - k + 1, wp - k + 1
            consts[f'pool{i}'] = jnp.asarray(_np_pool_select_T(hc, wc), dtype=jnp.bfloat16)
            hp, wp = hc // 2, wc // 2
        self._const_cache[key] = consts
        return consts

    def forward(self, x, weights):
        f32 = jnp.float32
        n, cin, h, w = x.shape
        assert cin == 1, "LeNetTarget conv0 expects a single input channel"
        L = self.n_conv_layers
        ks = self.kernel_size
        chans = [int(2 ** i) * self.n_kernels for i in range(L)]
        hidden = self.target_hidden_dim
        n_heads = self.n_tasks * self.out_dim
        hpad = ((n_heads + 127) // 128) * 128

        consts = self._selection_constants(h, w)

        # ---------------- wrapper-side operand prep (all tiny, traced) ----------------
        inputs = [
            _input_patches_T(x.astype(f32), ks[0]),                              # (N,S0c,k0^2)
            weights['conv0.weights'].astype(f32).reshape(chans[0], ks[0] * ks[0]).T,  # (k0^2,C0)
            weights['conv0.bias'].astype(f32).reshape(1, chans[0]),
            consts['pool0'],
        ]
        hc, wc = h - ks[0] + 1, w - ks[0] + 1
        hp, wp = hc // 2, wc // 2
        for i in range(1, L):
            k = ks[i]
            w4 = weights[f'conv{i}.weights'].astype(f32).reshape(
                chans[i], chans[i - 1], k, k)
            inputs.append(consts[f'patch{i}'])
            # (C_prev, k^2*C_i): column t*C_i + cout = W[cout, cin, di, dj], t = di*k+dj
            inputs.append(jnp.transpose(w4, (1, 2, 3, 0)).reshape(chans[i - 1], k * k * chans[i]))
            inputs.append(weights[f'conv{i}.bias'].astype(f32).reshape(1, chans[i]))
            inputs.append(consts[f'pool{i}'])
            hc, wc = hp - k + 1, wp - k + 1
            hp, wp = hc // 2, wc // 2
        s_last = hp * wp
        c_last = chans[-1]

        # Fold hidden0 + all task heads into one effective linear (no ReLU in between).
        wh = weights['hidden0.weights'].astype(f32).reshape(hidden, c_last * s_last)
        bh = weights['hidden0.bias'].astype(f32)
        wcat = jnp.concatenate(
            [weights[f'task{j}.weights'].astype(f32).reshape(self.out_dim, hidden)
             for j in range(self.n_tasks)], axis=0)
        bcat = jnp.concatenate(
            [weights[f'task{j}.bias'].astype(f32) for j in range(self.n_tasks)], axis=0)
        weff2 = jnp.pad(wcat @ wh, ((0, hpad - n_heads), (0, 0)))                # (hpad, C*S)
        weff = jnp.transpose(weff2.reshape(hpad, c_last, s_last), (2, 1, 0))     # (S, C, hpad)
        beff = jnp.pad(wcat @ bh + bcat, (0, hpad - n_heads)).reshape(1, hpad)   # (1, hpad)
        inputs += [weff, beff]

        s0c = (h - ks[0] + 1) * (w - ks[0] + 1)
        k0sq = ks[0] * ks[0]

        # ------------------------------- kernel body -------------------------------
        def kernel(*refs):
            out_ref = refs[-1]
            rs = refs[:-1]

            def pool(a, psel_ref):
                best = None
                for q in range(4):
                    g = jnp.dot(psel_ref[q].astype(f32), a,
                                preferred_element_type=f32)
                    best = g if best is None else jnp.maximum(best, g)
                return best

            # conv0 + ReLU: one MXU dot on the prebuilt im2col (spatial on sublanes)
            patches = rs[0][0]                                            # (S0c, k0^2)
            act = jnp.maximum(
                jnp.dot(patches, rs[1][...], preferred_element_type=f32) + rs[2][...],
                0.0)                                                      # (S0c, C0)
            pooled = pool(act, rs[3])
            pos = 4
            # deeper conv layers: one fused channel-mix dot + k^2 gather dots + pool
            for i in range(1, L):
                gsel_ref, wst_ref, b_ref = rs[pos], rs[pos + 1], rs[pos + 2]
                pos += 3
                ci = chans[i]
                z = jnp.dot(pooled, wst_ref[...], preferred_element_type=f32)  # (Sp, k^2*Ci)
                acc = None
                for t in range(ks[i] * ks[i]):
                    zt = z[:, t * ci:(t + 1) * ci]
                    term = jnp.dot(gsel_ref[t].astype(f32), zt,
                                   preferred_element_type=f32)
                    acc = term if acc is None else acc + term
                act = jnp.maximum(acc + b_ref[...], 0.0)                  # (Sc, Ci)
                pooled = pool(act, rs[pos])
                pos += 1
            # epilogue: flatten folded into the (hidden+heads)-effective weight
            weff_ref, beff_ref = rs[pos], rs[pos + 1]
            logr = beff_ref[...]                                          # (1, hpad)
            for s in range(s_last):
                logr = logr + jnp.dot(pooled[s:s + 1, :], weff_ref[s],
                                      preferred_element_type=f32)
            out_ref[0] = logr.astype(out_ref.dtype)

        in_specs = [pl.BlockSpec((1, s0c, k0sq), lambda i: (i, 0, 0))]
        in_specs += [_const_spec(a.shape) for a in inputs[1:]]

        out = pl.pallas_call(
            kernel,
            out_shape=jax.ShapeDtypeStruct((n, 1, hpad), f32),
            grid=(n,),
            in_specs=in_specs,
            out_specs=pl.BlockSpec((1, 1, hpad), lambda i: (i, 0, 0)),
            compiler_params=pltpu.CompilerParams(dimension_semantics=("parallel",)),
        )(*inputs)

        return [out[:, 0, j * self.out_dim:(j + 1) * self.out_dim]
                for j in range(self.n_tasks)]


# ---------------------------------------------------------------------------
# Pure-JAX reference (for correctness check)
# ---------------------------------------------------------------------------
def ref_forward(x, weights, kernel_size, n_kernels, out_dim, hidden,
                n_conv_layers, n_tasks):
    def conv(x, w, b):
        y = jax.lax.conv_general_dilated(
            x, w, (1, 1), 'VALID', dimension_numbers=('NCHW', 'OIHW', 'NCHW'))
        return jax.nn.relu(y + b.reshape(1, -1, 1, 1))

    def pool(x):
        return jax.lax.reduce_window(x, -jnp.inf, jax.lax.max,
                                     (1, 1, 2, 2), (1, 1, 2, 2), 'VALID')

    w0 = weights['conv0.weights'].reshape(n_kernels, 1, kernel_size[0], kernel_size[0])
    x = pool(conv(x, w0, weights['conv0.bias']))
    for i in range(1, n_conv_layers):
        wi = weights[f'conv{i}.weights'].reshape(
            int(2 ** i * n_kernels), int(2 ** (i - 1) * n_kernels),
            kernel_size[i], kernel_size[i])
        x = pool(conv(x, wi, weights[f'conv{i}.bias']))
    x = x.reshape(x.shape[0], -1)
    wh = weights['hidden0.weights'].reshape(hidden, x.shape[-1])
    x = x @ wh.T + weights['hidden0.bias']
    return [x @ weights[f'task{j}.weights'].reshape(out_dim, hidden).T
            + weights[f'task{j}.bias'] for j in range(n_tasks)]


# ---------------------------------------------------------------------------
if __name__ == "__main__":
    kernel_size = [3, 3]
    n_kernels = 6
    out_dim = 10
    target_hidden_dim = 32
    n_conv_layers = 2
    n_tasks = 2
    N, H, W = 2, 16, 16                               # 1 input channel (MNIST-like)

    # Spatial bookkeeping: 16 -> conv3 -> 14 -> pool -> 7 -> conv3 -> 5 -> pool -> 2
    flat_dim = (2 * n_kernels) * 2 * 2                # 48

    key = jax.random.PRNGKey(0)
    keys = jax.random.split(key, 16)
    f32 = jnp.float32
    weights = {
        'conv0.weights': 0.1 * jax.random.normal(
            keys[0], (n_kernels * 1 * kernel_size[0] ** 2,), f32),
        'conv0.bias': 0.1 * jax.random.normal(keys[1], (n_kernels,), f32),
        'conv1.weights': 0.1 * jax.random.normal(
            keys[2], (2 * n_kernels * n_kernels * kernel_size[1] ** 2,), f32),
        'conv1.bias': 0.1 * jax.random.normal(keys[3], (2 * n_kernels,), f32),
        'hidden0.weights': 0.1 * jax.random.normal(
            keys[4], (target_hidden_dim * flat_dim,), f32),
        'hidden0.bias': 0.1 * jax.random.normal(keys[5], (target_hidden_dim,), f32),
        'task0.weights': 0.1 * jax.random.normal(
            keys[6], (out_dim * target_hidden_dim,), f32),
        'task0.bias': 0.1 * jax.random.normal(keys[7], (out_dim,), f32),
        'task1.weights': 0.1 * jax.random.normal(
            keys[8], (out_dim * target_hidden_dim,), f32),
        'task1.bias': 0.1 * jax.random.normal(keys[9], (out_dim,), f32),
    }
    x = jax.random.normal(keys[10], (N, 1, H, W), f32)

    model = LeNetTargetPallas(kernel_size, n_kernels, out_dim,
                              target_hidden_dim, n_conv_layers, n_tasks)
    fwd = jax.jit(model.forward)
    logits = fwd(x, weights)
    logits = [jax.block_until_ready(l) for l in logits]

    ref = ref_forward(x, weights, kernel_size, n_kernels, out_dim,
                      target_hidden_dim, n_conv_layers, n_tasks)
    for lp, lr in zip(logits, ref):
        assert lp.shape == (N, out_dim)
        assert jnp.allclose(lp, lr, atol=2e-3, rtol=2e-3), "mismatch vs reference"

    print("KERNEL_OK")
</pallas_src>

<mosaic_0001>
module attributes {stable_mosaic.version = 11 : i64} {
  func.func @kernel(%arg0: i32, %arg1: memref<1x196x9xf32, #tpu.memory_space<vmem>>, %arg2: memref<9x6xf32, #tpu.memory_space<vmem>>, %arg3: memref<1x6xf32, #tpu.memory_space<vmem>>, %arg4: memref<4x49x196xbf16, #tpu.memory_space<vmem>>, %arg5: memref<9x25x49xbf16, #tpu.memory_space<vmem>>, %arg6: memref<6x108xf32, #tpu.memory_space<vmem>>, %arg7: memref<1x12xf32, #tpu.memory_space<vmem>>, %arg8: memref<4x4x25xbf16, #tpu.memory_space<vmem>>, %arg9: memref<4x12x128xf32, #tpu.memory_space<vmem>>, %arg10: memref<1x128xf32, #tpu.memory_space<vmem>>, %arg11: memref<1x1x128xf32, #tpu.memory_space<vmem>>) attributes {dimension_semantics = [#tpu.dimension_semantics<parallel>], iteration_bounds = array<i64: 2>, scalar_prefetch = 0 : i64, scratch_operands = 0 : i64, tpu.core_type = #tpu.core_type<tc>, window_params = [{transform_indices = @transform_0, window_bounds = array<i64: 1, 196, 9>}, {pipeline_mode = #tpu.pipeline_mode<synchronous>, transform_indices = @transform_1, window_bounds = array<i64: 9, 6>}, {pipeline_mode = #tpu.pipeline_mode<synchronous>, transform_indices = @transform_2, window_bounds = array<i64: 1, 6>}, {pipeline_mode = #tpu.pipeline_mode<synchronous>, transform_indices = @transform_3, window_bounds = array<i64: 4, 49, 196>}, {pipeline_mode = #tpu.pipeline_mode<synchronous>, transform_indices = @transform_4, window_bounds = array<i64: 9, 25, 49>}, {pipeline_mode = #tpu.pipeline_mode<synchronous>, transform_indices = @transform_5, window_bounds = array<i64: 6, 108>}, {pipeline_mode = #tpu.pipeline_mode<synchronous>, transform_indices = @transform_6, window_bounds = array<i64: 1, 12>}, {pipeline_mode = #tpu.pipeline_mode<synchronous>, transform_indices = @transform_7, window_bounds = array<i64: 4, 4, 25>}, {pipeline_mode = #tpu.pipeline_mode<synchronous>, transform_indices = @transform_8, window_bounds = array<i64: 4, 12, 128>}, {pipeline_mode = #tpu.pipeline_mode<synchronous>, transform_indices = @transform_9, window_bounds = array<i64: 1, 128>}, {transform_indices = @transform_10, window_bounds = array<i64: 1, 1, 128>}]} {
    %c0 = arith.constant 0 : index
    %c0_0 = arith.constant 0 : index
    %c0_1 = arith.constant 0 : index
    %0 = vector.load %arg1[%c0, %c0_0, %c0_1] : memref<1x196x9xf32, #tpu.memory_space<vmem>>, vector<1x196x9xf32>
    %1 = vector.shape_cast %0 : vector<1x196x9xf32> to vector<196x9xf32>
    %c0_2 = arith.constant 0 : index
    %c0_3 = arith.constant 0 : index
    %2 = vector.load %arg2[%c0_2, %c0_3] : memref<9x6xf32, #tpu.memory_space<vmem>>, vector<9x6xf32>
    %cst = arith.constant dense<0.000000e+00> : vector<196x6xf32>
    %3 = tpu.matmul %1, %2, %cst {dimension_numbers = #tpu.dot_dimension_numbers<[1], [0], [0], [1], [0, 0, 1, 1], [], []>} : vector<196x9xf32>, vector<9x6xf32>, vector<196x6xf32> -> vector<196x6xf32>
    %c0_4 = arith.constant 0 : index
    %c0_5 = arith.constant 0 : index
    %4 = vector.load %arg3[%c0_4, %c0_5] : memref<1x6xf32, #tpu.memory_space<vmem>>, vector<1x6xf32>
    %5 = vector.broadcast %4 : vector<1x6xf32> to vector<196x6xf32>
    %6 = arith.addf %3, %5 : vector<196x6xf32>
    %cst_6 = arith.constant 0.000000e+00 : f32
    %7 = vector.broadcast %cst_6 : f32 to vector<196x6xf32>
    %8 = arith.maximumf %6, %7 : vector<196x6xf32>
    %c0_7 = arith.constant 0 : index
    %c0_8 = arith.constant 0 : index
    %c0_9 = arith.constant 0 : index
    %9 = vector.load %arg4[%c0_7, %c0_8, %c0_9] : memref<4x49x196xbf16, #tpu.memory_space<vmem>>, vector<1x49x196xbf16>
    %10 = vector.shape_cast %9 : vector<1x49x196xbf16> to vector<49x196xbf16>
    %11 = arith.extf %10 : vector<49x196xbf16> to vector<49x196xf32>
    %cst_10 = arith.constant dense<0.000000e+00> : vector<49x6xf32>
    %12 = tpu.matmul %11, %8, %cst_10 {dimension_numbers = #tpu.dot_dimension_numbers<[1], [0], [0], [1], [0, 0, 1, 1], [], []>} : vector<49x196xf32>, vector<196x6xf32>, vector<49x6xf32> -> vector<49x6xf32>
    %c1 = arith.constant 1 : index
    %c0_11 = arith.constant 0 : index
    %c0_12 = arith.constant 0 : index
    %13 = vector.load %arg4[%c1, %c0_11, %c0_12] : memref<4x49x196xbf16, #tpu.memory_space<vmem>>, vector<1x49x196xbf16>
    %14 = vector.shape_cast %13 : vector<1x49x196xbf16> to vector<49x196xbf16>
    %15 = arith.extf %14 : vector<49x196xbf16> to vector<49x196xf32>
    %cst_13 = arith.constant dense<0.000000e+00> : vector<49x6xf32>
    %16 = tpu.matmul %15, %8, %cst_13 {dimension_numbers = #tpu.dot_dimension_numbers<[1], [0], [0], [1], [0, 0, 1, 1], [], []>} : vector<49x196xf32>, vector<196x6xf32>, vector<49x6xf32> -> vector<49x6xf32>
    %17 = arith.maximumf %12, %16 : vector<49x6xf32>
    %c2 = arith.constant 2 : index
    %c0_14 = arith.constant 0 : index
    %c0_15 = arith.constant 0 : index
    %18 = vector.load %arg4[%c2, %c0_14, %c0_15] : memref<4x49x196xbf16, #tpu.memory_space<vmem>>, vector<1x49x196xbf16>
    %19 = vector.shape_cast %18 : vector<1x49x196xbf16> to vector<49x196xbf16>
    %20 = arith.extf %19 : vector<49x196xbf16> to vector<49x196xf32>
    %cst_16 = arith.constant dense<0.000000e+00> : vector<49x6xf32>
    %21 = tpu.matmul %20, %8, %cst_16 {dimension_numbers = #tpu.dot_dimension_numbers<[1], [0], [0], [1], [0, 0, 1, 1], [], []>} : vector<49x196xf32>, vector<196x6xf32>, vector<49x6xf32> -> vector<49x6xf32>
    %22 = arith.maximumf %17, %21 : vector<49x6xf32>
    %c3 = arith.constant 3 : index
    %c0_17 = arith.constant 0 : index
    %c0_18 = arith.constant 0 : index
    %23 = vector.load %arg4[%c3, %c0_17, %c0_18] : memref<4x49x196xbf16, #tpu.memory_space<vmem>>, vector<1x49x196xbf16>
    %24 = vector.shape_cast %23 : vector<1x49x196xbf16> to vector<49x196xbf16>
    %25 = arith.extf %24 : vector<49x196xbf16> to vector<49x196xf32>
    %cst_19 = arith.constant dense<0.000000e+00> : vector<49x6xf32>
    %26 = tpu.matmul %25, %8, %cst_19 {dimension_numbers = #tpu.dot_dimension_numbers<[1], [0], [0], [1], [0, 0, 1, 1], [], []>} : vector<49x196xf32>, vector<196x6xf32>, vector<49x6xf32> -> vector<49x6xf32>
    %27 = arith.maximumf %22, %26 : vector<49x6xf32>
    %c0_20 = arith.constant 0 : index
    %c0_21 = arith.constant 0 : index
    %28 = vector.load %arg6[%c0_20, %c0_21] : memref<6x108xf32, #tpu.memory_space<vmem>>, vector<6x108xf32>
    %cst_22 = arith.constant dense<0.000000e+00> : vector<49x108xf32>
    %29 = tpu.matmul %27, %28, %cst_22 {dimension_numbers = #tpu.dot_dimension_numbers<[1], [0], [0], [1], [0, 0, 1, 1], [], []>} : vector<49x6xf32>, vector<6x108xf32>, vector<49x108xf32> -> vector<49x108xf32>
    %30 = vector.extract_strided_slice %29 {offsets = [0, 0], sizes = [49, 12], strides = [1, 1]} : vector<49x108xf32> to vector<49x12xf32>
    %c0_23 = arith.constant 0 : index
    %c0_24 = arith.constant 0 : index
    %c0_25 = arith.constant 0 : index
    %31 = vector.load %arg5[%c0_23, %c0_24, %c0_25] : memref<9x25x49xbf16, #tpu.memory_space<vmem>>, vector<1x25x49xbf16>
    %32 = vector.shape_cast %31 : vector<1x25x49xbf16> to vector<25x49xbf16>
    %33 = arith.extf %32 : vector<25x49xbf16> to vector<25x49xf32>
    %cst_26 = arith.constant dense<0.000000e+00> : vector<25x12xf32>
    %34 = tpu.matmul %33, %30, %cst_26 {dimension_numbers = #tpu.dot_dimension_numbers<[1], [0], [0], [1], [0, 0, 1, 1], [], []>} : vector<25x49xf32>, vector<49x12xf32>, vector<25x12xf32> -> vector<25x12xf32>
    %35 = vector.extract_strided_slice %29 {offsets = [0, 12], sizes = [49, 12], strides = [1, 1]} : vector<49x108xf32> to vector<49x12xf32>
    %c1_27 = arith.constant 1 : index
    %c0_28 = arith.constant 0 : index
    %c0_29 = arith.constant 0 : index
    %36 = vector.load %arg5[%c1_27, %c0_28, %c0_29] : memref<9x25x49xbf16, #tpu.memory_space<vmem>>, vector<1x25x49xbf16>
    %37 = vector.shape_cast %36 : vector<1x25x49xbf16> to vector<25x49xbf16>
    %38 = arith.extf %37 : vector<25x49xbf16> to vector<25x49xf32>
    %cst_30 = arith.constant dense<0.000000e+00> : vector<25x12xf32>
    %39 = tpu.matmul %38, %35, %cst_30 {dimension_numbers = #tpu.dot_dimension_numbers<[1], [0], [0], [1], [0, 0, 1, 1], [], []>} : vector<25x49xf32>, vector<49x12xf32>, vector<25x12xf32> -> vector<25x12xf32>
    %40 = arith.addf %34, %39 : vector<25x12xf32>
    %41 = vector.extract_strided_slice %29 {offsets = [0, 24], sizes = [49, 12], strides = [1, 1]} : vector<49x108xf32> to vector<49x12xf32>
    %c2_31 = arith.constant 2 : index
    %c0_32 = arith.constant 0 : index
    %c0_33 = arith.constant 0 : index
    %42 = vector.load %arg5[%c2_31, %c0_32, %c0_33] : memref<9x25x49xbf16, #tpu.memory_space<vmem>>, vector<1x25x49xbf16>
    %43 = vector.shape_cast %42 : vector<1x25x49xbf16> to vector<25x49xbf16>
    %44 = arith.extf %43 : vector<25x49xbf16> to vector<25x49xf32>
    %cst_34 = arith.constant dense<0.000000e+00> : vector<25x12xf32>
    %45 = tpu.matmul %44, %41, %cst_34 {dimension_numbers = #tpu.dot_dimension_numbers<[1], [0], [0], [1], [0, 0, 1, 1], [], []>} : vector<25x49xf32>, vector<49x12xf32>, vector<25x12xf32> -> vector<25x12xf32>
    %46 = arith.addf %40, %45 : vector<25x12xf32>
    %47 = vector.extract_strided_slice %29 {offsets = [0, 36], sizes = [49, 12], strides = [1, 1]} : vector<49x108xf32> to vector<49x12xf32>
    %c3_35 = arith.constant 3 : index
    %c0_36 = arith.constant 0 : index
    %c0_37 = arith.constant 0 : index
    %48 = vector.load %arg5[%c3_35, %c0_36, %c0_37] : memref<9x25x49xbf16, #tpu.memory_space<vmem>>, vector<1x25x49xbf16>
    %49 = vector.shape_cast %48 : vector<1x25x49xbf16> to vector<25x49xbf16>
    %50 = arith.extf %49 : vector<25x49xbf16> to vector<25x49xf32>
    %cst_38 = arith.constant dense<0.000000e+00> : vector<25x12xf32>
    %51 = tpu.matmul %50, %47, %cst_38 {dimension_numbers = #tpu.dot_dimension_numbers<[1], [0], [0], [1], [0, 0, 1, 1], [], []>} : vector<25x49xf32>, vector<49x12xf32>, vector<25x12xf32> -> vector<25x12xf32>
    %52 = arith.addf %46, %51 : vector<25x12xf32>
    %53 = vector.extract_strided_slice %29 {offsets = [0, 48], sizes = [49, 12], strides = [1, 1]} : vector<49x108xf32> to vector<49x12xf32>
    %c4 = arith.constant 4 : index
    %c0_39 = arith.constant 0 : index
    %c0_40 = arith.constant 0 : index
    %54 = vector.load %arg5[%c4, %c0_39, %c0_40] : memref<9x25x49xbf16, #tpu.memory_space<vmem>>, vector<1x25x49xbf16>
    %55 = vector.shape_cast %54 : vector<1x25x49xbf16> to vector<25x49xbf16>
    %56 = arith.extf %55 : vector<25x49xbf16> to vector<25x49xf32>
    %cst_41 = arith.constant dense<0.000000e+00> : vector<25x12xf32>
    %57 = tpu.matmul %56, %53, %cst_41 {dimension_numbers = #tpu.dot_dimension_numbers<[1], [0], [0], [1], [0, 0, 1, 1], [], []>} : vector<25x49xf32>, vector<49x12xf32>, vector<25x12xf32> -> vector<25x12xf32>
    %58 = arith.addf %52, %57 : vector<25x12xf32>
    %59 = vector.extract_strided_slice %29 {offsets = [0, 60], sizes = [49, 12], strides = [1, 1]} : vector<49x108xf32> to vector<49x12xf32>
    %c5 = arith.constant 5 : index
    %c0_42 = arith.constant 0 : index
    %c0_43 = arith.constant 0 : index
    %60 = vector.load %arg5[%c5, %c0_42, %c0_43] : memref<9x25x49xbf16, #tpu.memory_space<vmem>>, vector<1x25x49xbf16>
    %61 = vector.shape_cast %60 : vector<1x25x49xbf16> to vector<25x49xbf16>
    %62 = arith.extf %61 : vector<25x49xbf16> to vector<25x49xf32>
    %cst_44 = arith.constant dense<0.000000e+00> : vector<25x12xf32>
    %63 = tpu.matmul %62, %59, %cst_44 {dimension_numbers = #tpu.dot_dimension_numbers<[1], [0], [0], [1], [0, 0, 1, 1], [], []>} : vector<25x49xf32>, vector<49x12xf32>, vector<25x12xf32> -> vector<25x12xf32>
    %64 = arith.addf %58, %63 : vector<25x12xf32>
    %65 = vector.extract_strided_slice %29 {offsets = [0, 72], sizes = [49, 12], strides = [1, 1]} : vector<49x108xf32> to vector<49x12xf32>
    %c6 = arith.constant 6 : index
    %c0_45 = arith.constant 0 : index
    %c0_46 = arith.constant 0 : index
    %66 = vector.load %arg5[%c6, %c0_45, %c0_46] : memref<9x25x49xbf16, #tpu.memory_space<vmem>>, vector<1x25x49xbf16>
    %67 = vector.shape_cast %66 : vector<1x25x49xbf16> to vector<25x49xbf16>
    %68 = arith.extf %67 : vector<25x49xbf16> to vector<25x49xf32>
    %cst_47 = arith.constant dense<0.000000e+00> : vector<25x12xf32>
    %69 = tpu.matmul %68, %65, %cst_47 {dimension_numbers = #tpu.dot_dimension_numbers<[1], [0], [0], [1], [0, 0, 1, 1], [], []>} : vector<25x49xf32>, vector<49x12xf32>, vector<25x12xf32> -> vector<25x12xf32>
    %70 = arith.addf %64, %69 : vector<25x12xf32>
    %71 = vector.extract_strided_slice %29 {offsets = [0, 84], sizes = [49, 12], strides = [1, 1]} : vector<49x108xf32> to vector<49x12xf32>
    %c7 = arith.constant 7 : index
    %c0_48 = arith.constant 0 : index
    %c0_49 = arith.constant 0 : index
    %72 = vector.load %arg5[%c7, %c0_48, %c0_49] : memref<9x25x49xbf16, #tpu.memory_space<vmem>>, vector<1x25x49xbf16>
    %73 = vector.shape_cast %72 : vector<1x25x49xbf16> to vector<25x49xbf16>
    %74 = arith.extf %73 : vector<25x49xbf16> to vector<25x49xf32>
    %cst_50 = arith.constant dense<0.000000e+00> : vector<25x12xf32>
    %75 = tpu.matmul %74, %71, %cst_50 {dimension_numbers = #tpu.dot_dimension_numbers<[1], [0], [0], [1], [0, 0, 1, 1], [], []>} : vector<25x49xf32>, vector<49x12xf32>, vector<25x12xf32> -> vector<25x12xf32>
    %76 = arith.addf %70, %75 : vector<25x12xf32>
    %77 = vector.extract_strided_slice %29 {offsets = [0, 96], sizes = [49, 12], strides = [1, 1]} : vector<49x108xf32> to vector<49x12xf32>
    %c8 = arith.constant 8 : index
    %c0_51 = arith.constant 0 : index
    %c0_52 = arith.constant 0 : index
    %78 = vector.load %arg5[%c8, %c0_51, %c0_52] : memref<9x25x49xbf16, #tpu.memory_space<vmem>>, vector<1x25x49xbf16>
    %79 = vector.shape_cast %78 : vector<1x25x49xbf16> to vector<25x49xbf16>
    %80 = arith.extf %79 : vector<25x49xbf16> to vector<25x49xf32>
    %cst_53 = arith.constant dense<0.000000e+00> : vector<25x12xf32>
    %81 = tpu.matmul %80, %77, %cst_53 {dimension_numbers = #tpu.dot_dimension_numbers<[1], [0], [0], [1], [0, 0, 1, 1], [], []>} : vector<25x49xf32>, vector<49x12xf32>, vector<25x12xf32> -> vector<25x12xf32>
    %82 = arith.addf %76, %81 : vector<25x12xf32>
    %c0_54 = arith.constant 0 : index
    %c0_55 = arith.constant 0 : index
    %83 = vector.load %arg7[%c0_54, %c0_55] : memref<1x12xf32, #tpu.memory_space<vmem>>, vector<1x12xf32>
    %84 = vector.broadcast %83 : vector<1x12xf32> to vector<25x12xf32>
    %85 = arith.addf %82, %84 : vector<25x12xf32>
    %cst_56 = arith.constant 0.000000e+00 : f32
    %86 = vector.broadcast %cst_56 : f32 to vector<25x12xf32>
    %87 = arith.maximumf %85, %86 : vector<25x12xf32>
    %c0_57 = arith.constant 0 : index
    %c0_58 = arith.constant 0 : index
    %c0_59 = arith.constant 0 : index
    %88 = vector.load %arg8[%c0_57, %c0_58, %c0_59] : memref<4x4x25xbf16, #tpu.memory_space<vmem>>, vector<1x4x25xbf16>
    %89 = vector.shape_cast %88 : vector<1x4x25xbf16> to vector<4x25xbf16>
    %90 = arith.extf %89 : vector<4x25xbf16> to vector<4x25xf32>
    %cst_60 = arith.constant dense<0.000000e+00> : vector<4x12xf32>
    %91 = tpu.matmul %90, %87, %cst_60 {dimension_numbers = #tpu.dot_dimension_numbers<[1], [0], [0], [1], [0, 0, 1, 1], [], []>} : vector<4x25xf32>, vector<25x12xf32>, vector<4x12xf32> -> vector<4x12xf32>
    %c1_61 = arith.constant 1 : index
    %c0_62 = arith.constant 0 : index
    %c0_63 = arith.constant 0 : index
    %92 = vector.load %arg8[%c1_61, %c0_62, %c0_63] : memref<4x4x25xbf16, #tpu.memory_space<vmem>>, vector<1x4x25xbf16>
    %93 = vector.shape_cast %92 : vector<1x4x25xbf16> to vector<4x25xbf16>
    %94 = arith.extf %93 : vector<4x25xbf16> to vector<4x25xf32>
    %cst_64 = arith.constant dense<0.000000e+00> : vector<4x12xf32>
    %95 = tpu.matmul %94, %87, %cst_64 {dimension_numbers = #tpu.dot_dimension_numbers<[1], [0], [0], [1], [0, 0, 1, 1], [], []>} : vector<4x25xf32>, vector<25x12xf32>, vector<4x12xf32> -> vector<4x12xf32>
    %96 = arith.maximumf %91, %95 : vector<4x12xf32>
    %c2_65 = arith.constant 2 : index
    %c0_66 = arith.constant 0 : index
    %c0_67 = arith.constant 0 : index
    %97 = vector.load %arg8[%c2_65, %c0_66, %c0_67] : memref<4x4x25xbf16, #tpu.memory_space<vmem>>, vector<1x4x25xbf16>
    %98 = vector.shape_cast %97 : vector<1x4x25xbf16> to vector<4x25xbf16>
    %99 = arith.extf %98 : vector<4x25xbf16> to vector<4x25xf32>
    %cst_68 = arith.constant dense<0.000000e+00> : vector<4x12xf32>
    %100 = tpu.matmul %99, %87, %cst_68 {dimension_numbers = #tpu.dot_dimension_numbers<[1], [0], [0], [1], [0, 0, 1, 1], [], []>} : vector<4x25xf32>, vector<25x12xf32>, vector<4x12xf32> -> vector<4x12xf32>
    %101 = arith.maximumf %96, %100 : vector<4x12xf32>
    %c3_69 = arith.constant 3 : index
    %c0_70 = arith.constant 0 : index
    %c0_71 = arith.constant 0 : index
    %102 = vector.load %arg8[%c3_69, %c0_70, %c0_71] : memref<4x4x25xbf16, #tpu.memory_space<vmem>>, vector<1x4x25xbf16>
    %103 = vector.shape_cast %102 : vector<1x4x25xbf16> to vector<4x25xbf16>
    %104 = arith.extf %103 : vector<4x25xbf16> to vector<4x25xf32>
    %cst_72 = arith.constant dense<0.000000e+00> : vector<4x12xf32>
    %105 = tpu.matmul %104, %87, %cst_72 {dimension_numbers = #tpu.dot_dimension_numbers<[1], [0], [0], [1], [0, 0, 1, 1], [], []>} : vector<4x25xf32>, vector<25x12xf32>, vector<4x12xf32> -> vector<4x12xf32>
    %106 = arith.maximumf %101, %105 : vector<4x12xf32>
    %c0_73 = arith.constant 0 : index
    %c0_74 = arith.constant 0 : index
    %107 = vector.load %arg10[%c0_73, %c0_74] : memref<1x128xf32, #tpu.memory_space<vmem>>, vector<1x128xf32>
    %108 = vector.extract_strided_slice %106 {offsets = [0, 0], sizes = [1, 12], strides = [1, 1]} : vector<4x12xf32> to vector<1x12xf32>
    %c0_75 = arith.constant 0 : index
    %c0_76 = arith.constant 0 : index
    %c0_77 = arith.constant 0 : index
    %109 = vector.load %arg9[%c0_75, %c0_76, %c0_77] : memref<4x12x128xf32, #tpu.memory_space<vmem>>, vector<1x12x128xf32>
    %110 = vector.shape_cast %109 : vector<1x12x128xf32> to vector<12x128xf32>
    %cst_78 = arith.constant dense<0.000000e+00> : vector<1x128xf32>
    %111 = tpu.matmul %108, %110, %cst_78 {dimension_numbers = #tpu.dot_dimension_numbers<[1], [0], [0], [1], [0, 0, 1, 1], [], []>} : vector<1x12xf32>, vector<12x128xf32>, vector<1x128xf32> -> vector<1x128xf32>
    %112 = arith.addf %107, %111 : vector<1x128xf32>
    %113 = vector.extract_strided_slice %106 {offsets = [1, 0], sizes = [1, 12], strides = [1, 1]} : vector<4x12xf32> to vector<1x12xf32>
    %c1_79 = arith.constant 1 : index
    %c0_80 = arith.constant 0 : index
    %c0_81 = arith.constant 0 : index
    %114 = vector.load %arg9[%c1_79, %c0_80, %c0_81] : memref<4x12x128xf32, #tpu.memory_space<vmem>>, vector<1x12x128xf32>
    %115 = vector.shape_cast %114 : vector<1x12x128xf32> to vector<12x128xf32>
    %cst_82 = arith.constant dense<0.000000e+00> : vector<1x128xf32>
    %116 = tpu.matmul %113, %115, %cst_82 {dimension_numbers = #tpu.dot_dimension_numbers<[1], [0], [0], [1], [0, 0, 1, 1], [], []>} : vector<1x12xf32>, vector<12x128xf32>, vector<1x128xf32> -> vector<1x128xf32>
    %117 = arith.addf %112, %116 : vector<1x128xf32>
    %118 = vector.extract_strided_slice %106 {offsets = [2, 0], sizes = [1, 12], strides = [1, 1]} : vector<4x12xf32> to vector<1x12xf32>
    %c2_83 = arith.constant 2 : index
    %c0_84 = arith.constant 0 : index
    %c0_85 = arith.constant 0 : index
    %119 = vector.load %arg9[%c2_83, %c0_84, %c0_85] : memref<4x12x128xf32, #tpu.memory_space<vmem>>, vector<1x12x128xf32>
    %120 = vector.shape_cast %119 : vector<1x12x128xf32> to vector<12x128xf32>
    %cst_86 = arith.constant dense<0.000000e+00> : vector<1x128xf32>
    %121 = tpu.matmul %118, %120, %cst_86 {dimension_numbers = #tpu.dot_dimension_numbers<[1], [0], [0], [1], [0, 0, 1, 1], [], []>} : vector<1x12xf32>, vector<12x128xf32>, vector<1x128xf32> -> vector<1x128xf32>
    %122 = arith.addf %117, %121 : vector<1x128xf32>
    %123 = vector.extract_strided_slice %106 {offsets = [3, 0], sizes = [1, 12], strides = [1, 1]} : vector<4x12xf32> to vector<1x12xf32>
    %c3_87 = arith.constant 3 : index
    %c0_88 = arith.constant 0 : index
    %c0_89 = arith.constant 0 : index
    %124 = vector.load %arg9[%c3_87, %c0_88, %c0_89] : memref<4x12x128xf32, #tpu.memory_space<vmem>>, vector<1x12x128xf32>
    %125 = vector.shape_cast %124 : vector<1x12x128xf32> to vector<12x128xf32>
    %cst_90 = arith.constant dense<0.000000e+00> : vector<1x128xf32>
    %126 = tpu.matmul %123, %125, %cst_90 {dimension_numbers = #tpu.dot_dimension_numbers<[1], [0], [0], [1], [0, 0, 1, 1], [], []>} : vector<1x12xf32>, vector<12x128xf32>, vector<1x128xf32> -> vector<1x128xf32>
    %127 = arith.addf %122, %126 : vector<1x128xf32>
    %c0_91 = arith.constant 0 : index
    %c0_92 = arith.constant 0 : index
    %c0_93 = arith.constant 0 : index
    %128 = vector.load %arg11[%c0_91, %c0_92, %c0_93] : memref<1x1x128xf32, #tpu.memory_space<vmem>>, vector<1x1x128xf32>
    %129 = vector.shape_cast %128 : vector<1x1x128xf32> to vector<1x128xf32>
    %130 = vector.shape_cast %127 : vector<1x128xf32> to vector<1x1x128xf32>
    tpu.vector_store %arg11[%c0_91, %c0_92, %c0_93], %130 {strides = array<i32>} : memref<1x1x128xf32, #tpu.memory_space<vmem>>, vector<1x1x128xf32>,
    return
  }
  func.func @transform_0(%arg0: i32) -> (i32, i32, i32) {
    %c0_i32 = arith.constant 0 : i32
    %c0_i32_0 = arith.constant 0 : i32
    %c0_i32_1 = arith.constant 0 : i32
    return %arg0, %c0_i32, %c0_i32_0 : i32, i32, i32
  }
  func.func @transform_1(%arg0: i32) -> (i32, i32) {
    %c0_i32 = arith.constant 0 : i32
    %c0_i32_0 = arith.constant 0 : i32
    %c0_i32_1 = arith.constant 0 : i32
    return %c0_i32, %c0_i32_0 : i32, i32
  }
  func.func @transform_2(%arg0: i32) -> (i32, i32) {
    %c0_i32 = arith.constant 0 : i32
    %c0_i32_0 = arith.constant 0 : i32
    %c0_i32_1 = arith.constant 0 : i32
    return %c0_i32, %c0_i32_0 : i32, i32
  }
  func.func @transform_3(%arg0: i32) -> (i32, i32, i32) {
    %c0_i32 = arith.constant 0 : i32
    %c0_i32_0 = arith.constant 0 : i32
    %c0_i32_1 = arith.constant 0 : i32
    %c0_i32_2 = arith.constant 0 : i32
    return %c0_i32, %c0_i32_0, %c0_i32_1 : i32, i32, i32
  }
  func.func @transform_4(%arg0: i32) -> (i32, i32, i32) {
    %c0_i32 = arith.constant 0 : i32
    %c0_i32_0 = arith.constant 0 : i32
    %c0_i32_1 = arith.constant 0 : i32
    %c0_i32_2 = arith.constant 0 : i32
    return %c0_i32, %c0_i32_0, %c0_i32_1 : i32, i32, i32
  }
  func.func @transform_5(%arg0: i32) -> (i32, i32) {
    %c0_i32 = arith.constant 0 : i32
    %c0_i32_0 = arith.constant 0 : i32
    %c0_i32_1 = arith.constant 0 : i32
    return %c0_i32, %c0_i32_0 : i32, i32
  }
  func.func @transform_6(%arg0: i32) -> (i32, i32) {
    %c0_i32 = arith.constant 0 : i32
    %c0_i32_0 = arith.constant 0 : i32
    %c0_i32_1 = arith.constant 0 : i32
    return %c0_i32, %c0_i32_0 : i32, i32
  }
  func.func @transform_7(%arg0: i32) -> (i32, i32, i32) {
    %c0_i32 = arith.constant 0 : i32
    %c0_i32_0 = arith.constant 0 : i32
    %c0_i32_1 = arith.constant 0 : i32
    %c0_i32_2 = arith.constant 0 : i32
    return %c0_i32, %c0_i32_0, %c0_i32_1 : i32, i32, i32
  }
  func.func @transform_8(%arg0: i32) -> (i32, i32, i32) {
    %c0_i32 = arith.constant 0 : i32
    %c0_i32_0 = arith.constant 0 : i32
    %c0_i32_1 = arith.constant 0 : i32
    %c0_i32_2 = arith.constant 0 : i32
    return %c0_i32, %c0_i32_0, %c0_i32_1 : i32, i32, i32
  }
  func.func @transform_9(%arg0: i32) -> (i32, i32) {
    %c0_i32 = arith.constant 0 : i32
    %c0_i32_0 = arith.constant 0 : i32
    %c0_i32_1 = arith.constant 0 : i32
    return %c0_i32, %c0_i32_0 : i32, i32
  }
  func.func @transform_10(%arg0: i32) -> (i32, i32, i32) {
    %c0_i32 = arith.constant 0 : i32
    %c0_i32_0 = arith.constant 0 : i32
    %c0_i32_1 = arith.constant 0 : i32
    return %arg0, %c0_i32, %c0_i32_0 : i32, i32, i32
  }
}

</mosaic_0001>

<llo_original>
// kernel: forward.1
$region0: #{forward.1}
  #allocation0 [shape = 'u32[]', space=smem, size = 0x4, offset = 0x4, fixed_abs, tag = 'smem constant byte address 0x4 - core index']
  #allocation1 [shape = 'u32[144,128]{1,0:T(1,128)}', space=vmem, size = 0x12000, scoped, tag = 'internal scratch']
  %s0 = inlined_call_operand.vmem [shape: f32[2,196,9], index: 0, kind: input, shape index: {}]
  %s1 = inlined_call_operand.vmem [shape: f32[9,6], index: 1, kind: input, shape index: {}]
  %s2 = inlined_call_operand.vmem [shape: f32[1,6], index: 2, kind: input, shape index: {}]
  %s3 = inlined_call_operand.vmem [shape: bf16[4,49,196], index: 3, kind: input, shape index: {}]
  %s4 = inlined_call_operand.vmem [shape: bf16[9,25,49], index: 4, kind: input, shape index: {}]
  %s5 = inlined_call_operand.vmem [shape: f32[6,108], index: 5, kind: input, shape index: {}]
  %s6 = inlined_call_operand.vmem [shape: f32[1,12], index: 6, kind: input, shape index: {}]
  %s7 = inlined_call_operand.vmem [shape: bf16[4,4,25], index: 7, kind: input, shape index: {}]
  %s8 = inlined_call_operand.vmem [shape: f32[4,12,128], index: 8, kind: input, shape index: {}]
  %s9 = inlined_call_operand.vmem [shape: f32[1,128], index: 9, kind: input, shape index: {}]
  %s10 = inlined_call_operand.vmem [shape: f32[2,1,128], index: 10, kind: output, shape index: {}]
  %s11 = sld [smem:[#allocation0]]
  $region73: #{forward.1} parent=0
    _
  %s13 = ssub.s32 1, %s11
  %s14 = scalar_select 0, %s13, %s11
  loop: start=0, step=1, limit=4
  $region2: #{forward.1} parent=0 // loop_pre_header
    _
  $region3: #{forward.1} parent=0 // loop_header
    %s16 = sphi 0, %s20
    %p17 = scmp.ge.s32.totalorder %s16, 4
    %s26 = sphi 0, %s28
    %s29 = sphi 0, %s26
    %s30 = sphi 0, %s29
    %s46 = sphi 0, %s30
    %s50 = sphi 0, %s50
    %s52 = sphi 0, %s50
    %s53 = sphi 0, %s52
    %s67 = sphi 0, %s53
    %s71 = sphi 0, %s71
    %s73 = sphi 0, %s71
    %s74 = sphi 0, %s73
    %s88 = sphi 0, %s74
    %s92 = sphi 0, %s92
    %s94 = sphi 0, %s92
    %s95 = sphi 0, %s94
    %s109 = sphi 0, %s95
    %s113 = sphi 0, %s113
    %s115 = sphi 0, %s113
    %s116 = sphi 0, %s115
    %s130 = sphi 0, %s116
    %s134 = sphi 0, %s134
    %s136 = sphi 0, %s134
    %s137 = sphi 0, %s136
    %s151 = sphi 0, %s137
    %s155 = sphi 0, %s155
    %s157 = sphi 0, %s155
    %s158 = sphi 0, %s157
    %s172 = sphi 0, %s158
    %s176 = sphi 0, %s176
    %s178 = sphi 0, %s176
    %s179 = sphi 0, %s178
    %s193 = sphi 0, %s179
    %s197 = sphi 0, %s197
    %s199 = sphi 0, %s197
    %s200 = sphi 0, %s199
    %s214 = sphi 0, %s200
    %s218 = sphi 0, %s218
    %s220 = sphi 0, %s218
    %s221 = sphi 0, %s220
    %s235 = sphi 0, %s221
    %s241 = sphi 0, %s243
    %s244 = sphi 0, %s241
    %s245 = sphi 0, %s244
    %s261 = sphi 0, %s245
  $region4: #{forward.1} parent=0 // loop_header_branch
    %19 = sbr.rel (%p17) target = $region8
  $region5: #{forward.1} parent=0 // loop_body
    %s21 = ssub.s32 %s16, 1
    %s22 = ssub.s32 %s16, 2
    %s23 = sadd.s32 %s16, 1
    %s24 = ssub.s32 %s16, %s23
    %p25 = scmp.eq.s32.totalorder %s24, 0
    %s27 = sadd.s32 %s26, 1
    %s28 = scalar_select %p25, %s26, %s27
    %p31 = pneg %p25
    %p32 = scmp.eq.s32.totalorder %s16, 1
    %p33 = por %p31, %p32
    %p34 = scmp.ne.s32.totalorder %s26, %s29
    %p35 = scmp.eq.s32.totalorder %s16, 0
    %p36 = por %p34, %p35
    %p37 = scmp.ne.s32.totalorder %s26, %s29
    %p38 = scmp.eq.s32.totalorder %s21, 1
    %p39 = por %p37, %p38
    %p40 = scmp.ne.s32.totalorder %s29, %s30
    %p41 = scmp.eq.s32.totalorder %s21, 0
    %p42 = por %p40, %p41
    %p43 = scmp.ne.s32.totalorder %s29, %s30
    %p44 = scmp.eq.s32.totalorder %s22, 1
    %p45 = por %p43, %p44
    %p47 = scmp.ne.s32.totalorder %s30, %s46
    %p48 = scmp.eq.s32.totalorder %s22, 0
    %p49 = por %p47, %p48
    %s51 = sadd.s32 %s50, 1
    %p54 = scmp.eq.s32.totalorder %s16, 1
    %p55 = scmp.ne.s32.totalorder %s50, %s52
    %p56 = scmp.eq.s32.totalorder %s16, 0
    %p57 = por %p55, %p56
    %p58 = scmp.ne.s32.totalorder %s50, %s52
    %p59 = scmp.eq.s32.totalorder %s21, 1
    %p60 = por %p58, %p59
    %p61 = scmp.ne.s32.totalorder %s52, %s53
    %p62 = scmp.eq.s32.totalorder %s21, 0
    %p63 = por %p61, %p62
    %p64 = scmp.ne.s32.totalorder %s52, %s53
    %p65 = scmp.eq.s32.totalorder %s22, 1
    %p66 = por %p64, %p65
    %p68 = scmp.ne.s32.totalorder %s53, %s67
    %p69 = scmp.eq.s32.totalorder %s22, 0
    %p70 = por %p68, %p69
    %s72 = sadd.s32 %s71, 1
    %p75 = scmp.eq.s32.totalorder %s16, 1
    %p76 = scmp.ne.s32.totalorder %s71, %s73
    %p77 = scmp.eq.s32.totalorder %s16, 0
    %p78 = por %p76, %p77
    %p79 = scmp.ne.s32.totalorder %s71, %s73
    %p80 = scmp.eq.s32.totalorder %s21, 1
    %p81 = por %p79, %p80
    %p82 = scmp.ne.s32.totalorder %s73, %s74
    %p83 = scmp.eq.s32.totalorder %s21, 0
    %p84 = por %p82, %p83
    %p85 = scmp.ne.s32.totalorder %s73, %s74
    %p86 = scmp.eq.s32.totalorder %s22, 1
    %p87 = por %p85, %p86
    %p89 = scmp.ne.s32.totalorder %s74, %s88
    %p90 = scmp.eq.s32.totalorder %s22, 0
    %p91 = por %p89, %p90
    %s93 = sadd.s32 %s92, 1
    %p96 = scmp.eq.s32.totalorder %s16, 1
    %p97 = scmp.ne.s32.totalorder %s92, %s94
    %p98 = scmp.eq.s32.totalorder %s16, 0
    %p99 = por %p97, %p98
    %p100 = scmp.ne.s32.totalorder %s92, %s94
    %p101 = scmp.eq.s32.totalorder %s21, 1
    %p102 = por %p100, %p101
    %p103 = scmp.ne.s32.totalorder %s94, %s95
    %p104 = scmp.eq.s32.totalorder %s21, 0
    %p105 = por %p103, %p104
    %p106 = scmp.ne.s32.totalorder %s94, %s95
    %p107 = scmp.eq.s32.totalorder %s22, 1
    %p108 = por %p106, %p107
    %p110 = scmp.ne.s32.totalorder %s95, %s109
    %p111 = scmp.eq.s32.totalorder %s22, 0
    %p112 = por %p110, %p111
    %s114 = sadd.s32 %s113, 1
    %p117 = scmp.eq.s32.totalorder %s16, 1
    %p118 = scmp.ne.s32.totalorder %s113, %s115
    %p119 = scmp.eq.s32.totalorder %s16, 0
    %p120 = por %p118, %p119
    %p121 = scmp.ne.s32.totalorder %s113, %s115
    %p122 = scmp.eq.s32.totalorder %s21, 1
    %p123 = por %p121, %p122
    %p124 = scmp.ne.s32.totalorder %s115, %s116
    %p125 = scmp.eq.s32.totalorder %s21, 0
    %p126 = por %p124, %p125
    %p127 = scmp.ne.s32.totalorder %s115, %s116
    %p128 = scmp.eq.s32.totalorder %s22, 1
    %p129 = por %p127, %p128
    %p131 = scmp.ne.s32.totalorder %s116, %s130
    %p132 = scmp.eq.s32.totalorder %s22, 0
    %p133 = por %p131, %p132
    %s135 = sadd.s32 %s134, 1
    %p138 = scmp.eq.s32.totalorder %s16, 1
    %p139 = scmp.ne.s32.totalorder %s134, %s136
    %p140 = scmp.eq.s32.totalorder %s16, 0
    %p141 = por %p139, %p140
    %p142 = scmp.ne.s32.totalorder %s134, %s136
    %p143 = scmp.eq.s32.totalorder %s21, 1
    %p144 = por %p142, %p143
    %p145 = scmp.ne.s32.totalorder %s136, %s137
    %p146 = scmp.eq.s32.totalorder %s21, 0
    %p147 = por %p145, %p146
    %p148 = scmp.ne.s32.totalorder %s136, %s137
    %p149 = scmp.eq.s32.totalorder %s22, 1
    %p150 = por %p148, %p149
    %p152 = scmp.ne.s32.totalorder %s137, %s151
    %p153 = scmp.eq.s32.totalorder %s22, 0
    %p154 = por %p152, %p153
    %s156 = sadd.s32 %s155, 1
    %p159 = scmp.eq.s32.totalorder %s16, 1
    %p160 = scmp.ne.s32.totalorder %s155, %s157
    %p161 = scmp.eq.s32.totalorder %s16, 0
    %p162 = por %p160, %p161
    %p163 = scmp.ne.s32.totalorder %s155, %s157
    %p164 = scmp.eq.s32.totalorder %s21, 1
    %p165 = por %p163, %p164
    %p166 = scmp.ne.s32.totalorder %s157, %s158
    %p167 = scmp.eq.s32.totalorder %s21, 0
    %p168 = por %p166, %p167
    %p169 = scmp.ne.s32.totalorder %s157, %s158
    %p170 = scmp.eq.s32.totalorder %s22, 1
    %p171 = por %p169, %p170
    %p173 = scmp.ne.s32.totalorder %s158, %s172
    %p174 = scmp.eq.s32.totalorder %s22, 0
    %p175 = por %p173, %p174
    %s177 = sadd.s32 %s176, 1
    %p180 = scmp.eq.s32.totalorder %s16, 1
    %p181 = scmp.ne.s32.totalorder %s176, %s178
    %p182 = scmp.eq.s32.totalorder %s16, 0
    %p183 = por %p181, %p182
    %p184 = scmp.ne.s32.totalorder %s176, %s178
    %p185 = scmp.eq.s32.totalorder %s21, 1
    %p186 = por %p184, %p185
    %p187 = scmp.ne.s32.totalorder %s178, %s179
    %p188 = scmp.eq.s32.totalorder %s21, 0
    %p189 = por %p187, %p188
    %p190 = scmp.ne.s32.totalorder %s178, %s179
    %p191 = scmp.eq.s32.totalorder %s22, 1
    %p192 = por %p190, %p191
    %p194 = scmp.ne.s32.totalorder %s179, %s193
    %p195 = scmp.eq.s32.totalorder %s22, 0
    %p196 = por %p194, %p195
    %s198 = sadd.s32 %s197, 1
    %p201 = scmp.eq.s32.totalorder %s16, 1
    %p202 = scmp.ne.s32.totalorder %s197, %s199
    %p203 = scmp.eq.s32.totalorder %s16, 0
    %p204 = por %p202, %p203
    %p205 = scmp.ne.s32.totalorder %s197, %s199
    %p206 = scmp.eq.s32.totalorder %s21, 1
    %p207 = por %p205, %p206
    %p208 = scmp.ne.s32.totalorder %s199, %s200
    %p209 = scmp.eq.s32.totalorder %s21, 0
    %p210 = por %p208, %p209
    %p211 = scmp.ne.s32.totalorder %s199, %s200
    %p212 = scmp.eq.s32.totalorder %s22, 1
    %p213 = por %p211, %p212
    %p215 = scmp.ne.s32.totalorder %s200, %s214
    %p216 = scmp.eq.s32.totalorder %s22, 0
    %p217 = por %p215, %p216
    %s219 = sadd.s32 %s218, 1
    %p222 = scmp.eq.s32.totalorder %s16, 1
    %p223 = scmp.ne.s32.totalorder %s218, %s220
    %p224 = scmp.eq.s32.totalorder %s16, 0
    %p225 = por %p223, %p224
    %p226 = scmp.ne.s32.totalorder %s218, %s220
    %p227 = scmp.eq.s32.totalorder %s21, 1
    %p228 = por %p226, %p227
    %p229 = scmp.ne.s32.totalorder %s220, %s221
    %p230 = scmp.eq.s32.totalorder %s21, 0
    %p231 = por %p229, %p230
    %p232 = scmp.ne.s32.totalorder %s220, %s221
    %p233 = scmp.eq.s32.totalorder %s22, 1
    %p234 = por %p232, %p233
    %p236 = scmp.ne.s32.totalorder %s221, %s235
    %p237 = scmp.eq.s32.totalorder %s22, 0
    %p238 = por %p236, %p237
    %s239 = ssub.s32 %s16, %s23
    %p240 = scmp.eq.s32.totalorder %s239, 0
    %s242 = sadd.s32 %s241, 1
    %s243 = scalar_select %p240, %s241, %s242
    %p246 = pneg %p240
    %p247 = scmp.eq.s32.totalorder %s16, 1
    %p248 = por %p246, %p247
    %p249 = scmp.ne.s32.totalorder %s241, %s244
    %p250 = scmp.eq.s32.totalorder %s16, 0
    %p251 = por %p249, %p250
    %p252 = scmp.ne.s32.totalorder %s241, %s244
    %p253 = scmp.eq.s32.totalorder %s21, 1
    %p254 = por %p252, %p253
    %p255 = scmp.ne.s32.totalorder %s244, %s245
    %p256 = scmp.eq.s32.totalorder %s21, 0
    %p257 = por %p255, %p256
    %p258 = scmp.ne.s32.totalorder %s244, %s245
    %p259 = scmp.eq.s32.totalorder %s22, 1
    %p260 = por %p258, %p259
    %p262 = scmp.ne.s32.totalorder %s245, %s261
    %p263 = scmp.eq.s32.totalorder %s22, 0
    %p264 = por %p262, %p263
    %p265 = scmp.le.s32.totalorder 1, %s16
    %p266 = scmp.lt.s32.totalorder %s16, 3
    %p267 = pnand %p265, %p266
    %p268 = pneg %p267
    // Predicated region
    $region9: #{forward.1} parent=5 // pred_check
      _
    $region10: #{forward.1} parent=5 // pred_check_branch
      %270 = sbr.rel (%p267) target = $region12
    $region11: #{forward.1} parent=5 // pred_region
      %s271 = ssub.s32 %s16, 1
      // Predicated region
      $region13: #{forward.1} parent=11 // pred_check
        %p272 = pneg %p63
      $region14: #{forward.1} parent=11 // pred_check_branch
        %274 = sbr.rel (%p272) target = $region16
      $region15: #{forward.1} parent=11 // pred_region
        _
      $region16: #{forward.1} parent=11 // pred_fallthru
        _
      // Predicated region
      $region17: #{forward.1} parent=11 // pred_check
        %p275 = pneg %p84
      $region18: #{forward.1} parent=11 // pred_check_branch
        %277 = sbr.rel (%p275) target = $region20
      $region19: #{forward.1} parent=11 // pred_region
        _
      $region20: #{forward.1} parent=11 // pred_fallthru
        _
      // Predicated region
      $region21: #{forward.1} parent=11 // pred_check
        %p278 = pneg %p105
      $region22: #{forward.1} parent=11 // pred_check_branch
        %280 = sbr.rel (%p278) target = $region24
      $region23: #{forward.1} parent=11 // pred_region
        _
      $region24: #{forward.1} parent=11 // pred_fallthru
        _
      // Predicated region
      $region25: #{forward.1} parent=11 // pred_check
        %p281 = pneg %p126
      $region26: #{forward.1} parent=11 // pred_check_branch
        %283 = sbr.rel (%p281) target = $region28
      $region27: #{forward.1} parent=11 // pred_region
        _
      $region28: #{forward.1} parent=11 // pred_fallthru
        _
      // Predicated region
      $region29: #{forward.1} parent=11 // pred_check
        %p284 = pneg %p147
      $region30: #{forward.1} parent=11 // pred_check_branch
        %286 = sbr.rel (%p284) target = $region32
      $region31: #{forward.1} parent=11 // pred_region
        _
      $region32: #{forward.1} parent=11 // pred_fallthru
        _
      // Predicated region
      $region33: #{forward.1} parent=11 // pred_check
        %p287 = pneg %p168
      $region34: #{forward.1} parent=11 // pred_check_branch
        %289 = sbr.rel (%p287) target = $region36
      $region35: #{forward.1} parent=11 // pred_region
        _
      $region36: #{forward.1} parent=11 // pred_fallthru
        _
      // Predicated region
      $region37: #{forward.1} parent=11 // pred_check
        %p290 = pneg %p189
      $region38: #{forward.1} parent=11 // pred_check_branch
        %292 = sbr.rel (%p290) target = $region40
      $region39: #{forward.1} parent=11 // pred_region
        _
      $region40: #{forward.1} parent=11 // pred_fallthru
        _
      // Predicated region
      $region41: #{forward.1} parent=11 // pred_check
        %p293 = pneg %p210
      $region42: #{forward.1} parent=11 // pred_check_branch
        %295 = sbr.rel (%p293) target = $region44
      $region43: #{forward.1} parent=11 // pred_region
        _
      $region44: #{forward.1} parent=11 // pred_fallthru
        _
      // Predicated region
      $region45: #{forward.1} parent=11 // pred_check
        %p296 = pneg %p231
      $region46: #{forward.1} parent=11 // pred_check_branch
        %298 = sbr.rel (%p296) target = $region48
      $region47: #{forward.1} parent=11 // pred_region
        _
      $region48: #{forward.1} parent=11 // pred_fallthru
        _
    $region12: #{forward.1} parent=5 // pred_fallthru
      _
    %p299 = scmp.lt.s32.totalorder %s16, 2
    // Predicated region
    $region49: #{forward.1} parent=5 // pred_check
      %p300 = pneg %p299
    $region50: #{forward.1} parent=5 // pred_check_branch
      %302 = sbr.rel (%p300) target = $region52
    $region51: #{forward.1} parent=5 // pred_region
      // Predicated region
      $region53: #{forward.1} parent=51 // pred_check
        %p303 = pneg %p36
      $region54: #{forward.1} parent=51 // pred_check_branch
        %305 = sbr.rel (%p303) target = $region56
      $region55: #{forward.1} parent=51 // pred_region
        %p306 = scmp.lt.s32.totalorder %s16, 1
        %s307 = scalar_select %p306, %s16, 1
        %s308 = smul.addr %s307, 25
        %s309 = smul.addr %s308, 8
        %s310 = scalar_lea.vmem %s0, %s309
      $region56: #{forward.1} parent=51 // pred_fallthru
        _
    $region52: #{forward.1} parent=5 // pred_fallthru
      _
    %p311 = scmp.le.s32.totalorder 1, %s16
    %p312 = scmp.lt.s32.totalorder %s16, 3
    %p313 = pnand %p311, %p312
    %p314 = pneg %p313
    // Predicated region
    $region57: #{forward.1} parent=5 // pred_check
      _
    $region58: #{forward.1} parent=5 // pred_check_branch
      %316 = sbr.rel (%p313) target = $region60
    $region59: #{forward.1} parent=5 // pred_region
      %s317 = ssub.s32 %s16, 1
      %p318 = scmp.lt.s32.totalorder %s21, 1
      %s319 = scalar_select %p318, %s21, 1
      %s320 = smul.addr %s319, 25
      %s321 = smul.addr %s320, 8
      %s322 = scalar_lea.vmem %s0, %s321
      %p323 = pneg %p42
      %p324 = pneg %p39
      %p325 = pneg %p63
      %p326 = pneg %p60
      %p327 = pneg %p84
      %p328 = pneg %p81
      %p329 = pneg %p105
      %p330 = pneg %p102
      %p331 = pneg %p126
      %p332 = pneg %p123
      %p333 = pneg %p147
      %p334 = pneg %p144
      %p335 = pneg %p168
      %p336 = pneg %p165
      %p337 = pneg %p189
      %p338 = pneg %p186
      %p339 = pneg %p210
      %p340 = pneg %p207
      %p341 = pneg %p231
      %p342 = pneg %p228
      %p343 = pneg %p257
      %p344 = pneg %p254
      %p345 = scmp.lt.s32.totalorder %s21, 1
      %s346 = scalar_select %p345, %s21, 1
      %s347 = scalar_lea.vmem %s10, %s346
      %p348 = scmp.lt.s32.totalorder %s21, 1
      %s349 = scalar_select %p348, %s21, 1
      %s350 = smul.addr %s349, 25
      %s351 = smul.addr %s350, 8
      %s352 = scalar_lea.vmem %s0, %s351
      %p353 = scmp.lt.s32.totalorder %s21, 1
      %s354 = scalar_select %p353, %s21, 1
      %s355 = scalar_lea.vmem %s10, %s354
      %v356 = vld [vmem:[%s352] sm:$0xff]
      %v357 = vld [vmem:[%s352 + $0x8] sm:$0xff]
      %v358 = vld [vmem:[%s352 + $0x10] sm:$0xff]
      %v359 = vld [vmem:[%s352 + $0x18] sm:$0xff]
      %v360 = vld [vmem:[%s352 + $0x20] sm:$0xff]
      %v361 = vld [vmem:[%s352 + $0x28] sm:$0xff]
      %v362 = vld [vmem:[%s352 + $0x30] sm:$0xff]
      %v363 = vld [vmem:[%s352 + $0x38] sm:$0xff]
      %v364 = vld [vmem:[%s352 + $0x40] sm:$0xff]
      %v365 = vld [vmem:[%s352 + $0x48] sm:$0xff]
      %v366 = vld [vmem:[%s352 + $0x50] sm:$0xff]
      %v367 = vld [vmem:[%s352 + $0x58] sm:$0xff]
      %v368 = vld [vmem:[%s352 + $0x60] sm:$0xff]
      %v369 = vld [vmem:[%s352 + $0x68] sm:$0xff]
      %v370 = vld [vmem:[%s352 + $0x70] sm:$0xff]
      %v371 = vld [vmem:[%s352 + $0x78] sm:$0xff]
      %v372 = vld [vmem:[%s352 + $0x80] sm:$0xff]
      %v373 = vld [vmem:[%s352 + $0x88] sm:$0xff]
      %v374 = vld [vmem:[%s352 + $0x90] sm:$0xff]
      %v375 = vld [vmem:[%s352 + $0x98] sm:$0xff]
      %v376 = vld [vmem:[%s352 + $0xa0] sm:$0xff]
      %v377 = vld [vmem:[%s352 + $0xa8] sm:$0xff]
      %v378 = vld [vmem:[%s352 + $0xb0] sm:$0xff]
      %v379 = vld [vmem:[%s352 + $0xb8] sm:$0xff]
      %v380 = vld [vmem:[%s352 + $0xc0] sm:$0xf]
      %v381 = vld [vmem:[%s1] sm:$0xff]
      %v382 = vld [vmem:[%s1 + $0x8] sm:$0x1]
      %v383 = vld [vmem:[%s2] sm:$0x1]
      %v385 = vlaneseq
      %v386 = vshrl.u32 %v385, 7
      %v387 = vsub.s32 0, %v386
      %v388 = vrot.slane %v383, %v387
      %vm390 = vcmask 72704
      %v392 = vsel %vm390, %v356, 0
      %v395 = vsel %vm390, %v357, 0
      %v398 = vsel %vm390, %v358, 0
      %v401 = vsel %vm390, %v359, 0
      %v404 = vsel %vm390, %v360, 0
      %v407 = vsel %vm390, %v361, 0
      %v410 = vsel %vm390, %v362, 0
      %v413 = vsel %vm390, %v363, 0
      %v416 = vsel %vm390, %v364, 0
      %v419 = vsel %vm390, %v365, 0
      %v422 = vsel %vm390, %v366, 0
      %v425 = vsel %vm390, %v367, 0
      %v428 = vsel %vm390, %v368, 0
      %v431 = vsel %vm390, %v369, 0
      %v434 = vsel %vm390, %v370, 0
      %v437 = vsel %vm390, %v371, 0
      %v440 = vsel %vm390, %v372, 0
      %v443 = vsel %vm390, %v373, 0
      %v446 = vsel %vm390, %v374, 0
      %v449 = vsel %vm390, %v375, 0
      %v452 = vsel %vm390, %v376, 0
      %v455 = vsel %vm390, %v377, 0
      %v458 = vsel %vm390, %v378, 0
      %v461 = vsel %vm390, %v379, 0
      %v464 = vsel %vm390, %v380, 0
      %vm466 = vcmask 1040384
      %v468 = vsel %vm466, %v382, 0
      %470 = vmatprep.subr.mxu0 0.0
      %471 = vmatpush1.msra.mxu0 0.0
      %472 = vmatprep.subr.mxu0 0.0
      %473 = vmatpush1.msra.mxu0 0.0
      %474 = vmatprep.subr.mxu0 0.0
      %475 = vmatpush1.msra.mxu0 0.0
      %476 = vmatprep.subr.mxu0 0.0
      %477 = vmatpush1.msra.mxu0 0.0
      %478 = vmatprep.subr.mxu0 0.0
      %479 = vmatpush1.msra.mxu0 0.0
      %480 = vmatprep.subr.mxu0 0.0
      %481 = vmatpush1.msra.mxu0 0.0
      %482 = vmatprep.subr.mxu0 0.0
      %483 = vmatpush1.msra.mxu0 0.0
      %484 = vmatprep.subr.mxu0 0.0
      %485 = vmatpush1.msra.mxu0 0.0
      %486 = vmatprep.subr.mxu0 0.0
      %487 = vmatpush1.msra.mxu0 0.0
      %488 = vmatprep.subr.mxu0 0.0
      %489 = vmatpush1.msra.mxu0 0.0
      %490 = vmatprep.subr.mxu0 0.0
      %491 = vmatpush1.msra.mxu0 0.0
      %492 = vmatprep.subr.mxu0 0.0
      %493 = vmatpush1.msra.mxu0 0.0
      %494 = vmatprep.subr.mxu0 0.0
      %495 = vmatpush1.msra.mxu0 0.0
      %496 = vmatprep.subr.mxu0 0.0
      %497 = vmatpush1.msra.mxu0 0.0
      %498 = vmatprep.subr.mxu0 0.0
      %499 = vmatpush1.msra.mxu0 %v468
      %500 = vmatprep.subr.mxu0 0.0
      %501 = vmatpush1.msra.mxu0 %v381
      %502 = vmatprep.subr.mxu0 0.0
      %503 = vmatpush2.msra.mxu0 0.0
      %504 = vmatprep.subr.mxu0 0.0
      %505 = vmatpush2.msra.mxu0 0.0
      %506 = vmatprep.subr.mxu0 0.0
      %507 = vmatpush2.msra.mxu0 0.0
      %508 = vmatprep.subr.mxu0 0.0
      %509 = vmatpush2.msra.mxu0 0.0
      %510 = vmatprep.subr.mxu0 0.0
      %511 = vmatpush2.msra.mxu0 0.0
      %512 = vmatprep.subr.mxu0 0.0
      %513 = vmatpush2.msra.mxu0 0.0
      %514 = vmatprep.subr.mxu0 0.0
      %515 = vmatpush2.msra.mxu0 0.0
      %516 = vmatprep.subr.mxu0 0.0
      %517 = vmatpush2.msra.mxu0 0.0
      %518 = vmatprep.subr.mxu0 0.0
      %519 = vmatpush2.msra.mxu0 0.0
      %520 = vmatprep.subr.mxu0 0.0
      %521 = vmatpush2.msra.mxu0 0.0
      %522 = vmatprep.subr.mxu0 0.0
      %523 = vmatpush2.msra.mxu0 0.0
      %524 = vmatprep.subr.mxu0 0.0
      %525 = vmatpush2.msra.mxu0 0.0
      %526 = vmatprep.subr.mxu0 0.0
      %527 = vmatpush2.msra.mxu0 0.0
      %528 = vmatprep.subr.mxu0 0.0
      %529 = vmatpush2.msra.mxu0 0.0
      %530 = vmatprep.subr.mxu0 0.0
      %531 = vmatpush2.msra.mxu0 0.0
      %532 = vmatprep.subr.mxu0 0.0
      %533 = vmatpush2.msra.mxu0 0.0
      %534 = vmatprep.mubr.f32.mxu0 0.0
      %535 = vmatmul.mubr.f32.gmra.mxu0 %v392
      %v536 = vpop.f32.mrf.mxu0
      %v537 = vadd.f32 %v388, %v536
      %v538 = vpop.f32.mrf.mxu0
      %539 = vmatprep.mubr.f32.mxu0 0.0
      %540 = vmatmul.mubr.f32.gmra.mxu0 %v395
      %v541 = vpop.f32.mrf.mxu0
      %v542 = vadd.f32 %v388, %v541
      %v543 = vpop.f32.mrf.mxu0
      %544 = vmatprep.mubr.f32.mxu0 0.0
      %545 = vmatmul.mubr.f32.gmra.mxu0 %v398
      %v546 = vpop.f32.mrf.mxu0
      %v547 = vadd.f32 %v388, %v546
      %v548 = vpop.f32.mrf.mxu0
      %549 = vmatprep.mubr.f32.mxu0 0.0
      %550 = vmatmul.mubr.f32.gmra.mxu0 %v401
      %v551 = vpop.f32.mrf.mxu0
      %v552 = vadd.f32 %v388, %v551
      %v553 = vpop.f32.mrf.mxu0
      %554 = vmatprep.mubr.f32.mxu0 0.0
      %555 = vmatmul.mubr.f32.gmra.mxu0 %v404
      %v556 = vpop.f32.mrf.mxu0
      %v557 = vadd.f32 %v388, %v556
      %v558 = vpop.f32.mrf.mxu0
      %559 = vmatprep.mubr.f32.mxu0 0.0
      %560 = vmatmul.mubr.f32.gmra.mxu0 %v407
      %v561 = vpop.f32.mrf.mxu0
      %v562 = vadd.f32 %v388, %v561
      %v563 = vpop.f32.mrf.mxu0
      %564 = vmatprep.mubr.f32.mxu0 0.0
      %565 = vmatmul.mubr.f32.gmra.mxu0 %v410
      %v566 = vpop.f32.mrf.mxu0
      %v567 = vadd.f32 %v388, %v566
      %v568 = vpop.f32.mrf.mxu0
      %569 = vmatprep.mubr.f32.mxu0 0.0
      %570 = vmatmul.mubr.f32.gmra.mxu0 %v413
      %v571 = vpop.f32.mrf.mxu0
      %v572 = vadd.f32 %v388, %v571
      %v573 = vpop.f32.mrf.mxu0
      %574 = vmatprep.mubr.f32.mxu0 0.0
      %575 = vmatmul.mubr.f32.gmra.mxu0 %v416
      %v576 = vpop.f32.mrf.mxu0
      %v577 = vadd.f32 %v388, %v576
      %v578 = vpop.f32.mrf.mxu0
      %579 = vmatprep.mubr.f32.mxu0 0.0
      %580 = vmatmul.mubr.f32.gmra.mxu0 %v419
      %v581 = vpop.f32.mrf.mxu0
      %v582 = vadd.f32 %v388, %v581
      %v583 = vpop.f32.mrf.mxu0
      %584 = vmatprep.mubr.f32.mxu0 0.0
      %585 = vmatmul.mubr.f32.gmra.mxu0 %v422
      %v586 = vpop.f32.mrf.mxu0
      %v587 = vadd.f32 %v388, %v586
      %v588 = vpop.f32.mrf.mxu0
      %589 = vmatprep.mubr.f32.mxu0 0.0
      %590 = vmatmul.mubr.f32.gmra.mxu0 %v425
      %v591 = vpop.f32.mrf.mxu0
      %v592 = vadd.f32 %v388, %v591
      %v593 = vpop.f32.mrf.mxu0
      %594 = vmatprep.mubr.f32.mxu0 0.0
      %595 = vmatmul.mubr.f32.gmra.mxu0 %v428
      %v596 = vpop.f32.mrf.mxu0
      %v597 = vadd.f32 %v388, %v596
      %v598 = vpop.f32.mrf.mxu0
      %599 = vmatprep.mubr.f32.mxu0 0.0
      %600 = vmatmul.mubr.f32.gmra.mxu0 %v431
      %v601 = vpop.f32.mrf.mxu0
      %v602 = vadd.f32 %v388, %v601
      %v603 = vpop.f32.mrf.mxu0
      %604 = vmatprep.mubr.f32.mxu0 0.0
      %605 = vmatmul.mubr.f32.gmra.mxu0 %v434
      %v606 = vpop.f32.mrf.mxu0
      %v607 = vadd.f32 %v388, %v606
      %v608 = vpop.f32.mrf.mxu0
      %609 = vmatprep.mubr.f32.mxu0 0.0
      %610 = vmatmul.mubr.f32.gmra.mxu0 %v437
      %v611 = vpop.f32.mrf.mxu0
      %v612 = vadd.f32 %v388, %v611
      %v613 = vpop.f32.mrf.mxu0
      %614 = vmatprep.mubr.f32.mxu0 0.0
      %615 = vmatmul.mubr.f32.gmra.mxu0 %v440
      %v616 = vpop.f32.mrf.mxu0
      %v617 = vadd.f32 %v388, %v616
      %v618 = vpop.f32.mrf.mxu0
      %619 = vmatprep.mubr.f32.mxu0 0.0
      %620 = vmatmul.mubr.f32.gmra.mxu0 %v443
      %v621 = vpop.f32.mrf.mxu0
      %v622 = vadd.f32 %v388, %v621
      %v623 = vpop.f32.mrf.mxu0
      %624 = vmatprep.mubr.f32.mxu0 0.0
      %625 = vmatmul.mubr.f32.gmra.mxu0 %v446
      %v626 = vpop.f32.mrf.mxu0
      %v627 = vadd.f32 %v388, %v626
      %v628 = vpop.f32.mrf.mxu0
      %629 = vmatprep.mubr.f32.mxu0 0.0
      %630 = vmatmul.mubr.f32.gmra.mxu0 %v449
      %v631 = vpop.f32.mrf.mxu0
      %v632 = vadd.f32 %v388, %v631
      %v633 = vpop.f32.mrf.mxu0
      %634 = vmatprep.mubr.f32.mxu0 0.0
      %635 = vmatmul.mubr.f32.gmra.mxu0 %v452
      %v636 = vpop.f32.mrf.mxu0
      %v637 = vadd.f32 %v388, %v636
      %v638 = vpop.f32.mrf.mxu0
      %639 = vmatprep.mubr.f32.mxu0 0.0
      %640 = vmatmul.mubr.f32.gmra.mxu0 %v455
      %v641 = vpop.f32.mrf.mxu0
      %v642 = vadd.f32 %v388, %v641
      %v643 = vpop.f32.mrf.mxu0
      %644 = vmatprep.mubr.f32.mxu0 0.0
      %645 = vmatmul.mubr.f32.gmra.mxu0 %v458
      %v646 = vpop.f32.mrf.mxu0
      %v647 = vadd.f32 %v388, %v646
      %v648 = vpop.f32.mrf.mxu0
      %649 = vmatprep.mubr.f32.mxu0 0.0
      %650 = vmatmul.mubr.f32.gmra.mxu0 %v461
      %v651 = vpop.f32.mrf.mxu0
      %v652 = vadd.f32 %v388, %v651
      %v653 = vpop.f32.mrf.mxu0
      %654 = vmatprep.mubr.f32.mxu0 0.0
      %655 = vmatmul.mubr.f32.gmra.mxu0 %v464
      %v656 = vpop.f32.mrf.mxu0
      %v657 = vadd.f32 %v388, %v656
      %v658 = vpop.f32.mrf.mxu0
      %659 = vdwg.mxu0
      %v660 = vmax.f32 %v537, 0.0
      %v661 = vmax.f32 %v542, 0.0
      %v662 = vmax.f32 %v547, 0.0
      %v663 = vmax.f32 %v552, 0.0
      %v664 = vmax.f32 %v557, 0.0
      %v665 = vmax.f32 %v562, 0.0
      %v666 = vmax.f32 %v567, 0.0
      %v667 = vmax.f32 %v572, 0.0
      %v668 = vmax.f32 %v577, 0.0
      %v669 = vmax.f32 %v582, 0.0
      %v670 = vmax.f32 %v587, 0.0
      %v671 = vmax.f32 %v592, 0.0
      %v672 = vmax.f32 %v597, 0.0
      %v673 = vmax.f32 %v602, 0.0
      %v674 = vmax.f32 %v607, 0.0
      %v675 = vmax.f32 %v612, 0.0
      %v676 = vmax.f32 %v617, 0.0
      %v677 = vmax.f32 %v622, 0.0
      %v678 = vmax.f32 %v627, 0.0
      %v679 = vmax.f32 %v632, 0.0
      %v680 = vmax.f32 %v637, 0.0
      %v681 = vmax.f32 %v642, 0.0
      %v682 = vmax.f32 %v647, 0.0
      %v683 = vmax.f32 %v652, 0.0
      %v684 = vmax.f32 %v657, 0.0
      %v685 = vld [vmem:[%s3] sm:$0xff]
      %v686 = vld [vmem:[%s3 + $0x8] sm:$0xff]
      %v687 = vld [vmem:[%s3 + $0x10] sm:$0xff]
      %v688 = vld [vmem:[%s3 + $0x18] sm:$0xff]
      %v689 = vld [vmem:[%s3 + $0x20] sm:$0xff]
      %v690 = vld [vmem:[%s3 + $0x28] sm:$0xff]
      %v691 = vld [vmem:[%s3 + $0x30] sm:$0x11]
      %v692 = vunpack.c.l.bf16 %v685
      %v693 = vunpack.c.h.bf16 %v685
      %v694 = vunpack.c.l.bf16 %v686
      %v695 = vunpack.c.h.bf16 %v686
      %v696 = vunpack.c.l.bf16 %v687
      %v697 = vunpack.c.h.bf16 %v687
      %v698 = vunpack.c.l.bf16 %v688
      %v699 = vunpack.c.h.bf16 %v688
      %v700 = vunpack.c.l.bf16 %v689
      %v701 = vunpack.c.h.bf16 %v689
      %v702 = vunpack.c.l.bf16 %v690
      %v703 = vunpack.c.h.bf16 %v690
      %v704 = vunpack.c.l.bf16 %v691
      %v705 = vunpack.c.h.bf16 %v691
      %vm706 = vcmask 556032
      %v708 = vsel %vm706, %v693, 0
      %v711 = vsel %vm706, %v695, 0
      %v714 = vsel %vm706, %v697, 0
      %v717 = vsel %vm706, %v699, 0
      %v720 = vsel %vm706, %v701, 0
      %v723 = vsel %vm706, %v703, 0
      %v726 = vsel %vm706, %v705, 0
      %vm728 = vcmask 1043456
      %v730 = vsel %vm728, %v684, 0
      %732 = vmatprep.subr.mxu0 0.0
      %733 = vmatpush1.msra.mxu0 %v675
      %734 = vmatprep.subr.mxu0 0.0
      %735 = vmatpush1.msra.mxu0 %v674
      %736 = vmatprep.subr.mxu0 0.0
      %737 = vmatpush1.msra.mxu0 %v673
      %738 = vmatprep.subr.mxu0 0.0
      %739 = vmatpush1.msra.mxu0 %v672
      %740 = vmatprep.subr.mxu0 0.0
      %741 = vmatpush1.msra.mxu0 %v671
      %742 = vmatprep.subr.mxu0 0.0
      %743 = vmatpush1.msra.mxu0 %v670
      %744 = vmatprep.subr.mxu0 0.0
      %745 = vmatpush1.msra.mxu0 %v669
      %746 = vmatprep.subr.mxu0 0.0
      %747 = vmatpush1.msra.mxu0 %v668
      %748 = vmatprep.subr.mxu0 0.0
      %749 = vmatpush1.msra.mxu0 %v667
      %750 = vmatprep.subr.mxu0 0.0
      %751 = vmatpush1.msra.mxu0 %v666
      %752 = vmatprep.subr.mxu0 0.0
      %753 = vmatpush1.msra.mxu0 %v665
      %754 = vmatprep.subr.mxu0 0.0
      %755 = vmatpush1.msra.mxu0 %v664
      %756 = vmatprep.subr.mxu0 0.0
      %757 = vmatpush1.msra.mxu0 %v663
      %758 = vmatprep.subr.mxu0 0.0
      %759 = vmatpush1.msra.mxu0 %v662
      %760 = vmatprep.subr.mxu0 0.0
      %761 = vmatpush1.msra.mxu0 %v661
      %762 = vmatprep.subr.mxu0 0.0
      %763 = vmatpush1.msra.mxu0 %v660
      %764 = vmatprep.subr.mxu0 0.0
      %765 = vmatpush2.msra.mxu0 0.0
      %766 = vmatprep.subr.mxu0 0.0
      %767 = vmatpush2.msra.mxu0 0.0
      %768 = vmatprep.subr.mxu0 0.0
      %769 = vmatpush2.msra.mxu0 0.0
      %770 = vmatprep.subr.mxu0 0.0
      %771 = vmatpush2.msra.mxu0 0.0
      %772 = vmatprep.subr.mxu0 0.0
      %773 = vmatpush2.msra.mxu0 0.0
      %774 = vmatprep.subr.mxu0 0.0
      %775 = vmatpush2.msra.mxu0 0.0
      %776 = vmatprep.subr.mxu0 0.0
      %777 = vmatpush2.msra.mxu0 0.0
      %778 = vmatprep.subr.mxu0 0.0
      %779 = vmatpush2.msra.mxu0 %v730
      %780 = vmatprep.subr.mxu0 0.0
      %781 = vmatpush2.msra.mxu0 %v683
      %782 = vmatprep.subr.mxu0 0.0
      %783 = vmatpush2.msra.mxu0 %v682
      %784 = vmatprep.subr.mxu0 0.0
      %785 = vmatpush2.msra.mxu0 %v681
      %786 = vmatprep.subr.mxu0 0.0
      %787 = vmatpush2.msra.mxu0 %v680
      %788 = vmatprep.subr.mxu0 0.0
      %789 = vmatpush2.msra.mxu0 %v679
      %790 = vmatprep.subr.mxu0 0.0
      %791 = vmatpush2.msra.mxu0 %v678
      %792 = vmatprep.subr.mxu0 0.0
      %793 = vmatpush2.msra.mxu0 %v677
      %794 = vmatprep.subr.mxu0 0.0
      %795 = vmatpush2.msra.mxu0 %v676
      %796 = vmatprep.mubr.f32.mxu0 %v708
      %797 = vmatmul.mubr.f32.gmra.mxu0 %v692
      %v798 = vpop.f32.mrf.mxu0
      %v799 = vadd.f32 0.0, %v798
      %v800 = vpop.f32.mrf.mxu0
      %801 = vmatprep.mubr.f32.mxu0 %v711
      %802 = vmatmul.mubr.f32.gmra.mxu0 %v694
      %v803 = vpop.f32.mrf.mxu0
      %v804 = vadd.f32 0.0, %v803
      %v805 = vpop.f32.mrf.mxu0
      %806 = vmatprep.mubr.f32.mxu0 %v714
      %807 = vmatmul.mubr.f32.gmra.mxu0 %v696
      %v808 = vpop.f32.mrf.mxu0
      %v809 = vadd.f32 0.0, %v808
      %v810 = vpop.f32.mrf.mxu0
      %811 = vmatprep.mubr.f32.mxu0 %v717
      %812 = vmatmul.mubr.f32.gmra.mxu0 %v698
      %v813 = vpop.f32.mrf.mxu0
      %v814 = vadd.f32 0.0, %v813
      %v815 = vpop.f32.mrf.mxu0
      %816 = vmatprep.mubr.f32.mxu0 %v720
      %817 = vmatmul.mubr.f32.gmra.mxu0 %v700
      %v818 = vpop.f32.mrf.mxu0
      %v819 = vadd.f32 0.0, %v818
      %v820 = vpop.f32.mrf.mxu0
      %821 = vmatprep.mubr.f32.mxu0 %v723
      %822 = vmatmul.mubr.f32.gmra.mxu0 %v702
      %v823 = vpop.f32.mrf.mxu0
      %v824 = vadd.f32 0.0, %v823
      %v825 = vpop.f32.mrf.mxu0
      %826 = vmatprep.mubr.f32.mxu0 %v726
      %827 = vmatmul.mubr.f32.gmra.mxu0 %v704
      %v828 = vpop.f32.mrf.mxu0
      %v829 = vadd.f32 0.0, %v828
      %v830 = vpop.f32.mrf.mxu0
      %831 = vdwg.mxu0
      %s832 = scalar_lea.vmem %s3, 56
      %v833 = vld [vmem:[%s832] sm:$0xff]
      %v834 = vld [vmem:[%s832 + $0x8] sm:$0xff]
      %v835 = vld [vmem:[%s832 + $0x10] sm:$0xff]
      %v836 = vld [vmem:[%s832 + $0x18] sm:$0xff]
      %v837 = vld [vmem:[%s832 + $0x20] sm:$0xff]
      %v838 = vld [vmem:[%s832 + $0x28] sm:$0xff]
      %v839 = vld [vmem:[%s832 + $0x30] sm:$0x11]
      %v840 = vunpack.c.l.bf16 %v833
      %v841 = vunpack.c.h.bf16 %v833
      %v842 = vunpack.c.l.bf16 %v834
      %v843 = vunpack.c.h.bf16 %v834
      %v844 = vunpack.c.l.bf16 %v835
      %v845 = vunpack.c.h.bf16 %v835
      %v846 = vunpack.c.l.bf16 %v836
      %v847 = vunpack.c.h.bf16 %v836
      %v848 = vunpack.c.l.bf16 %v837
      %v849 = vunpack.c.h.bf16 %v837
      %v850 = vunpack.c.l.bf16 %v838
      %v851 = vunpack.c.h.bf16 %v838
      %v852 = vunpack.c.l.bf16 %v839
      %v853 = vunpack.c.h.bf16 %v839
      %v855 = vsel %vm706, %v841, 0
      %v858 = vsel %vm706, %v843, 0
      %v861 = vsel %vm706, %v845, 0
      %v864 = vsel %vm706, %v847, 0
      %v867 = vsel %vm706, %v849, 0
      %v870 = vsel %vm706, %v851, 0
      %v873 = vsel %vm706, %v853, 0
      %875 = vmatprep.subr.mxu0 0.0
      %876 = vmatpush1.msra.mxu0 %v675
      %877 = vmatprep.subr.mxu0 0.0
      %878 = vmatpush1.msra.mxu0 %v674
      %879 = vmatprep.subr.mxu0 0.0
      %880 = vmatpush1.msra.mxu0 %v673
      %881 = vmatprep.subr.mxu0 0.0
      %882 = vmatpush1.msra.mxu0 %v672
      %883 = vmatprep.subr.mxu0 0.0
      %884 = vmatpush1.msra.mxu0 %v671
      %885 = vmatprep.subr.mxu0 0.0
      %886 = vmatpush1.msra.mxu0 %v670
      %887 = vmatprep.subr.mxu0 0.0
      %888 = vmatpush1.msra.mxu0 %v669
      %889 = vmatprep.subr.mxu0 0.0
      %890 = vmatpush1.msra.mxu0 %v668
      %891 = vmatprep.subr.mxu0 0.0
      %892 = vmatpush1.msra.mxu0 %v667
      %893 = vmatprep.subr.mxu0 0.0
      %894 = vmatpush1.msra.mxu0 %v666
      %895 = vmatprep.subr.mxu0 0.0
      %896 = vmatpush1.msra.mxu0 %v665
      %897 = vmatprep.subr.mxu0 0.0
      %898 = vmatpush1.msra.mxu0 %v664
      %899 = vmatprep.subr.mxu0 0.0
      %900 = vmatpush1.msra.mxu0 %v663
      %901 = vmatprep.subr.mxu0 0.0
      %902 = vmatpush1.msra.mxu0 %v662
      %903 = vmatprep.subr.mxu0 0.0
      %904 = vmatpush1.msra.mxu0 %v661
      %905 = vmatprep.subr.mxu0 0.0
      %906 = vmatpush1.msra.mxu0 %v660
      %907 = vmatprep.subr.mxu0 0.0
      %908 = vmatpush2.msra.mxu0 0.0
      %909 = vmatprep.subr.mxu0 0.0
      %910 = vmatpush2.msra.mxu0 0.0
      %911 = vmatprep.subr.mxu0 0.0
      %912 = vmatpush2.msra.mxu0 0.0
      %913 = vmatprep.subr.mxu0 0.0
      %914 = vmatpush2.msra.mxu0 0.0
      %915 = vmatprep.subr.mxu0 0.0
      %916 = vmatpush2.msra.mxu0 0.0
      %917 = vmatprep.subr.mxu0 0.0
      %918 = vmatpush2.msra.mxu0 0.0
      %919 = vmatprep.subr.mxu0 0.0
      %920 = vmatpush2.msra.mxu0 0.0
      %921 = vmatprep.subr.mxu0 0.0
      %922 = vmatpush2.msra.mxu0 %v730
      %923 = vmatprep.subr.mxu0 0.0
      %924 = vmatpush2.msra.mxu0 %v683
      %925 = vmatprep.subr.mxu0 0.0
      %926 = vmatpush2.msra.mxu0 %v682
      %927 = vmatprep.subr.mxu0 0.0
      %928 = vmatpush2.msra.mxu0 %v681
      %929 = vmatprep.subr.mxu0 0.0
      %930 = vmatpush2.msra.mxu0 %v680
      %931 = vmatprep.subr.mxu0 0.0
      %932 = vmatpush2.msra.mxu0 %v679
      %933 = vmatprep.subr.mxu0 0.0
      %934 = vmatpush2.msra.mxu0 %v678
      %935 = vmatprep.subr.mxu0 0.0
      %936 = vmatpush2.msra.mxu0 %v677
      %937 = vmatprep.subr.mxu0 0.0
      %938 = vmatpush2.msra.mxu0 %v676
      %939 = vmatprep.mubr.f32.mxu0 %v855
      %940 = vmatmul.mubr.f32.gmra.mxu0 %v840
      %v941 = vpop.f32.mrf.mxu0
      %v942 = vadd.f32 0.0, %v941
      %v943 = vpop.f32.mrf.mxu0
      %944 = vmatprep.mubr.f32.mxu0 %v858
      %945 = vmatmul.mubr.f32.gmra.mxu0 %v842
      %v946 = vpop.f32.mrf.mxu0
      %v947 = vadd.f32 0.0, %v946
      %v948 = vpop.f32.mrf.mxu0
      %949 = vmatprep.mubr.f32.mxu0 %v861
      %950 = vmatmul.mubr.f32.gmra.mxu0 %v844
      %v951 = vpop.f32.mrf.mxu0
      %v952 = vadd.f32 0.0, %v951
      %v953 = vpop.f32.mrf.mxu0
      %954 = vmatprep.mubr.f32.mxu0 %v864
      %955 = vmatmul.mubr.f32.gmra.mxu0 %v846
      %v956 = vpop.f32.mrf.mxu0
      %v957 = vadd.f32 0.0, %v956
      %v958 = vpop.f32.mrf.mxu0
      %959 = vmatprep.mubr.f32.mxu0 %v867
      %960 = vmatmul.mubr.f32.gmra.mxu0 %v848
      %v961 = vpop.f32.mrf.mxu0
      %v962 = vadd.f32 0.0, %v961
      %v963 = vpop.f32.mrf.mxu0
      %964 = vmatprep.mubr.f32.mxu0 %v870
      %965 = vmatmul.mubr.f32.gmra.mxu0 %v850
      %v966 = vpop.f32.mrf.mxu0
      %v967 = vadd.f32 0.0, %v966
      %v968 = vpop.f32.mrf.mxu0
      %969 = vmatprep.mubr.f32.mxu0 %v873
      %970 = vmatmul.mubr.f32.gmra.mxu0 %v852
      %v971 = vpop.f32.mrf.mxu0
      %v972 = vadd.f32 0.0, %v971
      %v973 = vpop.f32.mrf.mxu0
      %974 = vdwg.mxu0
      %v975 = vmax.f32 %v799, %v942
      %v976 = vmax.f32 %v804, %v947
      %v977 = vmax.f32 %v809, %v952
      %v978 = vmax.f32 %v814, %v957
      %v979 = vmax.f32 %v819, %v962
      %v980 = vmax.f32 %v824, %v967
      %v981 = vmax.f32 %v829, %v972
      %s982 = scalar_lea.vmem %s3, 112
      %v983 = vld [vmem:[%s982] sm:$0xff]
      %v984 = vld [vmem:[%s982 + $0x8] sm:$0xff]
      %v985 = vld [vmem:[%s982 + $0x10] sm:$0xff]
      %v986 = vld [vmem:[%s982 + $0x18] sm:$0xff]
      %v987 = vld [vmem:[%s982 + $0x20] sm:$0xff]
      %v988 = vld [vmem:[%s982 + $0x28] sm:$0xff]
      %v989 = vld [vmem:[%s982 + $0x30] sm:$0x11]
      %v990 = vunpack.c.l.bf16 %v983
      %v991 = vunpack.c.h.bf16 %v983
      %v992 = vunpack.c.l.bf16 %v984
      %v993 = vunpack.c.h.bf16 %v984
      %v994 = vunpack.c.l.bf16 %v985
      %v995 = vunpack.c.h.bf16 %v985
      %v996 = vunpack.c.l.bf16 %v986
      %v997 = vunpack.c.h.bf16 %v986
      %v998 = vunpack.c.l.bf16 %v987
      %v999 = vunpack.c.h.bf16 %v987
      %v1000 = vunpack.c.l.bf16 %v988
      %v1001 = vunpack.c.h.bf16 %v988
      %v1002 = vunpack.c.l.bf16 %v989
      %v1003 = vunpack.c.h.bf16 %v989
      %v1005 = vsel %vm706, %v991, 0
      %v1008 = vsel %vm706, %v993, 0
      %v1011 = vsel %vm706, %v995, 0
      %v1014 = vsel %vm706, %v997, 0
      %v1017 = vsel %vm706, %v999, 0
      %v1020 = vsel %vm706, %v1001, 0
      %v1023 = vsel %vm706, %v1003, 0
      %1025 = vmatprep.subr.mxu0 0.0
      %1026 = vmatpush1.msra.mxu0 %v675
      %1027 = vmatprep.subr.mxu0 0.0
      %1028 = vmatpush1.msra.mxu0 %v674
      %1029 = vmatprep.subr.mxu0 0.0
      %1030 = vmatpush1.msra.mxu0 %v673
      %1031 = vmatprep.subr.mxu0 0.0
      %1032 = vmatpush1.msra.mxu0 %v672
      %1033 = vmatprep.subr.mxu0 0.0
      %1034 = vmatpush1.msra.mxu0 %v671
      %1035 = vmatprep.subr.mxu0 0.0
      %1036 = vmatpush1.msra.mxu0 %v670
      %1037 = vmatprep.subr.mxu0 0.0
      %1038 = vmatpush1.msra.mxu0 %v669
      %1039 = vmatprep.subr.mxu0 0.0
      %1040 = vmatpush1.msra.mxu0 %v668
      %1041 = vmatprep.subr.mxu0 0.0
      %1042 = vmatpush1.msra.mxu0 %v667
      %1043 = vmatprep.subr.mxu0 0.0
      %1044 = vmatpush1.msra.mxu0 %v666
      %1045 = vmatprep.subr.mxu0 0.0
      %1046 = vmatpush1.msra.mxu0 %v665
      %1047 = vmatprep.subr.mxu0 0.0
      %1048 = vmatpush1.msra.mxu0 %v664
      %1049 = vmatprep.subr.mxu0 0.0
      %1050 = vmatpush1.msra.mxu0 %v663
      %1051 = vmatprep.subr.mxu0 0.0
      %1052 = vmatpush1.msra.mxu0 %v662
      %1053 = vmatprep.subr.mxu0 0.0
      %1054 = vmatpush1.msra.mxu0 %v661
      %1055 = vmatprep.subr.mxu0 0.0
      %1056 = vmatpush1.msra.mxu0 %v660
      %1057 = vmatprep.subr.mxu0 0.0
      %1058 = vmatpush2.msra.mxu0 0.0
      %1059 = vmatprep.subr.mxu0 0.0
      %1060 = vmatpush2.msra.mxu0 0.0
      %1061 = vmatprep.subr.mxu0 0.0
      %1062 = vmatpush2.msra.mxu0 0.0
      %1063 = vmatprep.subr.mxu0 0.0
      %1064 = vmatpush2.msra.mxu0 0.0
      %1065 = vmatprep.subr.mxu0 0.0
      %1066 = vmatpush2.msra.mxu0 0.0
      %1067 = vmatprep.subr.mxu0 0.0
      %1068 = vmatpush2.msra.mxu0 0.0
      %1069 = vmatprep.subr.mxu0 0.0
      %1070 = vmatpush2.msra.mxu0 0.0
      %1071 = vmatprep.subr.mxu0 0.0
      %1072 = vmatpush2.msra.mxu0 %v730
      %1073 = vmatprep.subr.mxu0 0.0
      %1074 = vmatpush2.msra.mxu0 %v683
      %1075 = vmatprep.subr.mxu0 0.0
      %1076 = vmatpush2.msra.mxu0 %v682
      %1077 = vmatprep.subr.mxu0 0.0
      %1078 = vmatpush2.msra.mxu0 %v681
      %1079 = vmatprep.subr.mxu0 0.0
      %1080 = vmatpush2.msra.mxu0 %v680
      %1081 = vmatprep.subr.mxu0 0.0
      %1082 = vmatpush2.msra.mxu0 %v679
      %1083 = vmatprep.subr.mxu0 0.0
      %1084 = vmatpush2.msra.mxu0 %v678
      %1085 = vmatprep.subr.mxu0 0.0
      %1086 = vmatpush2.msra.mxu0 %v677
      %1087 = vmatprep.subr.mxu0 0.0
      %1088 = vmatpush2.msra.mxu0 %v676
      %1089 = vmatprep.mubr.f32.mxu0 %v1005
      %1090 = vmatmul.mubr.f32.gmra.mxu0 %v990
      %v1091 = vpop.f32.mrf.mxu0
      %v1092 = vadd.f32 0.0, %v1091
      %v1093 = vpop.f32.mrf.mxu0
      %1094 = vmatprep.mubr.f32.mxu0 %v1008
      %1095 = vmatmul.mubr.f32.gmra.mxu0 %v992
      %v1096 = vpop.f32.mrf.mxu0
      %v1097 = vadd.f32 0.0, %v1096
      %v1098 = vpop.f32.mrf.mxu0
      %1099 = vmatprep.mubr.f32.mxu0 %v1011
      %1100 = vmatmul.mubr.f32.gmra.mxu0 %v994
      %v1101 = vpop.f32.mrf.mxu0
      %v1102 = vadd.f32 0.0, %v1101
      %v1103 = vpop.f32.mrf.mxu0
      %1104 = vmatprep.mubr.f32.mxu0 %v1014
      %1105 = vmatmul.mubr.f32.gmra.mxu0 %v996
      %v1106 = vpop.f32.mrf.mxu0
      %v1107 = vadd.f32 0.0, %v1106
      %v1108 = vpop.f32.mrf.mxu0
      %1109 = vmatprep.mubr.f32.mxu0 %v1017
      %1110 = vmatmul.mubr.f32.gmra.mxu0 %v998
      %v1111 = vpop.f32.mrf.mxu0
      %v1112 = vadd.f32 0.0, %v1111
      %v1113 = vpop.f32.mrf.mxu0
      %1114 = vmatprep.mubr.f32.mxu0 %v1020
      %1115 = vmatmul.mubr.f32.gmra.mxu0 %v1000
      %v1116 = vpop.f32.mrf.mxu0
      %v1117 = vadd.f32 0.0, %v1116
      %v1118 = vpop.f32.mrf.mxu0
      %1119 = vmatprep.mubr.f32.mxu0 %v1023
      %1120 = vmatmul.mubr.f32.gmra.mxu0 %v1002
      %v1121 = vpop.f32.mrf.mxu0
      %v1122 = vadd.f32 0.0, %v1121
      %v1123 = vpop.f32.mrf.mxu0
      %1124 = vdwg.mxu0
      %v1125 = vmax.f32 %v975, %v1092
      %v1126 = vmax.f32 %v976, %v1097
      %v1127 = vmax.f32 %v977, %v1102
      %v1128 = vmax.f32 %v978, %v1107
      %v1129 = vmax.f32 %v979, %v1112
      %v1130 = vmax.f32 %v980, %v1117
      %v1131 = vmax.f32 %v981, %v1122
      %s1132 = scalar_lea.vmem %s3, 168
      %v1133 = vld [vmem:[%s1132] sm:$0xff]
      %v1134 = vld [vmem:[%s1132 + $0x8] sm:$0xff]
      %v1135 = vld [vmem:[%s1132 + $0x10] sm:$0xff]
      %v1136 = vld [vmem:[%s1132 + $0x18] sm:$0xff]
      %v1137 = vld [vmem:[%s1132 + $0x20] sm:$0xff]
      %v1138 = vld [vmem:[%s1132 + $0x28] sm:$0xff]
      %v1139 = vld [vmem:[%s1132 + $0x30] sm:$0x11]
      %v1140 = vunpack.c.l.bf16 %v1133
      %v1141 = vunpack.c.h.bf16 %v1133
      %v1142 = vunpack.c.l.bf16 %v1134
      %v1143 = vunpack.c.h.bf16 %v1134
      %v1144 = vunpack.c.l.bf16 %v1135
      %v1145 = vunpack.c.h.bf16 %v1135
      %v1146 = vunpack.c.l.bf16 %v1136
      %v1147 = vunpack.c.h.bf16 %v1136
      %v1148 = vunpack.c.l.bf16 %v1137
      %v1149 = vunpack.c.h.bf16 %v1137
      %v1150 = vunpack.c.l.bf16 %v1138
      %v1151 = vunpack.c.h.bf16 %v1138
      %v1152 = vunpack.c.l.bf16 %v1139
      %v1153 = vunpack.c.h.bf16 %v1139
      %v1155 = vsel %vm706, %v1141, 0
      %v1158 = vsel %vm706, %v1143, 0
      %v1161 = vsel %vm706, %v1145, 0
      %v1164 = vsel %vm706, %v1147, 0
      %v1167 = vsel %vm706, %v1149, 0
      %v1170 = vsel %vm706, %v1151, 0
      %v1173 = vsel %vm706, %v1153, 0
      %1175 = vmatprep.subr.mxu0 0.0
      %1176 = vmatpush1.msra.mxu0 %v675
      %1177 = vmatprep.subr.mxu0 0.0
      %1178 = vmatpush1.msra.mxu0 %v674
      %1179 = vmatprep.subr.mxu0 0.0
      %1180 = vmatpush1.msra.mxu0 %v673
      %1181 = vmatprep.subr.mxu0 0.0
      %1182 = vmatpush1.msra.mxu0 %v672
      %1183 = vmatprep.subr.mxu0 0.0
      %1184 = vmatpush1.msra.mxu0 %v671
      %1185 = vmatprep.subr.mxu0 0.0
      %1186 = vmatpush1.msra.mxu0 %v670
      %1187 = vmatprep.subr.mxu0 0.0
      %1188 = vmatpush1.msra.mxu0 %v669
      %1189 = vmatprep.subr.mxu0 0.0
      %1190 = vmatpush1.msra.mxu0 %v668
      %1191 = vmatprep.subr.mxu0 0.0
      %1192 = vmatpush1.msra.mxu0 %v667
      %1193 = vmatprep.subr.mxu0 0.0
      %1194 = vmatpush1.msra.mxu0 %v666
      %1195 = vmatprep.subr.mxu0 0.0
      %1196 = vmatpush1.msra.mxu0 %v665
      %1197 = vmatprep.subr.mxu0 0.0
      %1198 = vmatpush1.msra.mxu0 %v664
      %1199 = vmatprep.subr.mxu0 0.0
      %1200 = vmatpush1.msra.mxu0 %v663
      %1201 = vmatprep.subr.mxu0 0.0
      %1202 = vmatpush1.msra.mxu0 %v662
      %1203 = vmatprep.subr.mxu0 0.0
      %1204 = vmatpush1.msra.mxu0 %v661
      %1205 = vmatprep.subr.mxu0 0.0
      %1206 = vmatpush1.msra.mxu0 %v660
      %1207 = vmatprep.subr.mxu0 0.0
      %1208 = vmatpush2.msra.mxu0 0.0
      %1209 = vmatprep.subr.mxu0 0.0
      %1210 = vmatpush2.msra.mxu0 0.0
      %1211 = vmatprep.subr.mxu0 0.0
      %1212 = vmatpush2.msra.mxu0 0.0
      %1213 = vmatprep.subr.mxu0 0.0
      %1214 = vmatpush2.msra.mxu0 0.0
      %1215 = vmatprep.subr.mxu0 0.0
      %1216 = vmatpush2.msra.mxu0 0.0
      %1217 = vmatprep.subr.mxu0 0.0
      %1218 = vmatpush2.msra.mxu0 0.0
      %1219 = vmatprep.subr.mxu0 0.0
      %1220 = vmatpush2.msra.mxu0 0.0
      %1221 = vmatprep.subr.mxu0 0.0
      %1222 = vmatpush2.msra.mxu0 %v730
      %1223 = vmatprep.subr.mxu0 0.0
      %1224 = vmatpush2.msra.mxu0 %v683
      %1225 = vmatprep.subr.mxu0 0.0
      %1226 = vmatpush2.msra.mxu0 %v682
      %1227 = vmatprep.subr.mxu0 0.0
      %1228 = vmatpush2.msra.mxu0 %v681
      %1229 = vmatprep.subr.mxu0 0.0
      %1230 = vmatpush2.msra.mxu0 %v680
      %1231 = vmatprep.subr.mxu0 0.0
      %1232 = vmatpush2.msra.mxu0 %v679
      %1233 = vmatprep.subr.mxu0 0.0
      %1234 = vmatpush2.msra.mxu0 %v678
      %1235 = vmatprep.subr.mxu0 0.0
      %1236 = vmatpush2.msra.mxu0 %v677
      %1237 = vmatprep.subr.mxu0 0.0
      %1238 = vmatpush2.msra.mxu0 %v676
      %1239 = vmatprep.mubr.f32.mxu0 %v1155
      %1240 = vmatmul.mubr.f32.gmra.mxu0 %v1140
      %v1241 = vpop.f32.mrf.mxu0
      %v1242 = vadd.f32 0.0, %v1241
      %v1243 = vpop.f32.mrf.mxu0
      %1244 = vmatprep.mubr.f32.mxu0 %v1158
      %1245 = vmatmul.mubr.f32.gmra.mxu0 %v1142
      %v1246 = vpop.f32.mrf.mxu0
      %v1247 = vadd.f32 0.0, %v1246
      %v1248 = vpop.f32.mrf.mxu0
      %1249 = vmatprep.mubr.f32.mxu0 %v1161
      %1250 = vmatmul.mubr.f32.gmra.mxu0 %v1144
      %v1251 = vpop.f32.mrf.mxu0
      %v1252 = vadd.f32 0.0, %v1251
      %v1253 = vpop.f32.mrf.mxu0
      %1254 = vmatprep.mubr.f32.mxu0 %v1164
      %1255 = vmatmul.mubr.f32.gmra.mxu0 %v1146
      %v1256 = vpop.f32.mrf.mxu0
      %v1257 = vadd.f32 0.0, %v1256
      %v1258 = vpop.f32.mrf.mxu0
      %1259 = vmatprep.mubr.f32.mxu0 %v1167
      %1260 = vmatmul.mubr.f32.gmra.mxu0 %v1148
      %v1261 = vpop.f32.mrf.mxu0
      %v1262 = vadd.f32 0.0, %v1261
      %v1263 = vpop.f32.mrf.mxu0
      %1264 = vmatprep.mubr.f32.mxu0 %v1170
      %1265 = vmatmul.mubr.f32.gmra.mxu0 %v1150
      %v1266 = vpop.f32.mrf.mxu0
      %v1267 = vadd.f32 0.0, %v1266
      %v1268 = vpop.f32.mrf.mxu0
      %1269 = vmatprep.mubr.f32.mxu0 %v1173
      %1270 = vmatmul.mubr.f32.gmra.mxu0 %v1152
      %v1271 = vpop.f32.mrf.mxu0
      %v1272 = vadd.f32 0.0, %v1271
      %v1273 = vpop.f32.mrf.mxu0
      %1274 = vdwg.mxu0
      %v1275 = vmax.f32 %v1125, %v1242
      %v1276 = vmax.f32 %v1126, %v1247
      %v1277 = vmax.f32 %v1127, %v1252
      %v1278 = vmax.f32 %v1128, %v1257
      %v1279 = vmax.f32 %v1129, %v1262
      %v1280 = vmax.f32 %v1130, %v1267
      %v1281 = vmax.f32 %v1131, %v1272
      %v1282 = vld [vmem:[%s5] sm:$0x3f]
      %vm1283 = vcmask 48128
      %v1285 = vsel %vm1283, %v1275, 0
      %v1288 = vsel %vm1283, %v1276, 0
      %v1291 = vsel %vm1283, %v1277, 0
      %v1294 = vsel %vm1283, %v1278, 0
      %v1297 = vsel %vm1283, %v1279, 0
      %v1300 = vsel %vm1283, %v1280, 0
      %v1303 = vsel %vm1283, %v1281, 0
      %vm1305 = vcmask 1045504
      %v1307 = vsel %vm1305, %v1282, 0
      %1309 = vmatprep.subr.mxu0 0.0
      %1310 = vmatpush1.msra.mxu0 0.0
      %1311 = vmatprep.subr.mxu0 0.0
      %1312 = vmatpush1.msra.mxu0 0.0
      %1313 = vmatprep.subr.mxu0 0.0
      %1314 = vmatpush1.msra.mxu0 0.0
      %1315 = vmatprep.subr.mxu0 0.0
      %1316 = vmatpush1.msra.mxu0 0.0
      %1317 = vmatprep.subr.mxu0 0.0
      %1318 = vmatpush1.msra.mxu0 0.0
      %1319 = vmatprep.subr.mxu0 0.0
      %1320 = vmatpush1.msra.mxu0 0.0
      %1321 = vmatprep.subr.mxu0 0.0
      %1322 = vmatpush1.msra.mxu0 0.0
      %1323 = vmatprep.subr.mxu0 0.0
      %1324 = vmatpush1.msra.mxu0 0.0
      %1325 = vmatprep.subr.mxu0 0.0
      %1326 = vmatpush1.msra.mxu0 0.0
      %1327 = vmatprep.subr.mxu0 0.0
      %1328 = vmatpush1.msra.mxu0 0.0
      %1329 = vmatprep.subr.mxu0 0.0
      %1330 = vmatpush1.msra.mxu0 0.0
      %1331 = vmatprep.subr.mxu0 0.0
      %1332 = vmatpush1.msra.mxu0 0.0
      %1333 = vmatprep.subr.mxu0 0.0
      %1334 = vmatpush1.msra.mxu0 0.0
      %1335 = vmatprep.subr.mxu0 0.0
      %1336 = vmatpush1.msra.mxu0 0.0
      %1337 = vmatprep.subr.mxu0 0.0
      %1338 = vmatpush1.msra.mxu0 0.0
      %1339 = vmatprep.subr.mxu0 0.0
      %1340 = vmatpush1.msra.mxu0 %v1307
      %1341 = vmatprep.subr.mxu0 0.0
      %1342 = vmatpush2.msra.mxu0 0.0
      %1343 = vmatprep.subr.mxu0 0.0
      %1344 = vmatpush2.msra.mxu0 0.0
      %1345 = vmatprep.subr.mxu0 0.0
      %1346 = vmatpush2.msra.mxu0 0.0
      %1347 = vmatprep.subr.mxu0 0.0
      %1348 = vmatpush2.msra.mxu0 0.0
      %1349 = vmatprep.subr.mxu0 0.0
      %1350 = vmatpush2.msra.mxu0 0.0
      %1351 = vmatprep.subr.mxu0 0.0
      %1352 = vmatpush2.msra.mxu0 0.0
      %1353 = vmatprep.subr.mxu0 0.0
      %1354 = vmatpush2.msra.mxu0 0.0
      %1355 = vmatprep.subr.mxu0 0.0
      %1356 = vmatpush2.msra.mxu0 0.0
      %1357 = vmatprep.subr.mxu0 0.0
      %1358 = vmatpush2.msra.mxu0 0.0
      %1359 = vmatprep.subr.mxu0 0.0
      %1360 = vmatpush2.msra.mxu0 0.0
      %1361 = vmatprep.subr.mxu0 0.0
      %1362 = vmatpush2.msra.mxu0 0.0
      %1363 = vmatprep.subr.mxu0 0.0
      %1364 = vmatpush2.msra.mxu0 0.0
      %1365 = vmatprep.subr.mxu0 0.0
      %1366 = vmatpush2.msra.mxu0 0.0
      %1367 = vmatprep.subr.mxu0 0.0
      %1368 = vmatpush2.msra.mxu0 0.0
      %1369 = vmatprep.subr.mxu0 0.0
      %1370 = vmatpush2.msra.mxu0 0.0
      %1371 = vmatprep.subr.mxu0 0.0
      %1372 = vmatpush2.msra.mxu0 0.0
      %1373 = vmatprep.mubr.f32.mxu0 0.0
      %1374 = vmatmul.mubr.f32.gmra.mxu0 %v1285
      %v1375 = vpop.f32.mrf.mxu0
      %v1376 = vadd.f32 0.0, %v1375
      %v1377 = vpop.f32.mrf.mxu0
      %1378 = vmatprep.mubr.f32.mxu0 0.0
      %1379 = vmatmul.mubr.f32.gmra.mxu0 %v1288
      %v1380 = vpop.f32.mrf.mxu0
      %v1381 = vadd.f32 0.0, %v1380
      %v1382 = vpop.f32.mrf.mxu0
      %1383 = vmatprep.mubr.f32.mxu0 0.0
      %1384 = vmatmul.mubr.f32.gmra.mxu0 %v1291
      %v1385 = vpop.f32.mrf.mxu0
      %v1386 = vadd.f32 0.0, %v1385
      %v1387 = vpop.f32.mrf.mxu0
      %1388 = vmatprep.mubr.f32.mxu0 0.0
      %1389 = vmatmul.mubr.f32.gmra.mxu0 %v1294
      %v1390 = vpop.f32.mrf.mxu0
      %v1391 = vadd.f32 0.0, %v1390
      %v1392 = vpop.f32.mrf.mxu0
      %1393 = vmatprep.mubr.f32.mxu0 0.0
      %1394 = vmatmul.mubr.f32.gmra.mxu0 %v1297
      %v1395 = vpop.f32.mrf.mxu0
      %v1396 = vadd.f32 0.0, %v1395
      %v1397 = vpop.f32.mrf.mxu0
      %1398 = vmatprep.mubr.f32.mxu0 0.0
      %1399 = vmatmul.mubr.f32.gmra.mxu0 %v1300
      %v1400 = vpop.f32.mrf.mxu0
      %v1401 = vadd.f32 0.0, %v1400
      %v1402 = vpop.f32.mrf.mxu0
      %1403 = vmatprep.mubr.f32.mxu0 0.0
      %1404 = vmatmul.mubr.f32.gmra.mxu0 %v1303
      %v1405 = vpop.f32.mrf.mxu0
      %v1406 = vadd.f32 0.0, %v1405
      %v1407 = vpop.f32.mrf.mxu0
      %1408 = vdwg.mxu0
      %v1409 = vld [vmem:[%s4] sm:$0xf]
      %v1410 = vld [vmem:[%s4 + $0x4] sm:$0xf]
      %v1411 = vld [vmem:[%s4 + $0x8] sm:$0xf]
      %v1412 = vld [vmem:[%s4 + $0xc] sm:$0x1]
      %v1413 = vunpack.c.l.bf16 %v1409
      %v1414 = vunpack.c.l.bf16 %v1410
      %v1415 = vunpack.c.l.bf16 %v1411
      %v1416 = vunpack.c.l.bf16 %v1412
      %s1417 = scalar_lea.vmem %s4, 16
      %v1418 = vld [vmem:[%s1417] sm:$0xf]
      %v1419 = vld [vmem:[%s1417 + $0x4] sm:$0xf]
      %v1420 = vld [vmem:[%s1417 + $0x8] sm:$0xf]
      %v1421 = vld [vmem:[%s1417 + $0xc] sm:$0x1]
      %v1422 = vunpack.c.l.bf16 %v1418
      %v1423 = vunpack.c.l.bf16 %v1419
      %v1424 = vunpack.c.l.bf16 %v1420
      %v1425 = vunpack.c.l.bf16 %v1421
      %1433 = vrot.lane.b32.xlu0 %v1376, 116
      %v1434 = vpop.permute.xlu0 %1433
      %1435 = vrot.lane.b32.xlu0 %v1381, 116
      %v1436 = vpop.permute.xlu0 %1435
      %1437 = vrot.lane.b32.xlu0 %v1386, 116
      %v1438 = vpop.permute.xlu0 %1437
      %1439 = vrot.lane.b32.xlu0 %v1391, 116
      %v1440 = vpop.permute.xlu0 %1439
      %1441 = vrot.lane.b32.xlu0 %v1396, 116
      %v1442 = vpop.permute.xlu0 %1441
      %1443 = vrot.lane.b32.xlu0 %v1401, 116
      %v1444 = vpop.permute.xlu0 %1443
      %1445 = vrot.lane.b32.xlu0 %v1406, 116
      %v1446 = vpop.permute.xlu0 %1445
      %vm1453 = vcmask 400384
      %v1455 = vsel %vm1453, %v1422, 0
      %v1458 = vsel %vm1453, %v1423, 0
      %v1461 = vsel %vm1453, %v1424, 0
      %v1464 = vsel %vm1453, %v1425, 0
      %v1466 = vsel %vm466, %v1446, 0
      %1468 = vmatprep.subr.mxu0 0.0
      %1469 = vmatpush1.msra.mxu0 0.0
      %1470 = vmatprep.subr.mxu0 0.0
      %1471 = vmatpush1.msra.mxu0 0.0
      %1472 = vmatprep.subr.mxu0 0.0
      %1473 = vmatpush1.msra.mxu0 0.0
      %1474 = vmatprep.subr.mxu0 0.0
      %1475 = vmatpush1.msra.mxu0 0.0
      %1476 = vmatprep.subr.mxu0 0.0
      %1477 = vmatpush1.msra.mxu0 0.0
      %1478 = vmatprep.subr.mxu0 0.0
      %1479 = vmatpush1.msra.mxu0 0.0
      %1480 = vmatprep.subr.mxu0 0.0
      %1481 = vmatpush1.msra.mxu0 0.0
      %1482 = vmatprep.subr.mxu0 0.0
      %1483 = vmatpush1.msra.mxu0 0.0
      %1484 = vmatprep.subr.mxu0 0.0
      %1485 = vmatpush1.msra.mxu0 0.0
      %1486 = vmatprep.subr.mxu0 0.0
      %1487 = vmatpush1.msra.mxu0 %v1466
      %1488 = vmatprep.subr.mxu0 0.0
      %1489 = vmatpush1.msra.mxu0 %v1444
      %1490 = vmatprep.subr.mxu0 0.0
      %1491 = vmatpush1.msra.mxu0 %v1442
      %1492 = vmatprep.subr.mxu0 0.0
      %1493 = vmatpush1.msra.mxu0 %v1440
      %1494 = vmatprep.subr.mxu0 0.0
      %1495 = vmatpush1.msra.mxu0 %v1438
      %1496 = vmatprep.subr.mxu0 0.0
      %1497 = vmatpush1.msra.mxu0 %v1436
      %1498 = vmatprep.subr.mxu0 0.0
      %1499 = vmatpush1.msra.mxu0 %v1434
      %1500 = vmatprep.subr.mxu0 0.0
      %1501 = vmatpush2.msra.mxu0 0.0
      %1502 = vmatprep.subr.mxu0 0.0
      %1503 = vmatpush2.msra.mxu0 0.0
      %1504 = vmatprep.subr.mxu0 0.0
      %1505 = vmatpush2.msra.mxu0 0.0
      %1506 = vmatprep.subr.mxu0 0.0
      %1507 = vmatpush2.msra.mxu0 0.0
      %1508 = vmatprep.subr.mxu0 0.0
      %1509 = vmatpush2.msra.mxu0 0.0
      %1510 = vmatprep.subr.mxu0 0.0
      %1511 = vmatpush2.msra.mxu0 0.0
      %1512 = vmatprep.subr.mxu0 0.0
      %1513 = vmatpush2.msra.mxu0 0.0
      %1514 = vmatprep.subr.mxu0 0.0
      %1515 = vmatpush2.msra.mxu0 0.0
      %1516 = vmatprep.subr.mxu0 0.0
      %1517 = vmatpush2.msra.mxu0 0.0
      %1518 = vmatprep.subr.mxu0 0.0
      %1519 = vmatpush2.msra.mxu0 0.0
      %1520 = vmatprep.subr.mxu0 0.0
      %1521 = vmatpush2.msra.mxu0 0.0
      %1522 = vmatprep.subr.mxu0 0.0
      %1523 = vmatpush2.msra.mxu0 0.0
      %1524 = vmatprep.subr.mxu0 0.0
      %1525 = vmatpush2.msra.mxu0 0.0
      %1526 = vmatprep.subr.mxu0 0.0
      %1527 = vmatpush2.msra.mxu0 0.0
      %1528 = vmatprep.subr.mxu0 0.0
      %1529 = vmatpush2.msra.mxu0 0.0
      %1530 = vmatprep.subr.mxu0 0.0
      %1531 = vmatpush2.msra.mxu0 0.0
      %1532 = vmatprep.mubr.f32.mxu0 0.0
      %1533 = vmatmul.mubr.f32.gmra.mxu0 %v1455
      %v1534 = vpop.f32.mrf.mxu0
      %v1535 = vadd.f32 0.0, %v1534
      %v1536 = vpop.f32.mrf.mxu0
      %1537 = vmatprep.mubr.f32.mxu0 0.0
      %1538 = vmatmul.mubr.f32.gmra.mxu0 %v1458
      %v1539 = vpop.f32.mrf.mxu0
      %v1540 = vadd.f32 0.0, %v1539
      %v1541 = vpop.f32.mrf.mxu0
      %1542 = vmatprep.mubr.f32.mxu0 0.0
      %1543 = vmatmul.mubr.f32.gmra.mxu0 %v1461
      %v1544 = vpop.f32.mrf.mxu0
      %v1545 = vadd.f32 0.0, %v1544
      %v1546 = vpop.f32.mrf.mxu0
      %1547 = vmatprep.mubr.f32.mxu0 0.0
      %1548 = vmatmul.mubr.f32.gmra.mxu0 %v1464
      %v1549 = vpop.f32.mrf.mxu0
      %v1550 = vadd.f32 0.0, %v1549
      %v1551 = vpop.f32.mrf.mxu0
      %1552 = vdwg.mxu0
      %v1554 = vsel %vm1453, %v1413, 0
      %v1557 = vsel %vm1453, %v1414, 0
      %v1560 = vsel %vm1453, %v1415, 0
      %v1563 = vsel %vm1453, %v1416, 0
      %v1565 = vsel %vm466, %v1406, 0
      %1567 = vmatprep.subr.mxu0 0.0
      %1568 = vmatpush1.msra.mxu0 0.0
      %1569 = vmatprep.subr.mxu0 0.0
      %1570 = vmatpush1.msra.mxu0 0.0
      %1571 = vmatprep.subr.mxu0 0.0
      %1572 = vmatpush1.msra.mxu0 0.0
      %1573 = vmatprep.subr.mxu0 0.0
      %1574 = vmatpush1.msra.mxu0 0.0
      %1575 = vmatprep.subr.mxu0 0.0
      %1576 = vmatpush1.msra.mxu0 0.0
      %1577 = vmatprep.subr.mxu0 0.0
      %1578 = vmatpush1.msra.mxu0 0.0
      %1579 = vmatprep.subr.mxu0 0.0
      %1580 = vmatpush1.msra.mxu0 0.0
      %1581 = vmatprep.subr.mxu0 0.0
      %1582 = vmatpush1.msra.mxu0 0.0
      %1583 = vmatprep.subr.mxu0 0.0
      %1584 = vmatpush1.msra.mxu0 0.0
      %1585 = vmatprep.subr.mxu0 0.0
      %1586 = vmatpush1.msra.mxu0 %v1565
      %1587 = vmatprep.subr.mxu0 0.0
      %1588 = vmatpush1.msra.mxu0 %v1401
      %1589 = vmatprep.subr.mxu0 0.0
      %1590 = vmatpush1.msra.mxu0 %v1396
      %1591 = vmatprep.subr.mxu0 0.0
      %1592 = vmatpush1.msra.mxu0 %v1391
      %1593 = vmatprep.subr.mxu0 0.0
      %1594 = vmatpush1.msra.mxu0 %v1386
      %1595 = vmatprep.subr.mxu0 0.0
      %1596 = vmatpush1.msra.mxu0 %v1381
      %1597 = vmatprep.subr.mxu0 0.0
      %1598 = vmatpush1.msra.mxu0 %v1376
      %1599 = vmatprep.subr.mxu0 0.0
      %1600 = vmatpush2.msra.mxu0 0.0
      %1601 = vmatprep.subr.mxu0 0.0
      %1602 = vmatpush2.msra.mxu0 0.0
      %1603 = vmatprep.subr.mxu0 0.0
      %1604 = vmatpush2.msra.mxu0 0.0
      %1605 = vmatprep.subr.mxu0 0.0
      %1606 = vmatpush2.msra.mxu0 0.0
      %1607 = vmatprep.subr.mxu0 0.0
      %1608 = vmatpush2.msra.mxu0 0.0
      %1609 = vmatprep.subr.mxu0 0.0
      %1610 = vmatpush2.msra.mxu0 0.0
      %1611 = vmatprep.subr.mxu0 0.0
      %1612 = vmatpush2.msra.mxu0 0.0
      %1613 = vmatprep.subr.mxu0 0.0
      %1614 = vmatpush2.msra.mxu0 0.0
      %1615 = vmatprep.subr.mxu0 0.0
      %1616 = vmatpush2.msra.mxu0 0.0
      %1617 = vmatprep.subr.mxu0 0.0
      %1618 = vmatpush2.msra.mxu0 0.0
      %1619 = vmatprep.subr.mxu0 0.0
      %1620 = vmatpush2.msra.mxu0 0.0
      %1621 = vmatprep.subr.mxu0 0.0
      %1622 = vmatpush2.msra.mxu0 0.0
      %1623 = vmatprep.subr.mxu0 0.0
      %1624 = vmatpush2.msra.mxu0 0.0
      %1625 = vmatprep.subr.mxu0 0.0
      %1626 = vmatpush2.msra.mxu0 0.0
      %1627 = vmatprep.subr.mxu0 0.0
      %1628 = vmatpush2.msra.mxu0 0.0
      %1629 = vmatprep.subr.mxu0 0.0
      %1630 = vmatpush2.msra.mxu0 0.0
      %1631 = vmatprep.mubr.f32.mxu0 0.0
      %1632 = vmatmul.mubr.f32.gmra.mxu0 %v1554
      %v1633 = vpop.f32.mrf.mxu0
      %v1634 = vadd.f32 %v1535, %v1633
      %v1635 = vpop.f32.mrf.mxu0
      %1636 = vmatprep.mubr.f32.mxu0 0.0
      %1637 = vmatmul.mubr.f32.gmra.mxu0 %v1557
      %v1638 = vpop.f32.mrf.mxu0
      %v1639 = vadd.f32 %v1540, %v1638
      %v1640 = vpop.f32.mrf.mxu0
      %1641 = vmatprep.mubr.f32.mxu0 0.0
      %1642 = vmatmul.mubr.f32.gmra.mxu0 %v1560
      %v1643 = vpop.f32.mrf.mxu0
      %v1644 = vadd.f32 %v1545, %v1643
      %v1645 = vpop.f32.mrf.mxu0
      %1646 = vmatprep.mubr.f32.mxu0 0.0
      %1647 = vmatmul.mubr.f32.gmra.mxu0 %v1563
      %v1648 = vpop.f32.mrf.mxu0
      %v1649 = vadd.f32 %v1550, %v1648
      %v1650 = vpop.f32.mrf.mxu0
      %1651 = vdwg.mxu0
      %s1652 = scalar_lea.vmem %s4, 32
      %v1653 = vld [vmem:[%s1652] sm:$0xf]
      %v1654 = vld [vmem:[%s1652 + $0x4] sm:$0xf]
      %v1655 = vld [vmem:[%s1652 + $0x8] sm:$0xf]
      %v1656 = vld [vmem:[%s1652 + $0xc] sm:$0x1]
      %v1657 = vunpack.c.l.bf16 %v1653
      %v1658 = vunpack.c.l.bf16 %v1654
      %v1659 = vunpack.c.l.bf16 %v1655
      %v1660 = vunpack.c.l.bf16 %v1656
      %1661 = vrot.lane.b32.xlu0 %v1376, 104
      %v1662 = vpop.permute.xlu0 %1661
      %1663 = vrot.lane.b32.xlu0 %v1381, 104
      %v1664 = vpop.permute.xlu0 %1663
      %1665 = vrot.lane.b32.xlu0 %v1386, 104
      %v1666 = vpop.permute.xlu0 %1665
      %1667 = vrot.lane.b32.xlu0 %v1391, 104
      %v1668 = vpop.permute.xlu0 %1667
      %1669 = vrot.lane.b32.xlu0 %v1396, 104
      %v1670 = vpop.permute.xlu0 %1669
      %1671 = vrot.lane.b32.xlu0 %v1401, 104
      %v1672 = vpop.permute.xlu0 %1671
      %1673 = vrot.lane.b32.xlu0 %v1406, 104
      %v1674 = vpop.permute.xlu0 %1673
      %v1682 = vsel %vm1453, %v1657, 0
      %v1685 = vsel %vm1453, %v1658, 0
      %v1688 = vsel %vm1453, %v1659, 0
      %v1691 = vsel %vm1453, %v1660, 0
      %v1693 = vsel %vm466, %v1674, 0
      %1695 = vmatprep.subr.mxu0 0.0
      %1696 = vmatpush1.msra.mxu0 0.0
      %1697 = vmatprep.subr.mxu0 0.0
      %1698 = vmatpush1.msra.mxu0 0.0
      %1699 = vmatprep.subr.mxu0 0.0
      %1700 = vmatpush1.msra.mxu0 0.0
      %1701 = vmatprep.subr.mxu0 0.0
      %1702 = vmatpush1.msra.mxu0 0.0
      %1703 = vmatprep.subr.mxu0 0.0
      %1704 = vmatpush1.msra.mxu0 0.0
      %1705 = vmatprep.subr.mxu0 0.0
      %1706 = vmatpush1.msra.mxu0 0.0
      %1707 = vmatprep.subr.mxu0 0.0
      %1708 = vmatpush1.msra.mxu0 0.0
      %1709 = vmatprep.subr.mxu0 0.0
      %1710 = vmatpush1.msra.mxu0 0.0
      %1711 = vmatprep.subr.mxu0 0.0
      %1712 = vmatpush1.msra.mxu0 0.0
      %1713 = vmatprep.subr.mxu0 0.0
      %1714 = vmatpush1.msra.mxu0 %v1693
      %1715 = vmatprep.subr.mxu0 0.0
      %1716 = vmatpush1.msra.mxu0 %v1672
      %1717 = vmatprep.subr.mxu0 0.0
      %1718 = vmatpush1.msra.mxu0 %v1670
      %1719 = vmatprep.subr.mxu0 0.0
      %1720 = vmatpush1.msra.mxu0 %v1668
      %1721 = vmatprep.subr.mxu0 0.0
      %1722 = vmatpush1.msra.mxu0 %v1666
      %1723 = vmatprep.subr.mxu0 0.0
      %1724 = vmatpush1.msra.mxu0 %v1664
      %1725 = vmatprep.subr.mxu0 0.0
      %1726 = vmatpush1.msra.mxu0 %v1662
      %1727 = vmatprep.subr.mxu0 0.0
      %1728 = vmatpush2.msra.mxu0 0.0
      %1729 = vmatprep.subr.mxu0 0.0
      %1730 = vmatpush2.msra.mxu0 0.0
      %1731 = vmatprep.subr.mxu0 0.0
      %1732 = vmatpush2.msra.mxu0 0.0
      %1733 = vmatprep.subr.mxu0 0.0
      %1734 = vmatpush2.msra.mxu0 0.0
      %1735 = vmatprep.subr.mxu0 0.0
      %1736 = vmatpush2.msra.mxu0 0.0
      %1737 = vmatprep.subr.mxu0 0.0
      %1738 = vmatpush2.msra.mxu0 0.0
      %1739 = vmatprep.subr.mxu0 0.0
      %1740 = vmatpush2.msra.mxu0 0.0
      %1741 = vmatprep.subr.mxu0 0.0
      %1742 = vmatpush2.msra.mxu0 0.0
      %1743 = vmatprep.subr.mxu0 0.0
      %1744 = vmatpush2.msra.mxu0 0.0
      %1745 = vmatprep.subr.mxu0 0.0
      %1746 = vmatpush2.msra.mxu0 0.0
      %1747 = vmatprep.subr.mxu0 0.0
      %1748 = vmatpush2.msra.mxu0 0.0
      %1749 = vmatprep.subr.mxu0 0.0
      %1750 = vmatpush2.msra.mxu0 0.0
      %1751 = vmatprep.subr.mxu0 0.0
      %1752 = vmatpush2.msra.mxu0 0.0
      %1753 = vmatprep.subr.mxu0 0.0
      %1754 = vmatpush2.msra.mxu0 0.0
      %1755 = vmatprep.subr.mxu0 0.0
      %1756 = vmatpush2.msra.mxu0 0.0
      %1757 = vmatprep.subr.mxu0 0.0
      %1758 = vmatpush2.msra.mxu0 0.0
      %1759 = vmatprep.mubr.f32.mxu0 0.0
      %1760 = vmatmul.mubr.f32.gmra.mxu0 %v1682
      %v1761 = vpop.f32.mrf.mxu0
      %v1762 = vadd.f32 0.0, %v1761
      %v1763 = vpop.f32.mrf.mxu0
      %1764 = vmatprep.mubr.f32.mxu0 0.0
      %1765 = vmatmul.mubr.f32.gmra.mxu0 %v1685
      %v1766 = vpop.f32.mrf.mxu0
      %v1767 = vadd.f32 0.0, %v1766
      %v1768 = vpop.f32.mrf.mxu0
      %1769 = vmatprep.mubr.f32.mxu0 0.0
      %1770 = vmatmul.mubr.f32.gmra.mxu0 %v1688
      %v1771 = vpop.f32.mrf.mxu0
      %v1772 = vadd.f32 0.0, %v1771
      %v1773 = vpop.f32.mrf.mxu0
      %1774 = vmatprep.mubr.f32.mxu0 0.0
      %1775 = vmatmul.mubr.f32.gmra.mxu0 %v1691
      %v1776 = vpop.f32.mrf.mxu0
      %v1777 = vadd.f32 0.0, %v1776
      %v1778 = vpop.f32.mrf.mxu0
      %1779 = vdwg.mxu0
      %v1780 = vadd.f32 %v1634, %v1762
      %v1781 = vadd.f32 %v1639, %v1767
      %v1782 = vadd.f32 %v1644, %v1772
      %v1783 = vadd.f32 %v1649, %v1777
      %s1784 = scalar_lea.vmem %s4, 48
      %v1785 = vld [vmem:[%s1784] sm:$0xf]
      %v1786 = vld [vmem:[%s1784 + $0x4] sm:$0xf]
      %v1787 = vld [vmem:[%s1784 + $0x8] sm:$0xf]
      %v1788 = vld [vmem:[%s1784 + $0xc] sm:$0x1]
      %v1789 = vunpack.c.l.bf16 %v1785
      %v1790 = vunpack.c.l.bf16 %v1786
      %v1791 = vunpack.c.l.bf16 %v1787
      %v1792 = vunpack.c.l.bf16 %v1788
      %1793 = vrot.lane.b32.xlu0 %v1376, 92
      %v1794 = vpop.permute.xlu0 %1793
      %1795 = vrot.lane.b32.xlu0 %v1381, 92
      %v1796 = vpop.permute.xlu0 %1795
      %1797 = vrot.lane.b32.xlu0 %v1386, 92
      %v1798 = vpop.permute.xlu0 %1797
      %1799 = vrot.lane.b32.xlu0 %v1391, 92
      %v1800 = vpop.permute.xlu0 %1799
      %1801 = vrot.lane.b32.xlu0 %v1396, 92
      %v1802 = vpop.permute.xlu0 %1801
      %1803 = vrot.lane.b32.xlu0 %v1401, 92
      %v1804 = vpop.permute.xlu0 %1803
      %1805 = vrot.lane.b32.xlu0 %v1406, 92
      %v1806 = vpop.permute.xlu0 %1805
      %v1814 = vsel %vm1453, %v1789, 0
      %v1817 = vsel %vm1453, %v1790, 0
      %v1820 = vsel %vm1453, %v1791, 0
      %v1823 = vsel %vm1453, %v1792, 0
      %v1825 = vsel %vm466, %v1806, 0
      %1827 = vmatprep.subr.mxu0 0.0
      %1828 = vmatpush1.msra.mxu0 0.0
      %1829 = vmatprep.subr.mxu0 0.0
      %1830 = vmatpush1.msra.mxu0 0.0
      %1831 = vmatprep.subr.mxu0 0.0
      %1832 = vmatpush1.msra.mxu0 0.0
      %1833 = vmatprep.subr.mxu0 0.0
      %1834 = vmatpush1.msra.mxu0 0.0
      %1835 = vmatprep.subr.mxu0 0.0
      %1836 = vmatpush1.msra.mxu0 0.0
      %1837 = vmatprep.subr.mxu0 0.0
      %1838 = vmatpush1.msra.mxu0 0.0
      %1839 = vmatprep.subr.mxu0 0.0
      %1840 = vmatpush1.msra.mxu0 0.0
      %1841 = vmatprep.subr.mxu0 0.0
      %1842 = vmatpush1.msra.mxu0 0.0
      %1843 = vmatprep.subr.mxu0 0.0
      %1844 = vmatpush1.msra.mxu0 0.0
      %1845 = vmatprep.subr.mxu0 0.0
      %1846 = vmatpush1.msra.mxu0 %v1825
      %1847 = vmatprep.subr.mxu0 0.0
      %1848 = vmatpush1.msra.mxu0 %v1804
      %1849 = vmatprep.subr.mxu0 0.0
      %1850 = vmatpush1.msra.mxu0 %v1802
      %1851 = vmatprep.subr.mxu0 0.0
      %1852 = vmatpush1.msra.mxu0 %v1800
      %1853 = vmatprep.subr.mxu0 0.0
      %1854 = vmatpush1.msra.mxu0 %v1798
      %1855 = vmatprep.subr.mxu0 0.0
      %1856 = vmatpush1.msra.mxu0 %v1796
      %1857 = vmatprep.subr.mxu0 0.0
      %1858 = vmatpush1.msra.mxu0 %v1794
      %1859 = vmatprep.subr.mxu0 0.0
      %1860 = vmatpush2.msra.mxu0 0.0
      %1861 = vmatprep.subr.mxu0 0.0
      %1862 = vmatpush2.msra.mxu0 0.0
      %1863 = vmatprep.subr.mxu0 0.0
      %1864 = vmatpush2.msra.mxu0 0.0
      %1865 = vmatprep.subr.mxu0 0.0
      %1866 = vmatpush2.msra.mxu0 0.0
      %1867 = vmatprep.subr.mxu0 0.0
      %1868 = vmatpush2.msra.mxu0 0.0
      %1869 = vmatprep.subr.mxu0 0.0
      %1870 = vmatpush2.msra.mxu0 0.0
      %1871 = vmatprep.subr.mxu0 0.0
      %1872 = vmatpush2.msra.mxu0 0.0
      %1873 = vmatprep.subr.mxu0 0.0
      %1874 = vmatpush2.msra.mxu0 0.0
      %1875 = vmatprep.subr.mxu0 0.0
      %1876 = vmatpush2.msra.mxu0 0.0
      %1877 = vmatprep.subr.mxu0 0.0
      %1878 = vmatpush2.msra.mxu0 0.0
      %1879 = vmatprep.subr.mxu0 0.0
      %1880 = vmatpush2.msra.mxu0 0.0
      %1881 = vmatprep.subr.mxu0 0.0
      %1882 = vmatpush2.msra.mxu0 0.0
      %1883 = vmatprep.subr.mxu0 0.0
      %1884 = vmatpush2.msra.mxu0 0.0
      %1885 = vmatprep.subr.mxu0 0.0
      %1886 = vmatpush2.msra.mxu0 0.0
      %1887 = vmatprep.subr.mxu0 0.0
      %1888 = vmatpush2.msra.mxu0 0.0
      %1889 = vmatprep.subr.mxu0 0.0
      %1890 = vmatpush2.msra.mxu0 0.0
      %1891 = vmatprep.mubr.f32.mxu0 0.0
      %1892 = vmatmul.mubr.f32.gmra.mxu0 %v1814
      %v1893 = vpop.f32.mrf.mxu0
      %v1894 = vadd.f32 0.0, %v1893
      %v1895 = vpop.f32.mrf.mxu0
      %1896 = vmatprep.mubr.f32.mxu0 0.0
      %1897 = vmatmul.mubr.f32.gmra.mxu0 %v1817
      %v1898 = vpop.f32.mrf.mxu0
      %v1899 = vadd.f32 0.0, %v1898
      %v1900 = vpop.f32.mrf.mxu0
      %1901 = vmatprep.mubr.f32.mxu0 0.0
      %1902 = vmatmul.mubr.f32.gmra.mxu0 %v1820
      %v1903 = vpop.f32.mrf.mxu0
      %v1904 = vadd.f32 0.0, %v1903
      %v1905 = vpop.f32.mrf.mxu0
      %1906 = vmatprep.mubr.f32.mxu0 0.0
      %1907 = vmatmul.mubr.f32.gmra.mxu0 %v1823
      %v1908 = vpop.f32.mrf.mxu0
      %v1909 = vadd.f32 0.0, %v1908
      %v1910 = vpop.f32.mrf.mxu0
      %1911 = vdwg.mxu0
      %v1912 = vadd.f32 %v1780, %v1894
      %v1913 = vadd.f32 %v1781, %v1899
      %v1914 = vadd.f32 %v1782, %v1904
      %v1915 = vadd.f32 %v1783, %v1909
      %s1916 = scalar_lea.vmem %s4, 64
      %v1917 = vld [vmem:[%s1916] sm:$0xf]
      %v1918 = vld [vmem:[%s1916 + $0x4] sm:$0xf]
      %v1919 = vld [vmem:[%s1916 + $0x8] sm:$0xf]
      %v1920 = vld [vmem:[%s1916 + $0xc] sm:$0x1]
      %v1921 = vunpack.c.l.bf16 %v1917
      %v1922 = vunpack.c.l.bf16 %v1918
      %v1923 = vunpack.c.l.bf16 %v1919
      %v1924 = vunpack.c.l.bf16 %v1920
      %1925 = vrot.lane.b32.xlu0 %v1376, 80
      %v1926 = vpop.permute.xlu0 %1925
      %1927 = vrot.lane.b32.xlu0 %v1381, 80
      %v1928 = vpop.permute.xlu0 %1927
      %1929 = vrot.lane.b32.xlu0 %v1386, 80
      %v1930 = vpop.permute.xlu0 %1929
      %1931 = vrot.lane.b32.xlu0 %v1391, 80
      %v1932 = vpop.permute.xlu0 %1931
      %1933 = vrot.lane.b32.xlu0 %v1396, 80
      %v1934 = vpop.permute.xlu0 %1933
      %1935 = vrot.lane.b32.xlu0 %v1401, 80
      %v1936 = vpop.permute.xlu0 %1935
      %1937 = vrot.lane.b32.xlu0 %v1406, 80
      %v1938 = vpop.permute.xlu0 %1937
      %v1946 = vsel %vm1453, %v1921, 0
      %v1949 = vsel %vm1453, %v1922, 0
      %v1952 = vsel %vm1453, %v1923, 0
      %v1955 = vsel %vm1453, %v1924, 0
      %v1957 = vsel %vm466, %v1938, 0
      %1959 = vmatprep.subr.mxu0 0.0
      %1960 = vmatpush1.msra.mxu0 0.0
      %1961 = vmatprep.subr.mxu0 0.0
      %1962 = vmatpush1.msra.mxu0 0.0
      %1963 = vmatprep.subr.mxu0 0.0
      %1964 = vmatpush1.msra.mxu0 0.0
      %1965 = vmatprep.subr.mxu0 0.0
      %1966 = vmatpush1.msra.mxu0 0.0
      %1967 = vmatprep.subr.mxu0 0.0
      %1968 = vmatpush1.msra.mxu0 0.0
      %1969 = vmatprep.subr.mxu0 0.0
      %1970 = vmatpush1.msra.mxu0 0.0
      %1971 = vmatprep.subr.mxu0 0.0
      %1972 = vmatpush1.msra.mxu0 0.0
      %1973 = vmatprep.subr.mxu0 0.0
      %1974 = vmatpush1.msra.mxu0 0.0
      %1975 = vmatprep.subr.mxu0 0.0
      %1976 = vmatpush1.msra.mxu0 0.0
      %1977 = vmatprep.subr.mxu0 0.0
      %1978 = vmatpush1.msra.mxu0 %v1957
      %1979 = vmatprep.subr.mxu0 0.0
      %1980 = vmatpush1.msra.mxu0 %v1936
      %1981 = vmatprep.subr.mxu0 0.0
      %1982 = vmatpush1.msra.mxu0 %v1934
      %1983 = vmatprep.subr.mxu0 0.0
      %1984 = vmatpush1.msra.mxu0 %v1932
      %1985 = vmatprep.subr.mxu0 0.0
      %1986 = vmatpush1.msra.mxu0 %v1930
      %1987 = vmatprep.subr.mxu0 0.0
      %1988 = vmatpush1.msra.mxu0 %v1928
      %1989 = vmatprep.subr.mxu0 0.0
      %1990 = vmatpush1.msra.mxu0 %v1926
      %1991 = vmatprep.subr.mxu0 0.0
      %1992 = vmatpush2.msra.mxu0 0.0
      %1993 = vmatprep.subr.mxu0 0.0
      %1994 = vmatpush2.msra.mxu0 0.0
      %1995 = vmatprep.subr.mxu0 0.0
      %1996 = vmatpush2.msra.mxu0 0.0
      %1997 = vmatprep.subr.mxu0 0.0
      %1998 = vmatpush2.msra.mxu0 0.0
      %1999 = vmatprep.subr.mxu0 0.0
      %2000 = vmatpush2.msra.mxu0 0.0
      %2001 = vmatprep.subr.mxu0 0.0
      %2002 = vmatpush2.msra.mxu0 0.0
      %2003 = vmatprep.subr.mxu0 0.0
      %2004 = vmatpush2.msra.mxu0 0.0
      %2005 = vmatprep.subr.mxu0 0.0
      %2006 = vmatpush2.msra.mxu0 0.0
      %2007 = vmatprep.subr.mxu0 0.0
      %2008 = vmatpush2.msra.mxu0 0.0
      %2009 = vmatprep.subr.mxu0 0.0
      %2010 = vmatpush2.msra.mxu0 0.0
      %2011 = vmatprep.subr.mxu0 0.0
      %2012 = vmatpush2.msra.mxu0 0.0
      %2013 = vmatprep.subr.mxu0 0.0
      %2014 = vmatpush2.msra.mxu0 0.0
      %2015 = vmatprep.subr.mxu0 0.0
      %2016 = vmatpush2.msra.mxu0 0.0
      %2017 = vmatprep.subr.mxu0 0.0
      %2018 = vmatpush2.msra.mxu0 0.0
      %2019 = vmatprep.subr.mxu0 0.0
      %2020 = vmatpush2.msra.mxu0 0.0
      %2021 = vmatprep.subr.mxu0 0.0
      %2022 = vmatpush2.msra.mxu0 0.0
      %2023 = vmatprep.mubr.f32.mxu0 0.0
      %2024 = vmatmul.mubr.f32.gmra.mxu0 %v1946
      %v2025 = vpop.f32.mrf.mxu0
      %v2026 = vadd.f32 0.0, %v2025
      %v2027 = vpop.f32.mrf.mxu0
      %2028 = vmatprep.mubr.f32.mxu0 0.0
      %2029 = vmatmul.mubr.f32.gmra.mxu0 %v1949
      %v2030 = vpop.f32.mrf.mxu0
      %v2031 = vadd.f32 0.0, %v2030
      %v2032 = vpop.f32.mrf.mxu0
      %2033 = vmatprep.mubr.f32.mxu0 0.0
      %2034 = vmatmul.mubr.f32.gmra.mxu0 %v1952
      %v2035 = vpop.f32.mrf.mxu0
      %v2036 = vadd.f32 0.0, %v2035
      %v2037 = vpop.f32.mrf.mxu0
      %2038 = vmatprep.mubr.f32.mxu0 0.0
      %2039 = vmatmul.mubr.f32.gmra.mxu0 %v1955
      %v2040 = vpop.f32.mrf.mxu0
      %v2041 = vadd.f32 0.0, %v2040
      %v2042 = vpop.f32.mrf.mxu0
      %2043 = vdwg.mxu0
      %v2044 = vadd.f32 %v1912, %v2026
      %v2045 = vadd.f32 %v1913, %v2031
      %v2046 = vadd.f32 %v1914, %v2036
      %v2047 = vadd.f32 %v1915, %v2041
      %s2048 = scalar_lea.vmem %s4, 80
      %v2049 = vld [vmem:[%s2048] sm:$0xf]
      %v2050 = vld [vmem:[%s2048 + $0x4] sm:$0xf]
      %v2051 = vld [vmem:[%s2048 + $0x8] sm:$0xf]
      %v2052 = vld [vmem:[%s2048 + $0xc] sm:$0x1]
      %v2053 = vunpack.c.l.bf16 %v2049
      %v2054 = vunpack.c.l.bf16 %v2050
      %v2055 = vunpack.c.l.bf16 %v2051
      %v2056 = vunpack.c.l.bf16 %v2052
      %2057 = vrot.lane.b32.xlu0 %v1376, 68
      %v2058 = vpop.permute.xlu0 %2057
      %2059 = vrot.lane.b32.xlu0 %v1381, 68
      %v2060 = vpop.permute.xlu0 %2059
      %2061 = vrot.lane.b32.xlu0 %v1386, 68
      %v2062 = vpop.permute.xlu0 %2061
      %2063 = vrot.lane.b32.xlu0 %v1391, 68
      %v2064 = vpop.permute.xlu0 %2063
      %2065 = vrot.lane.b32.xlu0 %v1396, 68
      %v2066 = vpop.permute.xlu0 %2065
      %2067 = vrot.lane.b32.xlu0 %v1401, 68
      %v2068 = vpop.permute.xlu0 %2067
      %2069 = vrot.lane.b32.xlu0 %v1406, 68
      %v2070 = vpop.permute.xlu0 %2069
      %v2078 = vsel %vm1453, %v2053, 0
      %v2081 = vsel %vm1453, %v2054, 0
      %v2084 = vsel %vm1453, %v2055, 0
      %v2087 = vsel %vm1453, %v2056, 0
      %v2089 = vsel %vm466, %v2070, 0
      %2091 = vmatprep.subr.mxu0 0.0
      %2092 = vmatpush1.msra.mxu0 0.0
      %2093 = vmatprep.subr.mxu0 0.0
      %2094 = vmatpush1.msra.mxu0 0.0
      %2095 = vmatprep.subr.mxu0 0.0
      %2096 = vmatpush1.msra.mxu0 0.0
      %2097 = vmatprep.subr.mxu0 0.0
      %2098 = vmatpush1.msra.mxu0 0.0
      %2099 = vmatprep.subr.mxu0 0.0
      %2100 = vmatpush1.msra.mxu0 0.0
      %2101 = vmatprep.subr.mxu0 0.0
      %2102 = vmatpush1.msra.mxu0 0.0
      %2103 = vmatprep.subr.mxu0 0.0
      %2104 = vmatpush1.msra.mxu0 0.0
      %2105 = vmatprep.subr.mxu0 0.0
      %2106 = vmatpush1.msra.mxu0 0.0
      %2107 = vmatprep.subr.mxu0 0.0
      %2108 = vmatpush1.msra.mxu0 0.0
      %2109 = vmatprep.subr.mxu0 0.0
      %2110 = vmatpush1.msra.mxu0 %v2089
      %2111 = vmatprep.subr.mxu0 0.0
      %2112 = vmatpush1.msra.mxu0 %v2068
      %2113 = vmatprep.subr.mxu0 0.0
      %2114 = vmatpush1.msra.mxu0 %v2066
      %2115 = vmatprep.subr.mxu0 0.0
      %2116 = vmatpush1.msra.mxu0 %v2064
      %2117 = vmatprep.subr.mxu0 0.0
      %2118 = vmatpush1.msra.mxu0 %v2062
      %2119 = vmatprep.subr.mxu0 0.0
      %2120 = vmatpush1.msra.mxu0 %v2060
      %2121 = vmatprep.subr.mxu0 0.0
      %2122 = vmatpush1.msra.mxu0 %v2058
      %2123 = vmatprep.subr.mxu0 0.0
      %2124 = vmatpush2.msra.mxu0 0.0
      %2125 = vmatprep.subr.mxu0 0.0
      %2126 = vmatpush2.msra.mxu0 0.0
      %2127 = vmatprep.subr.mxu0 0.0
      %2128 = vmatpush2.msra.mxu0 0.0
      %2129 = vmatprep.subr.mxu0 0.0
      %2130 = vmatpush2.msra.mxu0 0.0
      %2131 = vmatprep.subr.mxu0 0.0
      %2132 = vmatpush2.msra.mxu0 0.0
      %2133 = vmatprep.subr.mxu0 0.0
      %2134 = vmatpush2.msra.mxu0 0.0
      %2135 = vmatprep.subr.mxu0 0.0
      %2136 = vmatpush2.msra.mxu0 0.0
      %2137 = vmatprep.subr.mxu0 0.0
      %2138 = vmatpush2.msra.mxu0 0.0
      %2139 = vmatprep.subr.mxu0 0.0
      %2140 = vmatpush2.msra.mxu0 0.0
      %2141 = vmatprep.subr.mxu0 0.0
      %2142 = vmatpush2.msra.mxu0 0.0
      %2143 = vmatprep.subr.mxu0 0.0
      %2144 = vmatpush2.msra.mxu0 0.0
      %2145 = vmatprep.subr.mxu0 0.0
      %2146 = vmatpush2.msra.mxu0 0.0
      %2147 = vmatprep.subr.mxu0 0.0
      %2148 = vmatpush2.msra.mxu0 0.0
      %2149 = vmatprep.subr.mxu0 0.0
      %2150 = vmatpush2.msra.mxu0 0.0
      %2151 = vmatprep.subr.mxu0 0.0
      %2152 = vmatpush2.msra.mxu0 0.0
      %2153 = vmatprep.subr.mxu0 0.0
      %2154 = vmatpush2.msra.mxu0 0.0
      %2155 = vmatprep.mubr.f32.mxu0 0.0
      %2156 = vmatmul.mubr.f32.gmra.mxu0 %v2078
      %v2157 = vpop.f32.mrf.mxu0
      %v2158 = vadd.f32 0.0, %v2157
      %v2159 = vpop.f32.mrf.mxu0
      %2160 = vmatprep.mubr.f32.mxu0 0.0
      %2161 = vmatmul.mubr.f32.gmra.mxu0 %v2081
      %v2162 = vpop.f32.mrf.mxu0
      %v2163 = vadd.f32 0.0, %v2162
      %v2164 = vpop.f32.mrf.mxu0
      %2165 = vmatprep.mubr.f32.mxu0 0.0
      %2166 = vmatmul.mubr.f32.gmra.mxu0 %v2084
      %v2167 = vpop.f32.mrf.mxu0
      %v2168 = vadd.f32 0.0, %v2167
      %v2169 = vpop.f32.mrf.mxu0
      %2170 = vmatprep.mubr.f32.mxu0 0.0
      %2171 = vmatmul.mubr.f32.gmra.mxu0 %v2087
      %v2172 = vpop.f32.mrf.mxu0
      %v2173 = vadd.f32 0.0, %v2172
      %v2174 = vpop.f32.mrf.mxu0
      %2175 = vdwg.mxu0
      %v2176 = vadd.f32 %v2044, %v2158
      %v2177 = vadd.f32 %v2045, %v2163
      %v2178 = vadd.f32 %v2046, %v2168
      %v2179 = vadd.f32 %v2047, %v2173
      %s2180 = scalar_lea.vmem %s4, 96
      %v2181 = vld [vmem:[%s2180] sm:$0xf]
      %v2182 = vld [vmem:[%s2180 + $0x4] sm:$0xf]
      %v2183 = vld [vmem:[%s2180 + $0x8] sm:$0xf]
      %v2184 = vld [vmem:[%s2180 + $0xc] sm:$0x1]
      %v2185 = vunpack.c.l.bf16 %v2181
      %v2186 = vunpack.c.l.bf16 %v2182
      %v2187 = vunpack.c.l.bf16 %v2183
      %v2188 = vunpack.c.l.bf16 %v2184
      %2189 = vrot.lane.b32.xlu0 %v1376, 56
      %v2190 = vpop.permute.xlu0 %2189
      %2191 = vrot.lane.b32.xlu0 %v1381, 56
      %v2192 = vpop.permute.xlu0 %2191
      %2193 = vrot.lane.b32.xlu0 %v1386, 56
      %v2194 = vpop.permute.xlu0 %2193
      %2195 = vrot.lane.b32.xlu0 %v1391, 56
      %v2196 = vpop.permute.xlu0 %2195
      %2197 = vrot.lane.b32.xlu0 %v1396, 56
      %v2198 = vpop.permute.xlu0 %2197
      %2199 = vrot.lane.b32.xlu0 %v1401, 56
      %v2200 = vpop.permute.xlu0 %2199
      %2201 = vrot.lane.b32.xlu0 %v1406, 56
      %v2202 = vpop.permute.xlu0 %2201
      %v2210 = vsel %vm1453, %v2185, 0
      %v2213 = vsel %vm1453, %v2186, 0
      %v2216 = vsel %vm1453, %v2187, 0
      %v2219 = vsel %vm1453, %v2188, 0
      %v2221 = vsel %vm466, %v2202, 0
      %2223 = vmatprep.subr.mxu0 0.0
      %2224 = vmatpush1.msra.mxu0 0.0
      %2225 = vmatprep.subr.mxu0 0.0
      %2226 = vmatpush1.msra.mxu0 0.0
      %2227 = vmatprep.subr.mxu0 0.0
      %2228 = vmatpush1.msra.mxu0 0.0
      %2229 = vmatprep.subr.mxu0 0.0
      %2230 = vmatpush1.msra.mxu0 0.0
      %2231 = vmatprep.subr.mxu0 0.0
      %2232 = vmatpush1.msra.mxu0 0.0
      %2233 = vmatprep.subr.mxu0 0.0
      %2234 = vmatpush1.msra.mxu0 0.0
      %2235 = vmatprep.subr.mxu0 0.0
      %2236 = vmatpush1.msra.mxu0 0.0
      %2237 = vmatprep.subr.mxu0 0.0
      %2238 = vmatpush1.msra.mxu0 0.0
      %2239 = vmatprep.subr.mxu0 0.0
      %2240 = vmatpush1.msra.mxu0 0.0
      %2241 = vmatprep.subr.mxu0 0.0
      %2242 = vmatpush1.msra.mxu0 %v2221
      %2243 = vmatprep.subr.mxu0 0.0
      %2244 = vmatpush1.msra.mxu0 %v2200
      %2245 = vmatprep.subr.mxu0 0.0
      %2246 = vmatpush1.msra.mxu0 %v2198
      %2247 = vmatprep.subr.mxu0 0.0
      %2248 = vmatpush1.msra.mxu0 %v2196
      %2249 = vmatprep.subr.mxu0 0.0
      %2250 = vmatpush1.msra.mxu0 %v2194
      %2251 = vmatprep.subr.mxu0 0.0
      %2252 = vmatpush1.msra.mxu0 %v2192
      %2253 = vmatprep.subr.mxu0 0.0
      %2254 = vmatpush1.msra.mxu0 %v2190
      %2255 = vmatprep.subr.mxu0 0.0
      %2256 = vmatpush2.msra.mxu0 0.0
      %2257 = vmatprep.subr.mxu0 0.0
      %2258 = vmatpush2.msra.mxu0 0.0
      %2259 = vmatprep.subr.mxu0 0.0
      %2260 = vmatpush2.msra.mxu0 0.0
      %2261 = vmatprep.subr.mxu0 0.0
      %2262 = vmatpush2.msra.mxu0 0.0
      %2263 = vmatprep.subr.mxu0 0.0
      %2264 = vmatpush2.msra.mxu0 0.0
      %2265 = vmatprep.subr.mxu0 0.0
      %2266 = vmatpush2.msra.mxu0 0.0
      %2267 = vmatprep.subr.mxu0 0.0
      %2268 = vmatpush2.msra.mxu0 0.0
      %2269 = vmatprep.subr.mxu0 0.0
      %2270 = vmatpush2.msra.mxu0 0.0
      %2271 = vmatprep.subr.mxu0 0.0
      %2272 = vmatpush2.msra.mxu0 0.0
      %2273 = vmatprep.subr.mxu0 0.0
      %2274 = vmatpush2.msra.mxu0 0.0
      %2275 = vmatprep.subr.mxu0 0.0
      %2276 = vmatpush2.msra.mxu0 0.0
      %2277 = vmatprep.subr.mxu0 0.0
      %2278 = vmatpush2.msra.mxu0 0.0
      %2279 = vmatprep.subr.mxu0 0.0
      %2280 = vmatpush2.msra.mxu0 0.0
      %2281 = vmatprep.subr.mxu0 0.0
      %2282 = vmatpush2.msra.mxu0 0.0
      %2283 = vmatprep.subr.mxu0 0.0
      %2284 = vmatpush2.msra.mxu0 0.0
      %2285 = vmatprep.subr.mxu0 0.0
      %2286 = vmatpush2.msra.mxu0 0.0
      %2287 = vmatprep.mubr.f32.mxu0 0.0
      %2288 = vmatmul.mubr.f32.gmra.mxu0 %v2210
      %v2289 = vpop.f32.mrf.mxu0
      %v2290 = vadd.f32 0.0, %v2289
      %v2291 = vpop.f32.mrf.mxu0
      %2292 = vmatprep.mubr.f32.mxu0 0.0
      %2293 = vmatmul.mubr.f32.gmra.mxu0 %v2213
      %v2294 = vpop.f32.mrf.mxu0
      %v2295 = vadd.f32 0.0, %v2294
      %v2296 = vpop.f32.mrf.mxu0
      %2297 = vmatprep.mubr.f32.mxu0 0.0
      %2298 = vmatmul.mubr.f32.gmra.mxu0 %v2216
      %v2299 = vpop.f32.mrf.mxu0
      %v2300 = vadd.f32 0.0, %v2299
      %v2301 = vpop.f32.mrf.mxu0
      %2302 = vmatprep.mubr.f32.mxu0 0.0
      %2303 = vmatmul.mubr.f32.gmra.mxu0 %v2219
      %v2304 = vpop.f32.mrf.mxu0
      %v2305 = vadd.f32 0.0, %v2304
      %v2306 = vpop.f32.mrf.mxu0
      %2307 = vdwg.mxu0
      %v2308 = vadd.f32 %v2176, %v2290
      %v2309 = vadd.f32 %v2177, %v2295
      %v2310 = vadd.f32 %v2178, %v2300
      %v2311 = vadd.f32 %v2179, %v2305
      %s2312 = scalar_lea.vmem %s4, 112
      %v2313 = vld [vmem:[%s2312] sm:$0xf]
      %v2314 = vld [vmem:[%s2312 + $0x4] sm:$0xf]
      %v2315 = vld [vmem:[%s2312 + $0x8] sm:$0xf]
      %v2316 = vld [vmem:[%s2312 + $0xc] sm:$0x1]
      %v2317 = vunpack.c.l.bf16 %v2313
      %v2318 = vunpack.c.l.bf16 %v2314
      %v2319 = vunpack.c.l.bf16 %v2315
      %v2320 = vunpack.c.l.bf16 %v2316
      %2321 = vrot.lane.b32.xlu0 %v1376, 44
      %v2322 = vpop.permute.xlu0 %2321
      %2323 = vrot.lane.b32.xlu0 %v1381, 44
      %v2324 = vpop.permute.xlu0 %2323
      %2325 = vrot.lane.b32.xlu0 %v1386, 44
      %v2326 = vpop.permute.xlu0 %2325
      %2327 = vrot.lane.b32.xlu0 %v1391, 44
      %v2328 = vpop.permute.xlu0 %2327
      %2329 = vrot.lane.b32.xlu0 %v1396, 44
      %v2330 = vpop.permute.xlu0 %2329
      %2331 = vrot.lane.b32.xlu0 %v1401, 44
      %v2332 = vpop.permute.xlu0 %2331
      %2333 = vrot.lane.b32.xlu0 %v1406, 44
      %v2334 = vpop.permute.xlu0 %2333
      %v2342 = vsel %vm1453, %v2317, 0
      %v2345 = vsel %vm1453, %v2318, 0
      %v2348 = vsel %vm1453, %v2319, 0
      %v2351 = vsel %vm1453, %v2320, 0
      %v2353 = vsel %vm466, %v2334, 0
      %2355 = vmatprep.subr.mxu0 0.0
      %2356 = vmatpush1.msra.mxu0 0.0
      %2357 = vmatprep.subr.mxu0 0.0
      %2358 = vmatpush1.msra.mxu0 0.0
      %2359 = vmatprep.subr.mxu0 0.0
      %2360 = vmatpush1.msra.mxu0 0.0
      %2361 = vmatprep.subr.mxu0 0.0
      %2362 = vmatpush1.msra.mxu0 0.0
      %2363 = vmatprep.subr.mxu0 0.0
      %2364 = vmatpush1.msra.mxu0 0.0
      %2365 = vmatprep.subr.mxu0 0.0
      %2366 = vmatpush1.msra.mxu0 0.0
      %2367 = vmatprep.subr.mxu0 0.0
      %2368 = vmatpush1.msra.mxu0 0.0
      %2369 = vmatprep.subr.mxu0 0.0
      %2370 = vmatpush1.msra.mxu0 0.0
      %2371 = vmatprep.subr.mxu0 0.0
      %2372 = vmatpush1.msra.mxu0 0.0
      %2373 = vmatprep.subr.mxu0 0.0
      %2374 = vmatpush1.msra.mxu0 %v2353
      %2375 = vmatprep.subr.mxu0 0.0
      %2376 = vmatpush1.msra.mxu0 %v2332
      %2377 = vmatprep.subr.mxu0 0.0
      %2378 = vmatpush1.msra.mxu0 %v2330
      %2379 = vmatprep.subr.mxu0 0.0
      %2380 = vmatpush1.msra.mxu0 %v2328
      %2381 = vmatprep.subr.mxu0 0.0
      %2382 = vmatpush1.msra.mxu0 %v2326
      %2383 = vmatprep.subr.mxu0 0.0
      %2384 = vmatpush1.msra.mxu0 %v2324
      %2385 = vmatprep.subr.mxu0 0.0
      %2386 = vmatpush1.msra.mxu0 %v2322
      %2387 = vmatprep.subr.mxu0 0.0
      %2388 = vmatpush2.msra.mxu0 0.0
      %2389 = vmatprep.subr.mxu0 0.0
      %2390 = vmatpush2.msra.mxu0 0.0
      %2391 = vmatprep.subr.mxu0 0.0
      %2392 = vmatpush2.msra.mxu0 0.0
      %2393 = vmatprep.subr.mxu0 0.0
      %2394 = vmatpush2.msra.mxu0 0.0
      %2395 = vmatprep.subr.mxu0 0.0
      %2396 = vmatpush2.msra.mxu0 0.0
      %2397 = vmatprep.subr.mxu0 0.0
      %2398 = vmatpush2.msra.mxu0 0.0
      %2399 = vmatprep.subr.mxu0 0.0
      %2400 = vmatpush2.msra.mxu0 0.0
      %2401 = vmatprep.subr.mxu0 0.0
      %2402 = vmatpush2.msra.mxu0 0.0
      %2403 = vmatprep.subr.mxu0 0.0
      %2404 = vmatpush2.msra.mxu0 0.0
      %2405 = vmatprep.subr.mxu0 0.0
      %2406 = vmatpush2.msra.mxu0 0.0
      %2407 = vmatprep.subr.mxu0 0.0
      %2408 = vmatpush2.msra.mxu0 0.0
      %2409 = vmatprep.subr.mxu0 0.0
      %2410 = vmatpush2.msra.mxu0 0.0
      %2411 = vmatprep.subr.mxu0 0.0
      %2412 = vmatpush2.msra.mxu0 0.0
      %2413 = vmatprep.subr.mxu0 0.0
      %2414 = vmatpush2.msra.mxu0 0.0
      %2415 = vmatprep.subr.mxu0 0.0
      %2416 = vmatpush2.msra.mxu0 0.0
      %2417 = vmatprep.subr.mxu0 0.0
      %2418 = vmatpush2.msra.mxu0 0.0
      %2419 = vmatprep.mubr.f32.mxu0 0.0
      %2420 = vmatmul.mubr.f32.gmra.mxu0 %v2342
      %v2421 = vpop.f32.mrf.mxu0
      %v2422 = vadd.f32 0.0, %v2421
      %v2423 = vpop.f32.mrf.mxu0
      %2424 = vmatprep.mubr.f32.mxu0 0.0
      %2425 = vmatmul.mubr.f32.gmra.mxu0 %v2345
      %v2426 = vpop.f32.mrf.mxu0
      %v2427 = vadd.f32 0.0, %v2426
      %v2428 = vpop.f32.mrf.mxu0
      %2429 = vmatprep.mubr.f32.mxu0 0.0
      %2430 = vmatmul.mubr.f32.gmra.mxu0 %v2348
      %v2431 = vpop.f32.mrf.mxu0
      %v2432 = vadd.f32 0.0, %v2431
      %v2433 = vpop.f32.mrf.mxu0
      %2434 = vmatprep.mubr.f32.mxu0 0.0
      %2435 = vmatmul.mubr.f32.gmra.mxu0 %v2351
      %v2436 = vpop.f32.mrf.mxu0
      %v2437 = vadd.f32 0.0, %v2436
      %v2438 = vpop.f32.mrf.mxu0
      %2439 = vdwg.mxu0
      %v2440 = vadd.f32 %v2308, %v2422
      %v2441 = vadd.f32 %v2309, %v2427
      %v2442 = vadd.f32 %v2310, %v2432
      %v2443 = vadd.f32 %v2311, %v2437
      %s2444 = scalar_lea.vmem %s4, 128
      %v2445 = vld [vmem:[%s2444] sm:$0xf]
      %v2446 = vld [vmem:[%s2444 + $0x4] sm:$0xf]
      %v2447 = vld [vmem:[%s2444 + $0x8] sm:$0xf]
      %v2448 = vld [vmem:[%s2444 + $0xc] sm:$0x1]
      %v2449 = vunpack.c.l.bf16 %v2445
      %v2450 = vunpack.c.l.bf16 %v2446
      %v2451 = vunpack.c.l.bf16 %v2447
      %v2452 = vunpack.c.l.bf16 %v2448
      %2453 = vrot.lane.b32.xlu0 %v1376, 32
      %v2454 = vpop.permute.xlu0 %2453
      %2455 = vrot.lane.b32.xlu0 %v1381, 32
      %v2456 = vpop.permute.xlu0 %2455
      %2457 = vrot.lane.b32.xlu0 %v1386, 32
      %v2458 = vpop.permute.xlu0 %2457
      %2459 = vrot.lane.b32.xlu0 %v1391, 32
      %v2460 = vpop.permute.xlu0 %2459
      %2461 = vrot.lane.b32.xlu0 %v1396, 32
      %v2462 = vpop.permute.xlu0 %2461
      %2463 = vrot.lane.b32.xlu0 %v1401, 32
      %v2464 = vpop.permute.xlu0 %2463
      %2465 = vrot.lane.b32.xlu0 %v1406, 32
      %v2466 = vpop.permute.xlu0 %2465
      %v2474 = vsel %vm1453, %v2449, 0
      %v2477 = vsel %vm1453, %v2450, 0
      %v2480 = vsel %vm1453, %v2451, 0
      %v2483 = vsel %vm1453, %v2452, 0
      %v2485 = vsel %vm466, %v2466, 0
      %2487 = vmatprep.subr.mxu0 0.0
      %2488 = vmatpush1.msra.mxu0 0.0
      %2489 = vmatprep.subr.mxu0 0.0
      %2490 = vmatpush1.msra.mxu0 0.0
      %2491 = vmatprep.subr.mxu0 0.0
      %2492 = vmatpush1.msra.mxu0 0.0
      %2493 = vmatprep.subr.mxu0 0.0
      %2494 = vmatpush1.msra.mxu0 0.0
      %2495 = vmatprep.subr.mxu0 0.0
      %2496 = vmatpush1.msra.mxu0 0.0
      %2497 = vmatprep.subr.mxu0 0.0
      %2498 = vmatpush1.msra.mxu0 0.0
      %2499 = vmatprep.subr.mxu0 0.0
      %2500 = vmatpush1.msra.mxu0 0.0
      %2501 = vmatprep.subr.mxu0 0.0
      %2502 = vmatpush1.msra.mxu0 0.0
      %2503 = vmatprep.subr.mxu0 0.0
      %2504 = vmatpush1.msra.mxu0 0.0
      %2505 = vmatprep.subr.mxu0 0.0
      %2506 = vmatpush1.msra.mxu0 %v2485
      %2507 = vmatprep.subr.mxu0 0.0
      %2508 = vmatpush1.msra.mxu0 %v2464
      %2509 = vmatprep.subr.mxu0 0.0
      %2510 = vmatpush1.msra.mxu0 %v2462
      %2511 = vmatprep.subr.mxu0 0.0
      %2512 = vmatpush1.msra.mxu0 %v2460
      %2513 = vmatprep.subr.mxu0 0.0
      %2514 = vmatpush1.msra.mxu0 %v2458
      %2515 = vmatprep.subr.mxu0 0.0
      %2516 = vmatpush1.msra.mxu0 %v2456
      %2517 = vmatprep.subr.mxu0 0.0
      %2518 = vmatpush1.msra.mxu0 %v2454
      %2519 = vmatprep.subr.mxu0 0.0
      %2520 = vmatpush2.msra.mxu0 0.0
      %2521 = vmatprep.subr.mxu0 0.0
      %2522 = vmatpush2.msra.mxu0 0.0
      %2523 = vmatprep.subr.mxu0 0.0
      %2524 = vmatpush2.msra.mxu0 0.0
      %2525 = vmatprep.subr.mxu0 0.0
      %2526 = vmatpush2.msra.mxu0 0.0
      %2527 = vmatprep.subr.mxu0 0.0
      %2528 = vmatpush2.msra.mxu0 0.0
      %2529 = vmatprep.subr.mxu0 0.0
      %2530 = vmatpush2.msra.mxu0 0.0
      %2531 = vmatprep.subr.mxu0 0.0
      %2532 = vmatpush2.msra.mxu0 0.0
      %2533 = vmatprep.subr.mxu0 0.0
      %2534 = vmatpush2.msra.mxu0 0.0
      %2535 = vmatprep.subr.mxu0 0.0
      %2536 = vmatpush2.msra.mxu0 0.0
      %2537 = vmatprep.subr.mxu0 0.0
      %2538 = vmatpush2.msra.mxu0 0.0
      %2539 = vmatprep.subr.mxu0 0.0
      %2540 = vmatpush2.msra.mxu0 0.0
      %2541 = vmatprep.subr.mxu0 0.0
      %2542 = vmatpush2.msra.mxu0 0.0
      %2543 = vmatprep.subr.mxu0 0.0
      %2544 = vmatpush2.msra.mxu0 0.0
      %2545 = vmatprep.subr.mxu0 0.0
      %2546 = vmatpush2.msra.mxu0 0.0
      %2547 = vmatprep.subr.mxu0 0.0
      %2548 = vmatpush2.msra.mxu0 0.0
      %2549 = vmatprep.subr.mxu0 0.0
      %2550 = vmatpush2.msra.mxu0 0.0
      %2551 = vmatprep.mubr.f32.mxu0 0.0
      %2552 = vmatmul.mubr.f32.gmra.mxu0 %v2474
      %v2553 = vpop.f32.mrf.mxu0
      %v2554 = vadd.f32 0.0, %v2553
      %v2555 = vpop.f32.mrf.mxu0
      %2556 = vmatprep.mubr.f32.mxu0 0.0
      %2557 = vmatmul.mubr.f32.gmra.mxu0 %v2477
      %v2558 = vpop.f32.mrf.mxu0
      %v2559 = vadd.f32 0.0, %v2558
      %v2560 = vpop.f32.mrf.mxu0
      %2561 = vmatprep.mubr.f32.mxu0 0.0
      %2562 = vmatmul.mubr.f32.gmra.mxu0 %v2480
      %v2563 = vpop.f32.mrf.mxu0
      %v2564 = vadd.f32 0.0, %v2563
      %v2565 = vpop.f32.mrf.mxu0
      %2566 = vmatprep.mubr.f32.mxu0 0.0
      %2567 = vmatmul.mubr.f32.gmra.mxu0 %v2483
      %v2568 = vpop.f32.mrf.mxu0
      %v2569 = vadd.f32 0.0, %v2568
      %v2570 = vpop.f32.mrf.mxu0
      %2571 = vdwg.mxu0
      %v2572 = vadd.f32 %v2440, %v2554
      %v2573 = vadd.f32 %v2441, %v2559
      %v2574 = vadd.f32 %v2442, %v2564
      %v2575 = vadd.f32 %v2443, %v2569
      %v2576 = vld [vmem:[%s6] sm:$0x1]
      %v2578 = vlaneseq
      %v2579 = vshrl.u32 %v2578, 7
      %v2580 = vsub.s32 0, %v2579
      %v2581 = vrot.slane %v2576, %v2580
      %v2583 = vadd.f32 %v2572, %v2581
      %v2584 = vadd.f32 %v2573, %v2581
      %v2585 = vadd.f32 %v2574, %v2581
      %v2586 = vadd.f32 %v2575, %v2581
      %v2587 = vmax.f32 %v2583, 0.0
      %v2588 = vmax.f32 %v2584, 0.0
      %v2589 = vmax.f32 %v2585, 0.0
      %v2590 = vmax.f32 %v2586, 0.0
      %v2591 = vld [vmem:[%s7] sm:$0x3]
      %v2592 = vunpack.c.l.bf16 %v2591
      %vm2593 = vcmask 203776
      %v2595 = vsel %vm2593, %v2592, 0
      %v2598 = vsel %vm466, %v2590, 0
      %2600 = vmatprep.subr.mxu0 0.0
      %2601 = vmatpush1.msra.mxu0 0.0
      %2602 = vmatprep.subr.mxu0 0.0
      %2603 = vmatpush1.msra.mxu0 0.0
      %2604 = vmatprep.subr.mxu0 0.0
      %2605 = vmatpush1.msra.mxu0 0.0
      %2606 = vmatprep.subr.mxu0 0.0
      %2607 = vmatpush1.msra.mxu0 0.0
      %2608 = vmatprep.subr.mxu0 0.0
      %2609 = vmatpush1.msra.mxu0 0.0
      %2610 = vmatprep.subr.mxu0 0.0
      %2611 = vmatpush1.msra.mxu0 0.0
      %2612 = vmatprep.subr.mxu0 0.0
      %2613 = vmatpush1.msra.mxu0 0.0
      %2614 = vmatprep.subr.mxu0 0.0
      %2615 = vmatpush1.msra.mxu0 0.0
      %2616 = vmatprep.subr.mxu0 0.0
      %2617 = vmatpush1.msra.mxu0 0.0
      %2618 = vmatprep.subr.mxu0 0.0
      %2619 = vmatpush1.msra.mxu0 0.0
      %2620 = vmatprep.subr.mxu0 0.0
      %2621 = vmatpush1.msra.mxu0 0.0
      %2622 = vmatprep.subr.mxu0 0.0
      %2623 = vmatpush1.msra.mxu0 0.0
      %2624 = vmatprep.subr.mxu0 0.0
      %2625 = vmatpush1.msra.mxu0 %v2598
      %2626 = vmatprep.subr.mxu0 0.0
      %2627 = vmatpush1.msra.mxu0 %v2589
      %2628 = vmatprep.subr.mxu0 0.0
      %2629 = vmatpush1.msra.mxu0 %v2588
      %2630 = vmatprep.subr.mxu0 0.0
      %2631 = vmatpush1.msra.mxu0 %v2587
      %2632 = vmatprep.subr.mxu0 0.0
      %2633 = vmatpush2.msra.mxu0 0.0
      %2634 = vmatprep.subr.mxu0 0.0
      %2635 = vmatpush2.msra.mxu0 0.0
      %2636 = vmatprep.subr.mxu0 0.0
      %2637 = vmatpush2.msra.mxu0 0.0
      %2638 = vmatprep.subr.mxu0 0.0
      %2639 = vmatpush2.msra.mxu0 0.0
      %2640 = vmatprep.subr.mxu0 0.0
      %2641 = vmatpush2.msra.mxu0 0.0
      %2642 = vmatprep.subr.mxu0 0.0
      %2643 = vmatpush2.msra.mxu0 0.0
      %2644 = vmatprep.subr.mxu0 0.0
      %2645 = vmatpush2.msra.mxu0 0.0
      %2646 = vmatprep.subr.mxu0 0.0
      %2647 = vmatpush2.msra.mxu0 0.0
      %2648 = vmatprep.subr.mxu0 0.0
      %2649 = vmatpush2.msra.mxu0 0.0
      %2650 = vmatprep.subr.mxu0 0.0
      %2651 = vmatpush2.msra.mxu0 0.0
      %2652 = vmatprep.subr.mxu0 0.0
      %2653 = vmatpush2.msra.mxu0 0.0
      %2654 = vmatprep.subr.mxu0 0.0
      %2655 = vmatpush2.msra.mxu0 0.0
      %2656 = vmatprep.subr.mxu0 0.0
      %2657 = vmatpush2.msra.mxu0 0.0
      %2658 = vmatprep.subr.mxu0 0.0
      %2659 = vmatpush2.msra.mxu0 0.0
      %2660 = vmatprep.subr.mxu0 0.0
      %2661 = vmatpush2.msra.mxu0 0.0
      %2662 = vmatprep.subr.mxu0 0.0
      %2663 = vmatpush2.msra.mxu0 0.0
      %2664 = vmatprep.mubr.f32.mxu0 0.0
      %2665 = vmatmul.mubr.f32.gmra.mxu0 %v2595
      %v2666 = vpop.f32.mrf.mxu0
      %v2667 = vadd.f32 0.0, %v2666
      %v2668 = vpop.f32.mrf.mxu0
      %2669 = vdwg.mxu0
      %s2670 = scalar_lea.vmem %s7, 2
      %v2671 = vld [vmem:[%s2670] sm:$0x3]
      %v2672 = vunpack.c.l.bf16 %v2671
      %v2674 = vsel %vm2593, %v2672, 0
      %2676 = vmatprep.subr.mxu0 0.0
      %2677 = vmatpush1.msra.mxu0 0.0
      %2678 = vmatprep.subr.mxu0 0.0
      %2679 = vmatpush1.msra.mxu0 0.0
      %2680 = vmatprep.subr.mxu0 0.0
      %2681 = vmatpush1.msra.mxu0 0.0
      %2682 = vmatprep.subr.mxu0 0.0
      %2683 = vmatpush1.msra.mxu0 0.0
      %2684 = vmatprep.subr.mxu0 0.0
      %2685 = vmatpush1.msra.mxu0 0.0
      %2686 = vmatprep.subr.mxu0 0.0
      %2687 = vmatpush1.msra.mxu0 0.0
      %2688 = vmatprep.subr.mxu0 0.0
      %2689 = vmatpush1.msra.mxu0 0.0
      %2690 = vmatprep.subr.mxu0 0.0
      %2691 = vmatpush1.msra.mxu0 0.0
      %2692 = vmatprep.subr.mxu0 0.0
      %2693 = vmatpush1.msra.mxu0 0.0
      %2694 = vmatprep.subr.mxu0 0.0
      %2695 = vmatpush1.msra.mxu0 0.0
      %2696 = vmatprep.subr.mxu0 0.0
      %2697 = vmatpush1.msra.mxu0 0.0
      %2698 = vmatprep.subr.mxu0 0.0
      %2699 = vmatpush1.msra.mxu0 0.0
      %2700 = vmatprep.subr.mxu0 0.0
      %2701 = vmatpush1.msra.mxu0 %v2598
      %2702 = vmatprep.subr.mxu0 0.0
      %2703 = vmatpush1.msra.mxu0 %v2589
      %2704 = vmatprep.subr.mxu0 0.0
      %2705 = vmatpush1.msra.mxu0 %v2588
      %2706 = vmatprep.subr.mxu0 0.0
      %2707 = vmatpush1.msra.mxu0 %v2587
      %2708 = vmatprep.subr.mxu0 0.0
      %2709 = vmatpush2.msra.mxu0 0.0
      %2710 = vmatprep.subr.mxu0 0.0
      %2711 = vmatpush2.msra.mxu0 0.0
      %2712 = vmatprep.subr.mxu0 0.0
      %2713 = vmatpush2.msra.mxu0 0.0
      %2714 = vmatprep.subr.mxu0 0.0
      %2715 = vmatpush2.msra.mxu0 0.0
      %2716 = vmatprep.subr.mxu0 0.0
      %2717 = vmatpush2.msra.mxu0 0.0
      %2718 = vmatprep.subr.mxu0 0.0
      %2719 = vmatpush2.msra.mxu0 0.0
      %2720 = vmatprep.subr.mxu0 0.0
      %2721 = vmatpush2.msra.mxu0 0.0
      %2722 = vmatprep.subr.mxu0 0.0
      %2723 = vmatpush2.msra.mxu0 0.0
      %2724 = vmatprep.subr.mxu0 0.0
      %2725 = vmatpush2.msra.mxu0 0.0
      %2726 = vmatprep.subr.mxu0 0.0
      %2727 = vmatpush2.msra.mxu0 0.0
      %2728 = vmatprep.subr.mxu0 0.0
      %2729 = vmatpush2.msra.mxu0 0.0
      %2730 = vmatprep.subr.mxu0 0.0
      %2731 = vmatpush2.msra.mxu0 0.0
      %2732 = vmatprep.subr.mxu0 0.0
      %2733 = vmatpush2.msra.mxu0 0.0
      %2734 = vmatprep.subr.mxu0 0.0
      %2735 = vmatpush2.msra.mxu0 0.0
      %2736 = vmatprep.subr.mxu0 0.0
      %2737 = vmatpush2.msra.mxu0 0.0
      %2738 = vmatprep.subr.mxu0 0.0
      %2739 = vmatpush2.msra.mxu0 0.0
      %2740 = vmatprep.mubr.f32.mxu0 0.0
      %2741 = vmatmul.mubr.f32.gmra.mxu0 %v2674
      %v2742 = vpop.f32.mrf.mxu0
      %v2743 = vadd.f32 0.0, %v2742
      %v2744 = vpop.f32.mrf.mxu0
      %2745 = vdwg.mxu0
      %v2746 = vmax.f32 %v2667, %v2743
      %s2747 = scalar_lea.vmem %s7, 4
      %v2748 = vld [vmem:[%s2747] sm:$0x3]
      %v2749 = vunpack.c.l.bf16 %v2748
      %v2751 = vsel %vm2593, %v2749, 0
      %2753 = vmatprep.subr.mxu0 0.0
      %2754 = vmatpush1.msra.mxu0 0.0
      %2755 = vmatprep.subr.mxu0 0.0
      %2756 = vmatpush1.msra.mxu0 0.0
      %2757 = vmatprep.subr.mxu0 0.0
      %2758 = vmatpush1.msra.mxu0 0.0
      %2759 = vmatprep.subr.mxu0 0.0
      %2760 = vmatpush1.msra.mxu0 0.0
      %2761 = vmatprep.subr.mxu0 0.0
      %2762 = vmatpush1.msra.mxu0 0.0
      %2763 = vmatprep.subr.mxu0 0.0
      %2764 = vmatpush1.msra.mxu0 0.0
      %2765 = vmatprep.subr.mxu0 0.0
      %2766 = vmatpush1.msra.mxu0 0.0
      %2767 = vmatprep.subr.mxu0 0.0
      %2768 = vmatpush1.msra.mxu0 0.0
      %2769 = vmatprep.subr.mxu0 0.0
      %2770 = vmatpush1.msra.mxu0 0.0
      %2771 = vmatprep.subr.mxu0 0.0
      %2772 = vmatpush1.msra.mxu0 0.0
      %2773 = vmatprep.subr.mxu0 0.0
      %2774 = vmatpush1.msra.mxu0 0.0
      %2775 = vmatprep.subr.mxu0 0.0
      %2776 = vmatpush1.msra.mxu0 0.0
      %2777 = vmatprep.subr.mxu0 0.0
      %2778 = vmatpush1.msra.mxu0 %v2598
      %2779 = vmatprep.subr.mxu0 0.0
      %2780 = vmatpush1.msra.mxu0 %v2589
      %2781 = vmatprep.subr.mxu0 0.0
      %2782 = vmatpush1.msra.mxu0 %v2588
      %2783 = vmatprep.subr.mxu0 0.0
      %2784 = vmatpush1.msra.mxu0 %v2587
      %2785 = vmatprep.subr.mxu0 0.0
      %2786 = vmatpush2.msra.mxu0 0.0
      %2787 = vmatprep.subr.mxu0 0.0
      %2788 = vmatpush2.msra.mxu0 0.0
      %2789 = vmatprep.subr.mxu0 0.0
      %2790 = vmatpush2.msra.mxu0 0.0
      %2791 = vmatprep.subr.mxu0 0.0
      %2792 = vmatpush2.msra.mxu0 0.0
      %2793 = vmatprep.subr.mxu0 0.0
      %2794 = vmatpush2.msra.mxu0 0.0
      %2795 = vmatprep.subr.mxu0 0.0
      %2796 = vmatpush2.msra.mxu0 0.0
      %2797 = vmatprep.subr.mxu0 0.0
      %2798 = vmatpush2.msra.mxu0 0.0
      %2799 = vmatprep.subr.mxu0 0.0
      %2800 = vmatpush2.msra.mxu0 0.0
      %2801 = vmatprep.subr.mxu0 0.0
      %2802 = vmatpush2.msra.mxu0 0.0
      %2803 = vmatprep.subr.mxu0 0.0
      %2804 = vmatpush2.msra.mxu0 0.0
      %2805 = vmatprep.subr.mxu0 0.0
      %2806 = vmatpush2.msra.mxu0 0.0
      %2807 = vmatprep.subr.mxu0 0.0
      %2808 = vmatpush2.msra.mxu0 0.0
      %2809 = vmatprep.subr.mxu0 0.0
      %2810 = vmatpush2.msra.mxu0 0.0
      %2811 = vmatprep.subr.mxu0 0.0
      %2812 = vmatpush2.msra.mxu0 0.0
      %2813 = vmatprep.subr.mxu0 0.0
      %2814 = vmatpush2.msra.mxu0 0.0
      %2815 = vmatprep.subr.mxu0 0.0
      %2816 = vmatpush2.msra.mxu0 0.0
      %2817 = vmatprep.mubr.f32.mxu0 0.0
      %2818 = vmatmul.mubr.f32.gmra.mxu0 %v2751
      %v2819 = vpop.f32.mrf.mxu0
      %v2820 = vadd.f32 0.0, %v2819
      %v2821 = vpop.f32.mrf.mxu0
      %2822 = vdwg.mxu0
      %v2823 = vmax.f32 %v2746, %v2820
      %s2824 = scalar_lea.vmem %s7, 6
      %v2825 = vld [vmem:[%s2824] sm:$0x3]
      %v2826 = vunpack.c.l.bf16 %v2825
      %v2828 = vsel %vm2593, %v2826, 0
      %2830 = vmatprep.subr.mxu0 0.0
      %2831 = vmatpush1.msra.mxu0 0.0
      %2832 = vmatprep.subr.mxu0 0.0
      %2833 = vmatpush1.msra.mxu0 0.0
      %2834 = vmatprep.subr.mxu0 0.0
      %2835 = vmatpush1.msra.mxu0 0.0
      %2836 = vmatprep.subr.mxu0 0.0
      %2837 = vmatpush1.msra.mxu0 0.0
      %2838 = vmatprep.subr.mxu0 0.0
      %2839 = vmatpush1.msra.mxu0 0.0
      %2840 = vmatprep.subr.mxu0 0.0
      %2841 = vmatpush1.msra.mxu0 0.0
      %2842 = vmatprep.subr.mxu0 0.0
      %2843 = vmatpush1.msra.mxu0 0.0
      %2844 = vmatprep.subr.mxu0 0.0
      %2845 = vmatpush1.msra.mxu0 0.0
      %2846 = vmatprep.subr.mxu0 0.0
      %2847 = vmatpush1.msra.mxu0 0.0
      %2848 = vmatprep.subr.mxu0 0.0
      %2849 = vmatpush1.msra.mxu0 0.0
      %2850 = vmatprep.subr.mxu0 0.0
      %2851 = vmatpush1.msra.mxu0 0.0
      %2852 = vmatprep.subr.mxu0 0.0
      %2853 = vmatpush1.msra.mxu0 0.0
      %2854 = vmatprep.subr.mxu0 0.0
      %2855 = vmatpush1.msra.mxu0 %v2598
      %2856 = vmatprep.subr.mxu0 0.0
      %2857 = vmatpush1.msra.mxu0 %v2589
      %2858 = vmatprep.subr.mxu0 0.0
      %2859 = vmatpush1.msra.mxu0 %v2588
      %2860 = vmatprep.subr.mxu0 0.0
      %2861 = vmatpush1.msra.mxu0 %v2587
      %2862 = vmatprep.subr.mxu0 0.0
      %2863 = vmatpush2.msra.mxu0 0.0
      %2864 = vmatprep.subr.mxu0 0.0
      %2865 = vmatpush2.msra.mxu0 0.0
      %2866 = vmatprep.subr.mxu0 0.0
      %2867 = vmatpush2.msra.mxu0 0.0
      %2868 = vmatprep.subr.mxu0 0.0
      %2869 = vmatpush2.msra.mxu0 0.0
      %2870 = vmatprep.subr.mxu0 0.0
      %2871 = vmatpush2.msra.mxu0 0.0
      %2872 = vmatprep.subr.mxu0 0.0
      %2873 = vmatpush2.msra.mxu0 0.0
      %2874 = vmatprep.subr.mxu0 0.0
      %2875 = vmatpush2.msra.mxu0 0.0
      %2876 = vmatprep.subr.mxu0 0.0
      %2877 = vmatpush2.msra.mxu0 0.0
      %2878 = vmatprep.subr.mxu0 0.0
      %2879 = vmatpush2.msra.mxu0 0.0
      %2880 = vmatprep.subr.mxu0 0.0
      %2881 = vmatpush2.msra.mxu0 0.0
      %2882 = vmatprep.subr.mxu0 0.0
      %2883 = vmatpush2.msra.mxu0 0.0
      %2884 = vmatprep.subr.mxu0 0.0
      %2885 = vmatpush2.msra.mxu0 0.0
      %2886 = vmatprep.subr.mxu0 0.0
      %2887 = vmatpush2.msra.mxu0 0.0
      %2888 = vmatprep.subr.mxu0 0.0
      %2889 = vmatpush2.msra.mxu0 0.0
      %2890 = vmatprep.subr.mxu0 0.0
      %2891 = vmatpush2.msra.mxu0 0.0
      %2892 = vmatprep.subr.mxu0 0.0
      %2893 = vmatpush2.msra.mxu0 0.0
      %2894 = vmatprep.mubr.f32.mxu0 0.0
      %2895 = vmatmul.mubr.f32.gmra.mxu0 %v2828
      %v2896 = vpop.f32.mrf.mxu0
      %v2897 = vadd.f32 0.0, %v2896
      %v2898 = vpop.f32.mrf.mxu0
      %2899 = vdwg.mxu0
      %v2900 = vmax.f32 %v2823, %v2897
      %v2901 = vld [vmem:[%s9] sm:$0x1]
      %v2902 = vld [vmem:[%s8] sm:$0xff]
      %v2903 = vld [vmem:[%s8 + $0x8] sm:$0xf]
      %vm2904 = vcmask 97280
      %v2906 = vsel %vm2904, %v2900, 0
      %v2909 = vsel %vm728, %v2903, 0
      %2911 = vmatprep.subr.mxu0 0.0
      %2912 = vmatpush1.msra.mxu0 0.0
      %2913 = vmatprep.subr.mxu0 0.0
      %2914 = vmatpush1.msra.mxu0 0.0
      %2915 = vmatprep.subr.mxu0 0.0
      %2916 = vmatpush1.msra.mxu0 0.0
      %2917 = vmatprep.subr.mxu0 0.0
      %2918 = vmatpush1.msra.mxu0 0.0
      %2919 = vmatprep.subr.mxu0 0.0
      %2920 = vmatpush1.msra.mxu0 0.0
      %2921 = vmatprep.subr.mxu0 0.0
      %2922 = vmatpush1.msra.mxu0 0.0
      %2923 = vmatprep.subr.mxu0 0.0
      %2924 = vmatpush1.msra.mxu0 0.0
      %2925 = vmatprep.subr.mxu0 0.0
      %2926 = vmatpush1.msra.mxu0 0.0
      %2927 = vmatprep.subr.mxu0 0.0
      %2928 = vmatpush1.msra.mxu0 0.0
      %2929 = vmatprep.subr.mxu0 0.0
      %2930 = vmatpush1.msra.mxu0 0.0
      %2931 = vmatprep.subr.mxu0 0.0
      %2932 = vmatpush1.msra.mxu0 0.0
      %2933 = vmatprep.subr.mxu0 0.0
      %2934 = vmatpush1.msra.mxu0 0.0
      %2935 = vmatprep.subr.mxu0 0.0
      %2936 = vmatpush1.msra.mxu0 0.0
      %2937 = vmatprep.subr.mxu0 0.0
      %2938 = vmatpush1.msra.mxu0 0.0
      %2939 = vmatprep.subr.mxu0 0.0
      %2940 = vmatpush1.msra.mxu0 %v2909
      %2941 = vmatprep.subr.mxu0 0.0
      %2942 = vmatpush1.msra.mxu0 %v2902
      %2943 = vmatprep.subr.mxu0 0.0
      %2944 = vmatpush2.msra.mxu0 0.0
      %2945 = vmatprep.subr.mxu0 0.0
      %2946 = vmatpush2.msra.mxu0 0.0
      %2947 = vmatprep.subr.mxu0 0.0
      %2948 = vmatpush2.msra.mxu0 0.0
      %2949 = vmatprep.subr.mxu0 0.0
      %2950 = vmatpush2.msra.mxu0 0.0
      %2951 = vmatprep.subr.mxu0 0.0
      %2952 = vmatpush2.msra.mxu0 0.0
      %2953 = vmatprep.subr.mxu0 0.0
      %2954 = vmatpush2.msra.mxu0 0.0
      %2955 = vmatprep.subr.mxu0 0.0
      %2956 = vmatpush2.msra.mxu0 0.0
      %2957 = vmatprep.subr.mxu0 0.0
      %2958 = vmatpush2.msra.mxu0 0.0
      %2959 = vmatprep.subr.mxu0 0.0
      %2960 = vmatpush2.msra.mxu0 0.0
      %2961 = vmatprep.subr.mxu0 0.0
      %2962 = vmatpush2.msra.mxu0 0.0
      %2963 = vmatprep.subr.mxu0 0.0
      %2964 = vmatpush2.msra.mxu0 0.0
      %2965 = vmatprep.subr.mxu0 0.0
      %2966 = vmatpush2.msra.mxu0 0.0
      %2967 = vmatprep.subr.mxu0 0.0
      %2968 = vmatpush2.msra.mxu0 0.0
      %2969 = vmatprep.subr.mxu0 0.0
      %2970 = vmatpush2.msra.mxu0 0.0
      %2971 = vmatprep.subr.mxu0 0.0
      %2972 = vmatpush2.msra.mxu0 0.0
      %2973 = vmatprep.subr.mxu0 0.0
      %2974 = vmatpush2.msra.mxu0 0.0
      %2975 = vmatprep.mubr.f32.mxu0 0.0
      %2976 = vmatmul.mubr.f32.gmra.mxu0 %v2906
      %v2977 = vpop.f32.mrf.mxu0
      %v2978 = vadd.f32 0.0, %v2977
      %v2979 = vpop.f32.mrf.mxu0
      %2980 = vdwg.mxu0
      %v2981 = vadd.f32 %v2901, %v2978
      %s2982 = scalar_lea.vmem %s8, 16
      %v2983 = vld [vmem:[%s2982] sm:$0xff]
      %v2984 = vld [vmem:[%s2982 + $0x8] sm:$0xf]
      %v2985 = vrot.slane %v2900, 1
      %v2986 = vsel %vm2904, %v2985, 0
      %v2989 = vsel %vm728, %v2984, 0
      %2991 = vmatprep.subr.mxu0 0.0
      %2992 = vmatpush1.msra.mxu0 0.0
      %2993 = vmatprep.subr.mxu0 0.0
      %2994 = vmatpush1.msra.mxu0 0.0
      %2995 = vmatprep.subr.mxu0 0.0
      %2996 = vmatpush1.msra.mxu0 0.0
      %2997 = vmatprep.subr.mxu0 0.0
      %2998 = vmatpush1.msra.mxu0 0.0
      %2999 = vmatprep.subr.mxu0 0.0
      %3000 = vmatpush1.msra.mxu0 0.0
      %3001 = vmatprep.subr.mxu0 0.0
      %3002 = vmatpush1.msra.mxu0 0.0
      %3003 = vmatprep.subr.mxu0 0.0
      %3004 = vmatpush1.msra.mxu0 0.0
      %3005 = vmatprep.subr.mxu0 0.0
      %3006 = vmatpush1.msra.mxu0 0.0
      %3007 = vmatprep.subr.mxu0 0.0
      %3008 = vmatpush1.msra.mxu0 0.0
      %3009 = vmatprep.subr.mxu0 0.0
      %3010 = vmatpush1.msra.mxu0 0.0
      %3011 = vmatprep.subr.mxu0 0.0
      %3012 = vmatpush1.msra.mxu0 0.0
      %3013 = vmatprep.subr.mxu0 0.0
      %3014 = vmatpush1.msra.mxu0 0.0
      %3015 = vmatprep.subr.mxu0 0.0
      %3016 = vmatpush1.msra.mxu0 0.0
      %3017 = vmatprep.subr.mxu0 0.0
      %3018 = vmatpush1.msra.mxu0 0.0
      %3019 = vmatprep.subr.mxu0 0.0
      %3020 = vmatpush1.msra.mxu0 %v2989
      %3021 = vmatprep.subr.mxu0 0.0
      %3022 = vmatpush1.msra.mxu0 %v2983
      %3023 = vmatprep.subr.mxu0 0.0
      %3024 = vmatpush2.msra.mxu0 0.0
      %3025 = vmatprep.subr.mxu0 0.0
      %3026 = vmatpush2.msra.mxu0 0.0
      %3027 = vmatprep.subr.mxu0 0.0
      %3028 = vmatpush2.msra.mxu0 0.0
      %3029 = vmatprep.subr.mxu0 0.0
      %3030 = vmatpush2.msra.mxu0 0.0
      %3031 = vmatprep.subr.mxu0 0.0
      %3032 = vmatpush2.msra.mxu0 0.0
      %3033 = vmatprep.subr.mxu0 0.0
      %3034 = vmatpush2.msra.mxu0 0.0
      %3035 = vmatprep.subr.mxu0 0.0
      %3036 = vmatpush2.msra.mxu0 0.0
      %3037 = vmatprep.subr.mxu0 0.0
      %3038 = vmatpush2.msra.mxu0 0.0
      %3039 = vmatprep.subr.mxu0 0.0
      %3040 = vmatpush2.msra.mxu0 0.0
      %3041 = vmatprep.subr.mxu0 0.0
      %3042 = vmatpush2.msra.mxu0 0.0
      %3043 = vmatprep.subr.mxu0 0.0
      %3044 = vmatpush2.msra.mxu0 0.0
      %3045 = vmatprep.subr.mxu0 0.0
      %3046 = vmatpush2.msra.mxu0 0.0
      %3047 = vmatprep.subr.mxu0 0.0
      %3048 = vmatpush2.msra.mxu0 0.0
      %3049 = vmatprep.subr.mxu0 0.0
      %3050 = vmatpush2.msra.mxu0 0.0
      %3051 = vmatprep.subr.mxu0 0.0
      %3052 = vmatpush2.msra.mxu0 0.0
      %3053 = vmatprep.subr.mxu0 0.0
      %3054 = vmatpush2.msra.mxu0 0.0
      %3055 = vmatprep.mubr.f32.mxu0 0.0
      %3056 = vmatmul.mubr.f32.gmra.mxu0 %v2986
      %v3057 = vpop.f32.mrf.mxu0
      %v3058 = vadd.f32 0.0, %v3057
      %v3059 = vpop.f32.mrf.mxu0
      %3060 = vdwg.mxu0
      %v3061 = vadd.f32 %v2981, %v3058
      %s3062 = scalar_lea.vmem %s8, 32
      %v3063 = vld [vmem:[%s3062] sm:$0xff]
      %v3064 = vld [vmem:[%s3062 + $0x8] sm:$0xf]
      %v3065 = vrot.slane %v2900, 2
      %v3066 = vsel %vm2904, %v3065, 0
      %v3069 = vsel %vm728, %v3064, 0
      %3071 = vmatprep.subr.mxu0 0.0
      %3072 = vmatpush1.msra.mxu0 0.0
      %3073 = vmatprep.subr.mxu0 0.0
      %3074 = vmatpush1.msra.mxu0 0.0
      %3075 = vmatprep.subr.mxu0 0.0
      %3076 = vmatpush1.msra.mxu0 0.0
      %3077 = vmatprep.subr.mxu0 0.0
      %3078 = vmatpush1.msra.mxu0 0.0
      %3079 = vmatprep.subr.mxu0 0.0
      %3080 = vmatpush1.msra.mxu0 0.0
      %3081 = vmatprep.subr.mxu0 0.0
      %3082 = vmatpush1.msra.mxu0 0.0
      %3083 = vmatprep.subr.mxu0 0.0
      %3084 = vmatpush1.msra.mxu0 0.0
      %3085 = vmatprep.subr.mxu0 0.0
      %3086 = vmatpush1.msra.mxu0 0.0
      %3087 = vmatprep.subr.mxu0 0.0
      %3088 = vmatpush1.msra.mxu0 0.0
      %3089 = vmatprep.subr.mxu0 0.0
      %3090 = vmatpush1.msra.mxu0 0.0
      %3091 = vmatprep.subr.mxu0 0.0
      %3092 = vmatpush1.msra.mxu0 0.0
      %3093 = vmatprep.subr.mxu0 0.0
      %3094 = vmatpush1.msra.mxu0 0.0
      %3095 = vmatprep.subr.mxu0 0.0
      %3096 = vmatpush1.msra.mxu0 0.0
      %3097 = vmatprep.subr.mxu0 0.0
      %3098 = vmatpush1.msra.mxu0 0.0
      %3099 = vmatprep.subr.mxu0 0.0
      %3100 = vmatpush1.msra.mxu0 %v3069
      %3101 = vmatprep.subr.mxu0 0.0
      %3102 = vmatpush1.msra.mxu0 %v3063
      %3103 = vmatprep.subr.mxu0 0.0
      %3104 = vmatpush2.msra.mxu0 0.0
      %3105 = vmatprep.subr.mxu0 0.0
      %3106 = vmatpush2.msra.mxu0 0.0
      %3107 = vmatprep.subr.mxu0 0.0
      %3108 = vmatpush2.msra.mxu0 0.0
      %3109 = vmatprep.subr.mxu0 0.0
      %3110 = vmatpush2.msra.mxu0 0.0
      %3111 = vmatprep.subr.mxu0 0.0
      %3112 = vmatpush2.msra.mxu0 0.0
      %3113 = vmatprep.subr.mxu0 0.0
      %3114 = vmatpush2.msra.mxu0 0.0
      %3115 = vmatprep.subr.mxu0 0.0
      %3116 = vmatpush2.msra.mxu0 0.0
      %3117 = vmatprep.subr.mxu0 0.0
      %3118 = vmatpush2.msra.mxu0 0.0
      %3119 = vmatprep.subr.mxu0 0.0
      %3120 = vmatpush2.msra.mxu0 0.0
      %3121 = vmatprep.subr.mxu0 0.0
      %3122 = vmatpush2.msra.mxu0 0.0
      %3123 = vmatprep.subr.mxu0 0.0
      %3124 = vmatpush2.msra.mxu0 0.0
      %3125 = vmatprep.subr.mxu0 0.0
      %3126 = vmatpush2.msra.mxu0 0.0
      %3127 = vmatprep.subr.mxu0 0.0
      %3128 = vmatpush2.msra.mxu0 0.0
      %3129 = vmatprep.subr.mxu0 0.0
      %3130 = vmatpush2.msra.mxu0 0.0
      %3131 = vmatprep.subr.mxu0 0.0
      %3132 = vmatpush2.msra.mxu0 0.0
      %3133 = vmatprep.subr.mxu0 0.0
      %3134 = vmatpush2.msra.mxu0 0.0
      %3135 = vmatprep.mubr.f32.mxu0 0.0
      %3136 = vmatmul.mubr.f32.gmra.mxu0 %v3066
      %v3137 = vpop.f32.mrf.mxu0
      %v3138 = vadd.f32 0.0, %v3137
      %v3139 = vpop.f32.mrf.mxu0
      %3140 = vdwg.mxu0
      %v3141 = vadd.f32 %v3061, %v3138
      %s3142 = scalar_lea.vmem %s8, 48
      %v3143 = vld [vmem:[%s3142] sm:$0xff]
      %v3144 = vld [vmem:[%s3142 + $0x8] sm:$0xf]
      %v3145 = vrot.slane %v2900, 3
      %v3146 = vsel %vm2904, %v3145, 0
      %v3149 = vsel %vm728, %v3144, 0
      %3151 = vmatprep.subr.mxu0 0.0
      %3152 = vmatpush1.msra.mxu0 0.0
      %3153 = vmatprep.subr.mxu0 0.0
      %3154 = vmatpush1.msra.mxu0 0.0
      %3155 = vmatprep.subr.mxu0 0.0
      %3156 = vmatpush1.msra.mxu0 0.0
      %3157 = vmatprep.subr.mxu0 0.0
      %3158 = vmatpush1.msra.mxu0 0.0
      %3159 = vmatprep.subr.mxu0 0.0
      %3160 = vmatpush1.msra.mxu0 0.0
      %3161 = vmatprep.subr.mxu0 0.0
      %3162 = vmatpush1.msra.mxu0 0.0
      %3163 = vmatprep.subr.mxu0 0.0
      %3164 = vmatpush1.msra.mxu0 0.0
      %3165 = vmatprep.subr.mxu0 0.0
      %3166 = vmatpush1.msra.mxu0 0.0
      %3167 = vmatprep.subr.mxu0 0.0
      %3168 = vmatpush1.msra.mxu0 0.0
      %3169 = vmatprep.subr.mxu0 0.0
      %3170 = vmatpush1.msra.mxu0 0.0
      %3171 = vmatprep.subr.mxu0 0.0
      %3172 = vmatpush1.msra.mxu0 0.0
      %3173 = vmatprep.subr.mxu0 0.0
      %3174 = vmatpush1.msra.mxu0 0.0
      %3175 = vmatprep.subr.mxu0 0.0
      %3176 = vmatpush1.msra.mxu0 0.0
      %3177 = vmatprep.subr.mxu0 0.0
      %3178 = vmatpush1.msra.mxu0 0.0
      %3179 = vmatprep.subr.mxu0 0.0
      %3180 = vmatpush1.msra.mxu0 %v3149
      %3181 = vmatprep.subr.mxu0 0.0
      %3182 = vmatpush1.msra.mxu0 %v3143
      %3183 = vmatprep.subr.mxu0 0.0
      %3184 = vmatpush2.msra.mxu0 0.0
      %3185 = vmatprep.subr.mxu0 0.0
      %3186 = vmatpush2.msra.mxu0 0.0
      %3187 = vmatprep.subr.mxu0 0.0
      %3188 = vmatpush2.msra.mxu0 0.0
      %3189 = vmatprep.subr.mxu0 0.0
      %3190 = vmatpush2.msra.mxu0 0.0
      %3191 = vmatprep.subr.mxu0 0.0
      %3192 = vmatpush2.msra.mxu0 0.0
      %3193 = vmatprep.subr.mxu0 0.0
      %3194 = vmatpush2.msra.mxu0 0.0
      %3195 = vmatprep.subr.mxu0 0.0
      %3196 = vmatpush2.msra.mxu0 0.0
      %3197 = vmatprep.subr.mxu0 0.0
      %3198 = vmatpush2.msra.mxu0 0.0
      %3199 = vmatprep.subr.mxu0 0.0
      %3200 = vmatpush2.msra.mxu0 0.0
      %3201 = vmatprep.subr.mxu0 0.0
      %3202 = vmatpush2.msra.mxu0 0.0
      %3203 = vmatprep.subr.mxu0 0.0
      %3204 = vmatpush2.msra.mxu0 0.0
      %3205 = vmatprep.subr.mxu0 0.0
      %3206 = vmatpush2.msra.mxu0 0.0
      %3207 = vmatprep.subr.mxu0 0.0
      %3208 = vmatpush2.msra.mxu0 0.0
      %3209 = vmatprep.subr.mxu0 0.0
      %3210 = vmatpush2.msra.mxu0 0.0
      %3211 = vmatprep.subr.mxu0 0.0
      %3212 = vmatpush2.msra.mxu0 0.0
      %3213 = vmatprep.subr.mxu0 0.0
      %3214 = vmatpush2.msra.mxu0 0.0
      %3215 = vmatprep.mubr.f32.mxu0 0.0
      %3216 = vmatmul.mubr.f32.gmra.mxu0 %v3146
      %v3217 = vpop.f32.mrf.mxu0
      %v3218 = vadd.f32 0.0, %v3217
      %v3219 = vpop.f32.mrf.mxu0
      %3220 = vdwg.mxu0
      %v3221 = vadd.f32 %v3141, %v3218
      %3222 = vst [vmem:[%s355] sm:$0x1] %v3221
      %p3223 = scmp.lt.s32.totalorder %s21, 1
      %s3224 = scalar_select %p3223, %s21, 1
      %s3225 = scalar_lea.vmem %s10, %s3224
      // Predicated region
      $region61: #{forward.1} parent=59 // pred_check
        %p3226 = pneg %p254
      $region62: #{forward.1} parent=59 // pred_check_branch
        %3228 = sbr.rel (%p3226) target = $region64
      $region63: #{forward.1} parent=59 // pred_region
        _
      $region64: #{forward.1} parent=59 // pred_fallthru
        _
    $region60: #{forward.1} parent=5 // pred_fallthru
      _
    %p3229 = scmp.le.s32.totalorder 2, %s16
    // Predicated region
    $region65: #{forward.1} parent=5 // pred_check
      %p3230 = pneg %p3229
    $region66: #{forward.1} parent=5 // pred_check_branch
      %3232 = sbr.rel (%p3230) target = $region68
    $region67: #{forward.1} parent=5 // pred_region
      %s3233 = ssub.s32 %s16, 2
      // Predicated region
      $region69: #{forward.1} parent=67 // pred_check
        %p3234 = pneg %p260
      $region70: #{forward.1} parent=67 // pred_check_branch
        %3236 = sbr.rel (%p3234) target = $region72
      $region71: #{forward.1} parent=67 // pred_region
        %p3237 = scmp.lt.s32.totalorder %s22, 1
        %s3238 = scalar_select %p3237, %s22, 1
        %s3239 = scalar_lea.vmem %s10, %s3238
      $region72: #{forward.1} parent=67 // pred_fallthru
        _
    $region68: #{forward.1} parent=5 // pred_fallthru
      _
  $region6: #{forward.1} parent=0 // loop_footer
    %s20 = sadd.s32 1, %s16
  $region7: #{forward.1} parent=0 // loop_footer_branch
    %15 = sbr.rel target = $region3
  $region8: #{forward.1} parent=0 // loop_exit
    _

</llo_original>
